<compile_context>
chip_gen: v7x
topology: tpu7x:2x2x1
jax: 0.10.0
libtpu: 0.0.40
codegen_flags: <defaults>
</compile_context>

<pallas_src>
import numpy as np
import jax
import jax.numpy as jnp
from jax.experimental import pallas as pl
from jax.experimental.pallas import tpu as pltpu


# Padded widths (multiples of 128 so pool-group slices are vreg aligned).
_K1 = 128    # conv1 contraction depth (112 meaningful rows, 4x4 s2d of 28x28x1)
_GW1 = 256   # conv1 per-pool-group output width (240 meaningful: q2*40+a*20+b*10+c)
_K2 = 256    # conv2 contraction depth (240 meaningful)
_GW2 = 128   # conv2 per-pool-group output width (40 meaningful: wp2*10+c)


# ----------------------------- fused Pallas kernel -----------------------------

def _cnn_fused_kernel(x2_ref, w1_ref, b1_ref, w2_ref, b2_ref,
                      wf1_ref, bf1_ref, wf2_ref, bf2_ref,
                      o_ref, h1_ref, h2_ref):
    """Whole forward pass for one image.

    x2_ref : (1, 7, 128)    4x4 space-to-depth input, cols (q, ra, ca) + pad
    w1_ref : (2, 128, 1024) conv1 block weights, cols (g1, q2, a, b, c) padded
    b1_ref : (1, 1024)
    w2_ref : (3, 256, 512)  conv2 block weights, cols (g2, wp2, c) padded
    b2_ref : (1, 512)
    wf1_ref: (4, 128, 100)  fc1 split into 4 row blocks (one per conv2 out row)
    bf1_ref: (1, 100)       wf2_ref: (100, 10)   bf2_ref: (1, 10)
    o_ref  : (1, 1, 10)     log-probabilities
    h1_ref : (6, 256)  VMEM scratch   h2_ref: (4, 128) VMEM scratch
    """
    f32 = jnp.float32

    # ---- conv1 + bias + 2x2 maxpool + relu : 2 shifted MXU matmuls ----
    acc1 = jnp.dot(x2_ref[0, 0:6, :], w1_ref[0], preferred_element_type=f32)
    acc1 = acc1 + jnp.dot(x2_ref[0, 1:7, :], w1_ref[1], preferred_element_type=f32)
    acc1 = acc1 + b1_ref[...]                       # (6, 1024)
    g = _GW1                                        # aligned lane-slice pool max
    h1_ref[...] = jnp.maximum(
        jnp.maximum(jnp.maximum(acc1[:, 0:g], acc1[:, g:2 * g]),
                    jnp.maximum(acc1[:, 2 * g:3 * g], acc1[:, 3 * g:4 * g])),
        0.0)                                        # (6, 256) = conv2's s2d input

    # ---- conv2 + bias + 2x2 maxpool + relu : 3 shifted MXU matmuls ----
    acc2 = jnp.dot(h1_ref[0:4, :], w2_ref[0], preferred_element_type=f32)
    acc2 = acc2 + jnp.dot(h1_ref[1:5, :], w2_ref[1], preferred_element_type=f32)
    acc2 = acc2 + jnp.dot(h1_ref[2:6, :], w2_ref[2], preferred_element_type=f32)
    acc2 = acc2 + b2_ref[...]                       # (4, 512)
    g = _GW2
    h2_ref[...] = jnp.maximum(
        jnp.maximum(jnp.maximum(acc2[:, 0:g], acc2[:, g:2 * g]),
                    jnp.maximum(acc2[:, 2 * g:3 * g], acc2[:, 3 * g:4 * g])),
        0.0)                                        # (4, 128), cols>=40 are zero

    # TODO(synk): Dropout2d(p=0.25) is identity in eval mode; training-mode
    # per-channel dropout is not implemented here.

    # ---- fc1 (4 accumulating row-block matmuls) -> fc2 -> log_softmax ----
    h3 = bf1_ref[...]                               # (1, 100)
    for hi in range(4):
        h3 = h3 + jnp.dot(h2_ref[hi:hi + 1, :], wf1_ref[hi],
                          preferred_element_type=f32)
    y = jnp.dot(h3, wf2_ref[...], preferred_element_type=f32) + bf2_ref[...]
    m = jnp.max(y, axis=-1, keepdims=True)
    s = y - m
    lse = jnp.log(jnp.sum(jnp.exp(s), axis=-1, keepdims=True))
    o_ref[0] = s - lse                              # (1, 10)


# ----------------------------- pallas_call wrapper -----------------------------

def _cnn_pallas(x2, p):
    n = x2.shape[0]
    out = pl.pallas_call(
        _cnn_fused_kernel,
        out_shape=jax.ShapeDtypeStruct((n, 1, 10), jnp.float32),
        grid=(n,),
        in_specs=[
            pl.BlockSpec((1, 7, _K1), lambda i: (i, 0, 0)),
            # weights / biases: constant index maps -> resident in VMEM
            pl.BlockSpec(p["w1blk"].shape, lambda i: (0, 0, 0)),
            pl.BlockSpec(p["b1blk"].shape, lambda i: (0, 0)),
            pl.BlockSpec(p["w2blk"].shape, lambda i: (0, 0, 0)),
            pl.BlockSpec(p["b2blk"].shape, lambda i: (0, 0)),
            pl.BlockSpec(p["wf1blk"].shape, lambda i: (0, 0, 0)),
            pl.BlockSpec(p["bf1"].shape, lambda i: (0, 0)),
            pl.BlockSpec(p["wf2"].shape, lambda i: (0, 0)),
            pl.BlockSpec(p["bf2"].shape, lambda i: (0, 0)),
        ],
        out_specs=pl.BlockSpec((1, 1, 10), lambda i: (i, 0, 0)),
        scratch_shapes=[pltpu.VMEM((6, _GW1), jnp.float32),
                        pltpu.VMEM((4, _GW2), jnp.float32)],
        compiler_params=pltpu.CompilerParams(dimension_semantics=("parallel",)),
    )(x2, p["w1blk"], p["b1blk"], p["w2blk"], p["b2blk"],
      p["wf1blk"], p["bf1"], p["wf2"], p["bf2"])
    return out.reshape(n, 10)


# ------------------------- parameter preparation (runs once) -------------------------

def _prep_conv1(w1_oihw, b1):
    """conv1 (1->10, 5x5, VALID) + 2x2 maxpool as 2 shifted matmuls on the 4x4
    space-to-depth input.

    Output columns: g1*_GW1 + q2*40 + a*20 + b*10 + c, with
      g1=(di,dj) conv1 pool offset, (q2,a,b,c) the column order conv2 expects
      (pooled row pair offset a, pooled col 2*q2+b, channel c).
    Row index: q_in*16 + ra*4 + ca  (4x4 s2d column order), padded to 128.
    """
    w = np.asarray(w1_oihw, np.float32)            # (10, 1, 5, 5)
    cout = w.shape[0]
    w1blk = np.zeros((2, _K1, 4 * _GW1), np.float32)
    b1blk = np.zeros((1, 4 * _GW1), np.float32)
    for di in range(2):
        for dj in range(2):
            g1 = di * 2 + dj
            for q2 in range(6):
                for a in range(2):
                    for b in range(2):
                        col = g1 * _GW1 + q2 * 40 + a * 20 + b * 10
                        b1blk[0, col:col + cout] = np.asarray(b1, np.float32)
                        for u in range(2):
                            for ra in range(4):
                                ki = 4 * u + ra - 2 * a - di
                                if not (0 <= ki <= 4):
                                    continue
                                for v in range(2):
                                    for ca in range(4):
                                        kj = 4 * v + ca - 2 * b - dj
                                        if not (0 <= kj <= 4):
                                            continue
                                        row = (q2 + v) * 16 + ra * 4 + ca
                                        w1blk[u, row, col:col + cout] += w[:, 0, ki, kj]
    return jnp.asarray(w1blk), jnp.asarray(b1blk)


def _prep_conv2(w2_oihw, b2):
    """conv2 (10->10, 5x5, VALID) + 2x2 maxpool as 3 shifted matmuls on conv1's
    (q2, a, b, cin)-ordered output rows.

    Row index: q2*40 + a*20 + b*10 + cin (240 meaningful, padded to 256).
    Col index: g2*_GW2 + wp2*10 + c      (g2 = conv2 pool offset).
    """
    w = np.asarray(w2_oihw, np.float32)            # (10, 10, 5, 5)
    cout, cin = w.shape[0], w.shape[1]
    w2blk = np.zeros((3, _K2, 4 * _GW2), np.float32)
    b2blk = np.zeros((1, 4 * _GW2), np.float32)
    for d2i in range(2):
        for d2j in range(2):
            g2 = d2i * 2 + d2j
            for wp2 in range(4):
                col = g2 * _GW2 + wp2 * cout
                b2blk[0, col:col + cout] = np.asarray(b2, np.float32)
                for ui in range(3):
                    for a in range(2):
                        ki = 2 * ui + a - d2i
                        if not (0 <= ki <= 4):
                            continue
                        for vj in range(3):
                            for b in range(2):
                                kj = 2 * vj + b - d2j
                                if not (0 <= kj <= 4):
                                    continue
                                row = (wp2 + vj) * 40 + a * 20 + b * 10
                                # [row+cin, col+c] = W2[c, cin, ki, kj]
                                w2blk[ui, row:row + cin, col:col + cout] += w[:, :, ki, kj].T
    return jnp.asarray(w2blk), jnp.asarray(b2blk)


def _prep_fc1(wf1):
    """Split fc1 (PyTorch channel-major flatten order c*16+h*4+w on its rows)
    into 4 row blocks -- one per conv2 output row h -- whose rows are ordered
    (w*10 + c) to match the kernel's h2 layout.  Padded to 128 rows."""
    wf1 = np.asarray(wf1, np.float32)              # (160, 100)
    nh = wf1.shape[1]
    blk = np.zeros((4, _GW2, nh), np.float32)
    for c in range(10):
        for h in range(4):
            for w_ in range(4):
                blk[h, w_ * 10 + c, :] = wf1[c * 16 + h * 4 + w_, :]
    return jnp.asarray(blk)


def prepare_params(w1, b1, w2, b2, wf1, bf1, wf2, bf2):
    w1blk, b1blk = _prep_conv1(w1, b1)
    w2blk, b2blk = _prep_conv2(w2, b2)
    return dict(
        w1blk=w1blk, b1blk=b1blk, w2blk=w2blk, b2blk=b2blk,
        wf1blk=_prep_fc1(wf1),
        bf1=jnp.asarray(np.asarray(bf1, np.float32).reshape(1, -1)),
        wf2=jnp.asarray(np.asarray(wf2, np.float32)),
        bf2=jnp.asarray(np.asarray(bf2, np.float32).reshape(1, -1)),
    )


# ----------------------------- glue / forward -----------------------------

def _double_space_to_depth(x):
    # (N, 28, 28) -> (N, 7, 128): 4x4 space-to-depth, cols (q, ra, ca), zero-padded.
    n = x.shape[0]
    x = x.reshape(n, 7, 4, 7, 4)
    x = jnp.transpose(x, (0, 1, 3, 2, 4))
    x = x.reshape(n, 7, 112)
    return jnp.pad(x, ((0, 0), (0, 0), (0, _K1 - 112)))


@jax.jit
def cnn_forward(x_nchw, params):
    n = x_nchw.shape[0]
    x2 = _double_space_to_depth(x_nchw.astype(jnp.float32).reshape(n, 28, 28))
    return _cnn_pallas(x2, params)


# ------------------------------ pure-JAX reference ------------------------------

def reference_forward(x_nchw, w1, b1, w2, b2, wf1, bf1, wf2, bf2):
    hpz = jax.lax.Precision.HIGHEST

    def conv(x, w, b):
        y = jax.lax.conv_general_dilated(
            x, w, window_strides=(1, 1), padding="VALID",
            dimension_numbers=("NCHW", "OIHW", "NCHW"), precision=hpz)
        return y + b.reshape(1, -1, 1, 1)

    def maxpool(x):
        return jax.lax.reduce_window(
            x, -jnp.inf, jax.lax.max, (1, 1, 2, 2), (1, 1, 2, 2), "VALID")

    h = jax.nn.relu(maxpool(conv(x_nchw, w1, b1)))
    h = jax.nn.relu(maxpool(conv(h, w2, b2)))
    h = h.reshape(h.shape[0], -1)
    h = jnp.dot(h, wf1, precision=hpz) + bf1
    h = jnp.dot(h, wf2, precision=hpz) + bf2
    return jax.nn.log_softmax(h, axis=-1)


# ------------------------------------ main ------------------------------------

if __name__ == "__main__":
    key = jax.random.PRNGKey(0)
    ks = jax.random.split(key, 9)

    N = 2
    x_nchw = jax.random.normal(ks[0], (N, 1, 28, 28), jnp.float32)

    # Deterministic synthetic parameters (PyTorch layouts: conv OIHW, fc = W.T).
    w1 = jax.random.normal(ks[1], (10, 1, 5, 5), jnp.float32) * 0.2
    b1 = jax.random.normal(ks[2], (10,), jnp.float32) * 0.1
    w2 = jax.random.normal(ks[3], (10, 10, 5, 5), jnp.float32) * 0.1
    b2 = jax.random.normal(ks[4], (10,), jnp.float32) * 0.1
    wf1 = jax.random.normal(ks[5], (160, 100), jnp.float32) * 0.08   # torch fc1.weight.T
    bf1 = jax.random.normal(ks[6], (100,), jnp.float32) * 0.1
    wf2 = jax.random.normal(ks[7], (100, 10), jnp.float32) * 0.1     # torch fc2.weight.T
    bf2 = jax.random.normal(ks[8], (10,), jnp.float32) * 0.1

    params = prepare_params(w1, b1, w2, b2, wf1, bf1, wf2, bf2)

    out = jax.block_until_ready(cnn_forward(x_nchw, params))
    assert out.shape == (N, 10), out.shape

    ref = reference_forward(x_nchw, w1, b1, w2, b2, wf1, bf1, wf2, bf2)
    if not bool(jnp.allclose(out, ref, atol=1e-2, rtol=1e-2)):
        err = float(jnp.max(jnp.abs(out - ref)))
        raise AssertionError(
            f"Pallas CNN output mismatch vs JAX reference (max abs err {err})")

    print("KERNEL_OK")
</pallas_src>

<mosaic_0001>
module attributes {stable_mosaic.version = 11 : i64} {
  func.func @_cnn_fused_kernel(%arg0: i32, %arg1: memref<1x7x128xf32, #tpu.memory_space<vmem>>, %arg2: memref<2x128x1024xf32, #tpu.memory_space<vmem>>, %arg3: memref<1x1024xf32, #tpu.memory_space<vmem>>, %arg4: memref<3x256x512xf32, #tpu.memory_space<vmem>>, %arg5: memref<1x512xf32, #tpu.memory_space<vmem>>, %arg6: memref<4x128x100xf32, #tpu.memory_space<vmem>>, %arg7: memref<1x100xf32, #tpu.memory_space<vmem>>, %arg8: memref<100x10xf32, #tpu.memory_space<vmem>>, %arg9: memref<1x10xf32, #tpu.memory_space<vmem>>, %arg10: memref<1x1x10xf32, #tpu.memory_space<vmem>>, %arg11: memref<6x256xf32, #tpu.memory_space<vmem>>, %arg12: memref<4x128xf32, #tpu.memory_space<vmem>>) attributes {dimension_semantics = [#tpu.dimension_semantics<parallel>], iteration_bounds = array<i64: 2>, scalar_prefetch = 0 : i64, scratch_operands = 2 : i64, tpu.core_type = #tpu.core_type<tc>, window_params = [{transform_indices = @transform_0, window_bounds = array<i64: 1, 7, 128>}, {pipeline_mode = #tpu.pipeline_mode<synchronous>, transform_indices = @transform_1, window_bounds = array<i64: 2, 128, 1024>}, {pipeline_mode = #tpu.pipeline_mode<synchronous>, transform_indices = @transform_2, window_bounds = array<i64: 1, 1024>}, {pipeline_mode = #tpu.pipeline_mode<synchronous>, transform_indices = @transform_3, window_bounds = array<i64: 3, 256, 512>}, {pipeline_mode = #tpu.pipeline_mode<synchronous>, transform_indices = @transform_4, window_bounds = array<i64: 1, 512>}, {pipeline_mode = #tpu.pipeline_mode<synchronous>, transform_indices = @transform_5, window_bounds = array<i64: 4, 128, 100>}, {pipeline_mode = #tpu.pipeline_mode<synchronous>, transform_indices = @transform_6, window_bounds = array<i64: 1, 100>}, {pipeline_mode = #tpu.pipeline_mode<synchronous>, transform_indices = @transform_7, window_bounds = array<i64: 100, 10>}, {pipeline_mode = #tpu.pipeline_mode<synchronous>, transform_indices = @transform_8, window_bounds = array<i64: 1, 10>}, {transform_indices = @transform_9, window_bounds = array<i64: 1, 1, 10>}]} {
    %c0 = arith.constant 0 : index
    %c0_0 = arith.constant 0 : index
    %c0_1 = arith.constant 0 : index
    %0 = vector.load %arg1[%c0, %c0_0, %c0_1] : memref<1x7x128xf32, #tpu.memory_space<vmem>>, vector<1x6x128xf32>
    %1 = vector.shape_cast %0 : vector<1x6x128xf32> to vector<6x128xf32>
    %c0_2 = arith.constant 0 : index
    %c0_3 = arith.constant 0 : index
    %c0_4 = arith.constant 0 : index
    %2 = vector.load %arg2[%c0_2, %c0_3, %c0_4] : memref<2x128x1024xf32, #tpu.memory_space<vmem>>, vector<1x128x1024xf32>
    %3 = vector.shape_cast %2 : vector<1x128x1024xf32> to vector<128x1024xf32>
    %cst = arith.constant dense<0.000000e+00> : vector<6x1024xf32>
    %4 = tpu.matmul %1, %3, %cst {dimension_numbers = #tpu.dot_dimension_numbers<[1], [0], [0], [1], [0, 0, 1, 1], [], []>} : vector<6x128xf32>, vector<128x1024xf32>, vector<6x1024xf32> -> vector<6x1024xf32>
    %c0_5 = arith.constant 0 : index
    %c1 = arith.constant 1 : index
    %c0_6 = arith.constant 0 : index
    %5 = vector.load %arg1[%c0_5, %c1, %c0_6] : memref<1x7x128xf32, #tpu.memory_space<vmem>>, vector<1x6x128xf32>
    %6 = vector.shape_cast %5 : vector<1x6x128xf32> to vector<6x128xf32>
    %c1_7 = arith.constant 1 : index
    %c0_8 = arith.constant 0 : index
    %c0_9 = arith.constant 0 : index
    %7 = vector.load %arg2[%c1_7, %c0_8, %c0_9] : memref<2x128x1024xf32, #tpu.memory_space<vmem>>, vector<1x128x1024xf32>
    %8 = vector.shape_cast %7 : vector<1x128x1024xf32> to vector<128x1024xf32>
    %cst_10 = arith.constant dense<0.000000e+00> : vector<6x1024xf32>
    %9 = tpu.matmul %6, %8, %cst_10 {dimension_numbers = #tpu.dot_dimension_numbers<[1], [0], [0], [1], [0, 0, 1, 1], [], []>} : vector<6x128xf32>, vector<128x1024xf32>, vector<6x1024xf32> -> vector<6x1024xf32>
    %10 = arith.addf %4, %9 : vector<6x1024xf32>
    %c0_11 = arith.constant 0 : index
    %c0_12 = arith.constant 0 : index
    %11 = vector.load %arg3[%c0_11, %c0_12] : memref<1x1024xf32, #tpu.memory_space<vmem>>, vector<1x1024xf32>
    %12 = vector.broadcast %11 : vector<1x1024xf32> to vector<6x1024xf32>
    %13 = arith.addf %10, %12 : vector<6x1024xf32>
    %14 = vector.extract_strided_slice %13 {offsets = [0, 0], sizes = [6, 256], strides = [1, 1]} : vector<6x1024xf32> to vector<6x256xf32>
    %15 = vector.extract_strided_slice %13 {offsets = [0, 256], sizes = [6, 256], strides = [1, 1]} : vector<6x1024xf32> to vector<6x256xf32>
    %16 = arith.maximumf %14, %15 : vector<6x256xf32>
    %17 = vector.extract_strided_slice %13 {offsets = [0, 512], sizes = [6, 256], strides = [1, 1]} : vector<6x1024xf32> to vector<6x256xf32>
    %18 = vector.extract_strided_slice %13 {offsets = [0, 768], sizes = [6, 256], strides = [1, 1]} : vector<6x1024xf32> to vector<6x256xf32>
    %19 = arith.maximumf %17, %18 : vector<6x256xf32>
    %20 = arith.maximumf %16, %19 : vector<6x256xf32>
    %cst_13 = arith.constant 0.000000e+00 : f32
    %21 = vector.broadcast %cst_13 : f32 to vector<6x256xf32>
    %22 = arith.maximumf %20, %21 : vector<6x256xf32>
    %c0_14 = arith.constant 0 : index
    %c0_15 = arith.constant 0 : index
    %23 = vector.load %arg11[%c0_14, %c0_15] : memref<6x256xf32, #tpu.memory_space<vmem>>, vector<6x256xf32>
    tpu.vector_store %arg11[%c0_14, %c0_15], %22 {strides = array<i32>} : memref<6x256xf32, #tpu.memory_space<vmem>>, vector<6x256xf32>,
    %c0_16 = arith.constant 0 : index
    %c0_17 = arith.constant 0 : index
    %24 = vector.load %arg11[%c0_16, %c0_17] : memref<6x256xf32, #tpu.memory_space<vmem>>, vector<4x256xf32>
    %c0_18 = arith.constant 0 : index
    %c0_19 = arith.constant 0 : index
    %c0_20 = arith.constant 0 : index
    %25 = vector.load %arg4[%c0_18, %c0_19, %c0_20] : memref<3x256x512xf32, #tpu.memory_space<vmem>>, vector<1x256x512xf32>
    %26 = vector.shape_cast %25 : vector<1x256x512xf32> to vector<256x512xf32>
    %cst_21 = arith.constant dense<0.000000e+00> : vector<4x512xf32>
    %27 = tpu.matmul %24, %26, %cst_21 {dimension_numbers = #tpu.dot_dimension_numbers<[1], [0], [0], [1], [0, 0, 1, 1], [], []>} : vector<4x256xf32>, vector<256x512xf32>, vector<4x512xf32> -> vector<4x512xf32>
    %c1_22 = arith.constant 1 : index
    %c0_23 = arith.constant 0 : index
    %28 = vector.load %arg11[%c1_22, %c0_23] : memref<6x256xf32, #tpu.memory_space<vmem>>, vector<4x256xf32>
    %c1_24 = arith.constant 1 : index
    %c0_25 = arith.constant 0 : index
    %c0_26 = arith.constant 0 : index
    %29 = vector.load %arg4[%c1_24, %c0_25, %c0_26] : memref<3x256x512xf32, #tpu.memory_space<vmem>>, vector<1x256x512xf32>
    %30 = vector.shape_cast %29 : vector<1x256x512xf32> to vector<256x512xf32>
    %cst_27 = arith.constant dense<0.000000e+00> : vector<4x512xf32>
    %31 = tpu.matmul %28, %30, %cst_27 {dimension_numbers = #tpu.dot_dimension_numbers<[1], [0], [0], [1], [0, 0, 1, 1], [], []>} : vector<4x256xf32>, vector<256x512xf32>, vector<4x512xf32> -> vector<4x512xf32>
    %32 = arith.addf %27, %31 : vector<4x512xf32>
    %c2 = arith.constant 2 : index
    %c0_28 = arith.constant 0 : index
    %33 = vector.load %arg11[%c2, %c0_28] : memref<6x256xf32, #tpu.memory_space<vmem>>, vector<4x256xf32>
    %c2_29 = arith.constant 2 : index
    %c0_30 = arith.constant 0 : index
    %c0_31 = arith.constant 0 : index
    %34 = vector.load %arg4[%c2_29, %c0_30, %c0_31] : memref<3x256x512xf32, #tpu.memory_space<vmem>>, vector<1x256x512xf32>
    %35 = vector.shape_cast %34 : vector<1x256x512xf32> to vector<256x512xf32>
    %cst_32 = arith.constant dense<0.000000e+00> : vector<4x512xf32>
    %36 = tpu.matmul %33, %35, %cst_32 {dimension_numbers = #tpu.dot_dimension_numbers<[1], [0], [0], [1], [0, 0, 1, 1], [], []>} : vector<4x256xf32>, vector<256x512xf32>, vector<4x512xf32> -> vector<4x512xf32>
    %37 = arith.addf %32, %36 : vector<4x512xf32>
    %c0_33 = arith.constant 0 : index
    %c0_34 = arith.constant 0 : index
    %38 = vector.load %arg5[%c0_33, %c0_34] : memref<1x512xf32, #tpu.memory_space<vmem>>, vector<1x512xf32>
    %39 = vector.broadcast %38 : vector<1x512xf32> to vector<4x512xf32>
    %40 = arith.addf %37, %39 : vector<4x512xf32>
    %41 = vector.extract_strided_slice %40 {offsets = [0, 0], sizes = [4, 128], strides = [1, 1]} : vector<4x512xf32> to vector<4x128xf32>
    %42 = vector.extract_strided_slice %40 {offsets = [0, 128], sizes = [4, 128], strides = [1, 1]} : vector<4x512xf32> to vector<4x128xf32>
    %43 = arith.maximumf %41, %42 : vector<4x128xf32>
    %44 = vector.extract_strided_slice %40 {offsets = [0, 256], sizes = [4, 128], strides = [1, 1]} : vector<4x512xf32> to vector<4x128xf32>
    %45 = vector.extract_strided_slice %40 {offsets = [0, 384], sizes = [4, 128], strides = [1, 1]} : vector<4x512xf32> to vector<4x128xf32>
    %46 = arith.maximumf %44, %45 : vector<4x128xf32>
    %47 = arith.maximumf %43, %46 : vector<4x128xf32>
    %cst_35 = arith.constant 0.000000e+00 : f32
    %48 = vector.broadcast %cst_35 : f32 to vector<4x128xf32>
    %49 = arith.maximumf %47, %48 : vector<4x128xf32>
    %c0_36 = arith.constant 0 : index
    %c0_37 = arith.constant 0 : index
    %50 = vector.load %arg12[%c0_36, %c0_37] : memref<4x128xf32, #tpu.memory_space<vmem>>, vector<4x128xf32>
    tpu.vector_store %arg12[%c0_36, %c0_37], %49 {strides = array<i32>} : memref<4x128xf32, #tpu.memory_space<vmem>>, vector<4x128xf32>,
    %c0_38 = arith.constant 0 : index
    %c0_39 = arith.constant 0 : index
    %51 = vector.load %arg7[%c0_38, %c0_39] : memref<1x100xf32, #tpu.memory_space<vmem>>, vector<1x100xf32>
    %c0_40 = arith.constant 0 : index
    %c0_41 = arith.constant 0 : index
    %52 = vector.load %arg12[%c0_40, %c0_41] : memref<4x128xf32, #tpu.memory_space<vmem>>, vector<1x128xf32>
    %c0_42 = arith.constant 0 : index
    %c0_43 = arith.constant 0 : index
    %c0_44 = arith.constant 0 : index
    %53 = vector.load %arg6[%c0_42, %c0_43, %c0_44] : memref<4x128x100xf32, #tpu.memory_space<vmem>>, vector<1x128x100xf32>
    %54 = vector.shape_cast %53 : vector<1x128x100xf32> to vector<128x100xf32>
    %cst_45 = arith.constant dense<0.000000e+00> : vector<1x100xf32>
    %55 = tpu.matmul %52, %54, %cst_45 {dimension_numbers = #tpu.dot_dimension_numbers<[1], [0], [0], [1], [0, 0, 1, 1], [], []>} : vector<1x128xf32>, vector<128x100xf32>, vector<1x100xf32> -> vector<1x100xf32>
    %56 = arith.addf %51, %55 : vector<1x100xf32>
    %c1_46 = arith.constant 1 : index
    %c0_47 = arith.constant 0 : index
    %57 = vector.load %arg12[%c1_46, %c0_47] : memref<4x128xf32, #tpu.memory_space<vmem>>, vector<1x128xf32>
    %c1_48 = arith.constant 1 : index
    %c0_49 = arith.constant 0 : index
    %c0_50 = arith.constant 0 : index
    %58 = vector.load %arg6[%c1_48, %c0_49, %c0_50] : memref<4x128x100xf32, #tpu.memory_space<vmem>>, vector<1x128x100xf32>
    %59 = vector.shape_cast %58 : vector<1x128x100xf32> to vector<128x100xf32>
    %cst_51 = arith.constant dense<0.000000e+00> : vector<1x100xf32>
    %60 = tpu.matmul %57, %59, %cst_51 {dimension_numbers = #tpu.dot_dimension_numbers<[1], [0], [0], [1], [0, 0, 1, 1], [], []>} : vector<1x128xf32>, vector<128x100xf32>, vector<1x100xf32> -> vector<1x100xf32>
    %61 = arith.addf %56, %60 : vector<1x100xf32>
    %c2_52 = arith.constant 2 : index
    %c0_53 = arith.constant 0 : index
    %62 = vector.load %arg12[%c2_52, %c0_53] : memref<4x128xf32, #tpu.memory_space<vmem>>, vector<1x128xf32>
    %c2_54 = arith.constant 2 : index
    %c0_55 = arith.constant 0 : index
    %c0_56 = arith.constant 0 : index
    %63 = vector.load %arg6[%c2_54, %c0_55, %c0_56] : memref<4x128x100xf32, #tpu.memory_space<vmem>>, vector<1x128x100xf32>
    %64 = vector.shape_cast %63 : vector<1x128x100xf32> to vector<128x100xf32>
    %cst_57 = arith.constant dense<0.000000e+00> : vector<1x100xf32>
    %65 = tpu.matmul %62, %64, %cst_57 {dimension_numbers = #tpu.dot_dimension_numbers<[1], [0], [0], [1], [0, 0, 1, 1], [], []>} : vector<1x128xf32>, vector<128x100xf32>, vector<1x100xf32> -> vector<1x100xf32>
    %66 = arith.addf %61, %65 : vector<1x100xf32>
    %c3 = arith.constant 3 : index
    %c0_58 = arith.constant 0 : index
    %67 = vector.load %arg12[%c3, %c0_58] : memref<4x128xf32, #tpu.memory_space<vmem>>, vector<1x128xf32>
    %c3_59 = arith.constant 3 : index
    %c0_60 = arith.constant 0 : index
    %c0_61 = arith.constant 0 : index
    %68 = vector.load %arg6[%c3_59, %c0_60, %c0_61] : memref<4x128x100xf32, #tpu.memory_space<vmem>>, vector<1x128x100xf32>
    %69 = vector.shape_cast %68 : vector<1x128x100xf32> to vector<128x100xf32>
    %cst_62 = arith.constant dense<0.000000e+00> : vector<1x100xf32>
    %70 = tpu.matmul %67, %69, %cst_62 {dimension_numbers = #tpu.dot_dimension_numbers<[1], [0], [0], [1], [0, 0, 1, 1], [], []>} : vector<1x128xf32>, vector<128x100xf32>, vector<1x100xf32> -> vector<1x100xf32>
    %71 = arith.addf %66, %70 : vector<1x100xf32>
    %c0_63 = arith.constant 0 : index
    %c0_64 = arith.constant 0 : index
    %72 = vector.load %arg8[%c0_63, %c0_64] : memref<100x10xf32, #tpu.memory_space<vmem>>, vector<100x10xf32>
    %cst_65 = arith.constant dense<0.000000e+00> : vector<1x10xf32>
    %73 = tpu.matmul %71, %72, %cst_65 {dimension_numbers = #tpu.dot_dimension_numbers<[1], [0], [0], [1], [0, 0, 1, 1], [], []>} : vector<1x100xf32>, vector<100x10xf32>, vector<1x10xf32> -> vector<1x10xf32>
    %c0_66 = arith.constant 0 : index
    %c0_67 = arith.constant 0 : index
    %74 = vector.load %arg9[%c0_66, %c0_67] : memref<1x10xf32, #tpu.memory_space<vmem>>, vector<1x10xf32>
    %75 = arith.addf %73, %74 : vector<1x10xf32>
    %cst_68 = arith.constant dense<0xFF800000> : vector<1xf32>
    %76 = vector.multi_reduction <maximumf>, %75, %cst_68 [1] : vector<1x10xf32> to vector<1xf32>
    %77 = vector.shape_cast %76 : vector<1xf32> to vector<1x1xf32>
    %78 = vector.broadcast %77 : vector<1x1xf32> to vector<1x10xf32>
    %79 = arith.subf %75, %78 : vector<1x10xf32>
    %80 = math.exp %79 : vector<1x10xf32>
    %cst_69 = arith.constant dense<0.000000e+00> : vector<1xf32>
    %81 = vector.multi_reduction <add>, %80, %cst_69 [1] : vector<1x10xf32> to vector<1xf32>
    %82 = vector.shape_cast %81 : vector<1xf32> to vector<1x1xf32>
    %83 = math.log %82 : vector<1x1xf32>
    %84 = vector.broadcast %83 : vector<1x1xf32> to vector<1x10xf32>
    %85 = arith.subf %79, %84 : vector<1x10xf32>
    %c0_70 = arith.constant 0 : index
    %c0_71 = arith.constant 0 : index
    %c0_72 = arith.constant 0 : index
    %86 = vector.load %arg10[%c0_70, %c0_71, %c0_72] : memref<1x1x10xf32, #tpu.memory_space<vmem>>, vector<1x1x10xf32>
    %87 = vector.shape_cast %86 : vector<1x1x10xf32> to vector<1x10xf32>
    %88 = vector.shape_cast %85 : vector<1x10xf32> to vector<1x1x10xf32>
    tpu.vector_store %arg10[%c0_70, %c0_71, %c0_72], %88 {strides = array<i32>} : memref<1x1x10xf32, #tpu.memory_space<vmem>>, vector<1x1x10xf32>,
    return
  }
  func.func @transform_0(%arg0: i32) -> (i32, i32, i32) {
    %c0_i32 = arith.constant 0 : i32
    %c0_i32_0 = arith.constant 0 : i32
    %c0_i32_1 = arith.constant 0 : i32
    return %arg0, %c0_i32, %c0_i32_0 : i32, i32, i32
  }
  func.func @transform_1(%arg0: i32) -> (i32, i32, i32) {
    %c0_i32 = arith.constant 0 : i32
    %c0_i32_0 = arith.constant 0 : i32
    %c0_i32_1 = arith.constant 0 : i32
    %c0_i32_2 = arith.constant 0 : i32
    return %c0_i32, %c0_i32_0, %c0_i32_1 : i32, i32, i32
  }
  func.func @transform_2(%arg0: i32) -> (i32, i32) {
    %c0_i32 = arith.constant 0 : i32
    %c0_i32_0 = arith.constant 0 : i32
    %c0_i32_1 = arith.constant 0 : i32
    return %c0_i32, %c0_i32_0 : i32, i32
  }
  func.func @transform_3(%arg0: i32) -> (i32, i32, i32) {
    %c0_i32 = arith.constant 0 : i32
    %c0_i32_0 = arith.constant 0 : i32
    %c0_i32_1 = arith.constant 0 : i32
    %c0_i32_2 = arith.constant 0 : i32
    return %c0_i32, %c0_i32_0, %c0_i32_1 : i32, i32, i32
  }
  func.func @transform_4(%arg0: i32) -> (i32, i32) {
    %c0_i32 = arith.constant 0 : i32
    %c0_i32_0 = arith.constant 0 : i32
    %c0_i32_1 = arith.constant 0 : i32
    return %c0_i32, %c0_i32_0 : i32, i32
  }
  func.func @transform_5(%arg0: i32) -> (i32, i32, i32) {
    %c0_i32 = arith.constant 0 : i32
    %c0_i32_0 = arith.constant 0 : i32
    %c0_i32_1 = arith.constant 0 : i32
    %c0_i32_2 = arith.constant 0 : i32
    return %c0_i32, %c0_i32_0, %c0_i32_1 : i32, i32, i32
  }
  func.func @transform_6(%arg0: i32) -> (i32, i32) {
    %c0_i32 = arith.constant 0 : i32
    %c0_i32_0 = arith.constant 0 : i32
    %c0_i32_1 = arith.constant 0 : i32
    return %c0_i32, %c0_i32_0 : i32, i32
  }
  func.func @transform_7(%arg0: i32) -> (i32, i32) {
    %c0_i32 = arith.constant 0 : i32
    %c0_i32_0 = arith.constant 0 : i32
    %c0_i32_1 = arith.constant 0 : i32
    return %c0_i32, %c0_i32_0 : i32, i32
  }
  func.func @transform_8(%arg0: i32) -> (i32, i32) {
    %c0_i32 = arith.constant 0 : i32
    %c0_i32_0 = arith.constant 0 : i32
    %c0_i32_1 = arith.constant 0 : i32
    return %c0_i32, %c0_i32_0 : i32, i32
  }
  func.func @transform_9(%arg0: i32) -> (i32, i32, i32) {
    %c0_i32 = arith.constant 0 : i32
    %c0_i32_0 = arith.constant 0 : i32
    %c0_i32_1 = arith.constant 0 : i32
    return %arg0, %c0_i32, %c0_i32_0 : i32, i32, i32
  }
}

</mosaic_0001>

<llo_original>
// kernel: cnn_forward.1
$region0: #{cnn_forward.1}
  #allocation0 [shape = 'u32[]', space=smem, size = 0x4, offset = 0x4, fixed_abs, tag = 'smem constant byte address 0x4 - core index']
  #allocation1 [shape = 'u32[144,128]{1,0:T(1,128)}', space=vmem, size = 0x12000, scoped, tag = 'internal scratch']
  #allocation2 [shape = 'f32[6,256]{1,0:T(8,128)}', space=vmem, size = 0x2000, scoped, tag = 'scratch operand']
  #allocation3 [shape = 'f32[4,128]{1,0:T(4,128)}', space=vmem, size = 0x800, scoped, tag = 'scratch operand']
  %s0 = inlined_call_operand.vmem [shape: f32[2,7,128], index: 0, kind: input, shape index: {}]
  %s1 = inlined_call_operand.vmem [shape: f32[2,128,1024], index: 1, kind: input, shape index: {}]
  %s2 = inlined_call_operand.hbm [shape: f32[1,1024], index: 2, kind: input, shape index: {}]
  %s3 = inlined_call_operand.hbm [shape: f32[3,256,512], index: 3, kind: input, shape index: {}]
  %s4 = inlined_call_operand.hbm [shape: f32[1,512], index: 4, kind: input, shape index: {}]
  %s5 = inlined_call_operand.vmem [shape: f32[4,128,100], index: 5, kind: input, shape index: {}]
  %s6 = inlined_call_operand.hbm [shape: f32[1,100], index: 6, kind: input, shape index: {}]
  %s7 = inlined_call_operand.vmem [shape: f32[100,10], index: 7, kind: input, shape index: {}]
  %s8 = inlined_call_operand.hbm [shape: f32[1,10], index: 8, kind: input, shape index: {}]
  %s9 = inlined_call_operand.hbm [shape: f32[2,1,10], index: 9, kind: output, shape index: {}]
  %s10 = sld [smem:[#allocation0]]
  $region89: #{cnn_forward.1} parent=0
    _
  %s12 = ssub.s32 1, %s10
  %s13 = scalar_select 0, %s12, %s10
  $region1: #{cnn_forward.1} parent=0
    #allocation4 [shape = 'u8[4096]{0}', space=vmem, size = 0x1000, scoped, tag = 'input window, operand 2, single buffered']
    #allocation5 [shape = 's32[2]{0}', space=sflag, size = 0x8, scoped, tag = 'scoped memory for cnn_forward.1']
    #allocation6 [shape = 's32[2]{0}', space=sflag, size = 0x8, scoped, tag = 'scoped memory for cnn_forward.1']
    #allocation7 [shape = 'u8[1572864]{0}', space=vmem, size = 0x180000, scoped, tag = 'input window, operand 3, single buffered']
    #allocation8 [shape = 's32[1]{0}', space=sflag, size = 0x4, scoped, tag = 'scoped memory for cnn_forward.1']
    #allocation9 [shape = 'u8[2048]{0}', space=vmem, size = 0x800, scoped, tag = 'input window, operand 4, single buffered']
    #allocation10 [shape = 'u8[512]{0}', space=vmem, size = 0x400, scoped, tag = 'input window, operand 6, single buffered']
    #allocation11 [shape = 's32[1]{0}', space=sflag, size = 0x4, scoped, tag = 'scoped memory for cnn_forward.1']
    #allocation12 [shape = 'u8[512]{0}', space=vmem, size = 0x400, scoped, tag = 'input window, operand 8, single buffered']
    #allocation13 [shape = 'u8[1024]{0}', space=vmem, size = 0x400, scoped, tag = 'output window, operand 0']
    %14 = vsyncpa [#allocation5], 0
    %15 = vsyncpa [#allocation8], 0
    %16 = vsyncpa [#allocation11], 0
    %17 = vsyncpa [#allocation6], 0
    %s18 = scalar_lea.sflag [#allocation6], 1
    %19 = vsyncpa %s18, 0
    loop: start=0, step=1, limit=4
    $region2: #{cnn_forward.1} parent=1 // loop_pre_header
      _
    $region3: #{cnn_forward.1} parent=1 // loop_header
      %s21 = sphi 0, %s25
      %p22 = scmp.ge.s32.totalorder %s21, 4
      %s31 = sphi 0, %s33
      %s34 = sphi 0, %s31
      %s35 = sphi 0, %s34
      %s51 = sphi 0, %s35
      %s55 = sphi 0, %s55
      %s57 = sphi 0, %s55
      %s58 = sphi 0, %s57
      %s72 = sphi 0, %s58
      %s76 = sphi 0, %s76
      %s78 = sphi 0, %s76
      %s79 = sphi 0, %s78
      %s93 = sphi 0, %s79
      %s97 = sphi 0, %s97
      %s99 = sphi 0, %s97
      %s100 = sphi 0, %s99
      %s114 = sphi 0, %s100
      %s118 = sphi 0, %s118
      %s120 = sphi 0, %s118
      %s121 = sphi 0, %s120
      %s135 = sphi 0, %s121
      %s139 = sphi 0, %s139
      %s141 = sphi 0, %s139
      %s142 = sphi 0, %s141
      %s156 = sphi 0, %s142
      %s160 = sphi 0, %s160
      %s162 = sphi 0, %s160
      %s163 = sphi 0, %s162
      %s177 = sphi 0, %s163
      %s181 = sphi 0, %s181
      %s183 = sphi 0, %s181
      %s184 = sphi 0, %s183
      %s198 = sphi 0, %s184
      %s202 = sphi 0, %s202
      %s204 = sphi 0, %s202
      %s205 = sphi 0, %s204
      %s219 = sphi 0, %s205
      %s225 = sphi 0, %s227
      %s228 = sphi 0, %s225
      %s229 = sphi 0, %s228
      %s245 = sphi 0, %s229
    $region4: #{cnn_forward.1} parent=1 // loop_header_branch
      %24 = sbr.rel (%p22) target = $region8
    $region5: #{cnn_forward.1} parent=1 // loop_body
      %s26 = ssub.s32 %s21, 1
      %s27 = ssub.s32 %s21, 2
      %s28 = sadd.s32 %s21, 1
      %s29 = ssub.s32 %s21, %s28
      %p30 = scmp.eq.s32.totalorder %s29, 0
      %s32 = sadd.s32 %s31, 1
      %s33 = scalar_select %p30, %s31, %s32
      %p36 = pneg %p30
      %p37 = scmp.eq.s32.totalorder %s21, 1
      %p38 = por %p36, %p37
      %p39 = scmp.ne.s32.totalorder %s31, %s34
      %p40 = scmp.eq.s32.totalorder %s21, 0
      %p41 = por %p39, %p40
      %p42 = scmp.ne.s32.totalorder %s31, %s34
      %p43 = scmp.eq.s32.totalorder %s26, 1
      %p44 = por %p42, %p43
      %p45 = scmp.ne.s32.totalorder %s34, %s35
      %p46 = scmp.eq.s32.totalorder %s26, 0
      %p47 = por %p45, %p46
      %p48 = scmp.ne.s32.totalorder %s34, %s35
      %p49 = scmp.eq.s32.totalorder %s27, 1
      %p50 = por %p48, %p49
      %p52 = scmp.ne.s32.totalorder %s35, %s51
      %p53 = scmp.eq.s32.totalorder %s27, 0
      %p54 = por %p52, %p53
      %s56 = sadd.s32 %s55, 1
      %p59 = scmp.eq.s32.totalorder %s21, 1
      %p60 = scmp.ne.s32.totalorder %s55, %s57
      %p61 = scmp.eq.s32.totalorder %s21, 0
      %p62 = por %p60, %p61
      %p63 = scmp.ne.s32.totalorder %s55, %s57
      %p64 = scmp.eq.s32.totalorder %s26, 1
      %p65 = por %p63, %p64
      %p66 = scmp.ne.s32.totalorder %s57, %s58
      %p67 = scmp.eq.s32.totalorder %s26, 0
      %p68 = por %p66, %p67
      %p69 = scmp.ne.s32.totalorder %s57, %s58
      %p70 = scmp.eq.s32.totalorder %s27, 1
      %p71 = por %p69, %p70
      %p73 = scmp.ne.s32.totalorder %s58, %s72
      %p74 = scmp.eq.s32.totalorder %s27, 0
      %p75 = por %p73, %p74
      %s77 = sadd.s32 %s76, 1
      %p80 = scmp.eq.s32.totalorder %s21, 1
      %p81 = scmp.ne.s32.totalorder %s76, %s78
      %p82 = scmp.eq.s32.totalorder %s21, 0
      %p83 = por %p81, %p82
      %p84 = scmp.ne.s32.totalorder %s76, %s78
      %p85 = scmp.eq.s32.totalorder %s26, 1
      %p86 = por %p84, %p85
      %p87 = scmp.ne.s32.totalorder %s78, %s79
      %p88 = scmp.eq.s32.totalorder %s26, 0
      %p89 = por %p87, %p88
      %p90 = scmp.ne.s32.totalorder %s78, %s79
      %p91 = scmp.eq.s32.totalorder %s27, 1
      %p92 = por %p90, %p91
      %p94 = scmp.ne.s32.totalorder %s79, %s93
      %p95 = scmp.eq.s32.totalorder %s27, 0
      %p96 = por %p94, %p95
      %s98 = sadd.s32 %s97, 1
      %p101 = scmp.eq.s32.totalorder %s21, 1
      %p102 = scmp.ne.s32.totalorder %s97, %s99
      %p103 = scmp.eq.s32.totalorder %s21, 0
      %p104 = por %p102, %p103
      %p105 = scmp.ne.s32.totalorder %s97, %s99
      %p106 = scmp.eq.s32.totalorder %s26, 1
      %p107 = por %p105, %p106
      %p108 = scmp.ne.s32.totalorder %s99, %s100
      %p109 = scmp.eq.s32.totalorder %s26, 0
      %p110 = por %p108, %p109
      %p111 = scmp.ne.s32.totalorder %s99, %s100
      %p112 = scmp.eq.s32.totalorder %s27, 1
      %p113 = por %p111, %p112
      %p115 = scmp.ne.s32.totalorder %s100, %s114
      %p116 = scmp.eq.s32.totalorder %s27, 0
      %p117 = por %p115, %p116
      %s119 = sadd.s32 %s118, 1
      %p122 = scmp.eq.s32.totalorder %s21, 1
      %p123 = scmp.ne.s32.totalorder %s118, %s120
      %p124 = scmp.eq.s32.totalorder %s21, 0
      %p125 = por %p123, %p124
      %p126 = scmp.ne.s32.totalorder %s118, %s120
      %p127 = scmp.eq.s32.totalorder %s26, 1
      %p128 = por %p126, %p127
      %p129 = scmp.ne.s32.totalorder %s120, %s121
      %p130 = scmp.eq.s32.totalorder %s26, 0
      %p131 = por %p129, %p130
      %p132 = scmp.ne.s32.totalorder %s120, %s121
      %p133 = scmp.eq.s32.totalorder %s27, 1
      %p134 = por %p132, %p133
      %p136 = scmp.ne.s32.totalorder %s121, %s135
      %p137 = scmp.eq.s32.totalorder %s27, 0
      %p138 = por %p136, %p137
      %s140 = sadd.s32 %s139, 1
      %p143 = scmp.eq.s32.totalorder %s21, 1
      %p144 = scmp.ne.s32.totalorder %s139, %s141
      %p145 = scmp.eq.s32.totalorder %s21, 0
      %p146 = por %p144, %p145
      %p147 = scmp.ne.s32.totalorder %s139, %s141
      %p148 = scmp.eq.s32.totalorder %s26, 1
      %p149 = por %p147, %p148
      %p150 = scmp.ne.s32.totalorder %s141, %s142
      %p151 = scmp.eq.s32.totalorder %s26, 0
      %p152 = por %p150, %p151
      %p153 = scmp.ne.s32.totalorder %s141, %s142
      %p154 = scmp.eq.s32.totalorder %s27, 1
      %p155 = por %p153, %p154
      %p157 = scmp.ne.s32.totalorder %s142, %s156
      %p158 = scmp.eq.s32.totalorder %s27, 0
      %p159 = por %p157, %p158
      %s161 = sadd.s32 %s160, 1
      %p164 = scmp.eq.s32.totalorder %s21, 1
      %p165 = scmp.ne.s32.totalorder %s160, %s162
      %p166 = scmp.eq.s32.totalorder %s21, 0
      %p167 = por %p165, %p166
      %p168 = scmp.ne.s32.totalorder %s160, %s162
      %p169 = scmp.eq.s32.totalorder %s26, 1
      %p170 = por %p168, %p169
      %p171 = scmp.ne.s32.totalorder %s162, %s163
      %p172 = scmp.eq.s32.totalorder %s26, 0
      %p173 = por %p171, %p172
      %p174 = scmp.ne.s32.totalorder %s162, %s163
      %p175 = scmp.eq.s32.totalorder %s27, 1
      %p176 = por %p174, %p175
      %p178 = scmp.ne.s32.totalorder %s163, %s177
      %p179 = scmp.eq.s32.totalorder %s27, 0
      %p180 = por %p178, %p179
      %s182 = sadd.s32 %s181, 1
      %p185 = scmp.eq.s32.totalorder %s21, 1
      %p186 = scmp.ne.s32.totalorder %s181, %s183
      %p187 = scmp.eq.s32.totalorder %s21, 0
      %p188 = por %p186, %p187
      %p189 = scmp.ne.s32.totalorder %s181, %s183
      %p190 = scmp.eq.s32.totalorder %s26, 1
      %p191 = por %p189, %p190
      %p192 = scmp.ne.s32.totalorder %s183, %s184
      %p193 = scmp.eq.s32.totalorder %s26, 0
      %p194 = por %p192, %p193
      %p195 = scmp.ne.s32.totalorder %s183, %s184
      %p196 = scmp.eq.s32.totalorder %s27, 1
      %p197 = por %p195, %p196
      %p199 = scmp.ne.s32.totalorder %s184, %s198
      %p200 = scmp.eq.s32.totalorder %s27, 0
      %p201 = por %p199, %p200
      %s203 = sadd.s32 %s202, 1
      %p206 = scmp.eq.s32.totalorder %s21, 1
      %p207 = scmp.ne.s32.totalorder %s202, %s204
      %p208 = scmp.eq.s32.totalorder %s21, 0
      %p209 = por %p207, %p208
      %p210 = scmp.ne.s32.totalorder %s202, %s204
      %p211 = scmp.eq.s32.totalorder %s26, 1
      %p212 = por %p210, %p211
      %p213 = scmp.ne.s32.totalorder %s204, %s205
      %p214 = scmp.eq.s32.totalorder %s26, 0
      %p215 = por %p213, %p214
      %p216 = scmp.ne.s32.totalorder %s204, %s205
      %p217 = scmp.eq.s32.totalorder %s27, 1
      %p218 = por %p216, %p217
      %p220 = scmp.ne.s32.totalorder %s205, %s219
      %p221 = scmp.eq.s32.totalorder %s27, 0
      %p222 = por %p220, %p221
      %s223 = ssub.s32 %s21, %s28
      %p224 = scmp.eq.s32.totalorder %s223, 0
      %s226 = sadd.s32 %s225, 1
      %s227 = scalar_select %p224, %s225, %s226
      %p230 = pneg %p224
      %p231 = scmp.eq.s32.totalorder %s21, 1
      %p232 = por %p230, %p231
      %p233 = scmp.ne.s32.totalorder %s225, %s228
      %p234 = scmp.eq.s32.totalorder %s21, 0
      %p235 = por %p233, %p234
      %p236 = scmp.ne.s32.totalorder %s225, %s228
      %p237 = scmp.eq.s32.totalorder %s26, 1
      %p238 = por %p236, %p237
      %p239 = scmp.ne.s32.totalorder %s228, %s229
      %p240 = scmp.eq.s32.totalorder %s26, 0
      %p241 = por %p239, %p240
      %p242 = scmp.ne.s32.totalorder %s228, %s229
      %p243 = scmp.eq.s32.totalorder %s27, 1
      %p244 = por %p242, %p243
      %p246 = scmp.ne.s32.totalorder %s229, %s245
      %p247 = scmp.eq.s32.totalorder %s27, 0
      %p248 = por %p246, %p247
      %p249 = scmp.le.s32.totalorder 1, %s21
      %p250 = scmp.lt.s32.totalorder %s21, 3
      %p251 = pnand %p249, %p250
      %p252 = pneg %p251
      // Predicated region
      $region9: #{cnn_forward.1} parent=5 // pred_check
        _
      $region10: #{cnn_forward.1} parent=5 // pred_check_branch
        %254 = sbr.rel (%p251) target = $region12
      $region11: #{cnn_forward.1} parent=5 // pred_region
        %s255 = ssub.s32 %s21, 1
        // Predicated region
        $region13: #{cnn_forward.1} parent=11 // pred_check
          %p256 = pneg %p68
        $region14: #{cnn_forward.1} parent=11 // pred_check_branch
          %258 = sbr.rel (%p256) target = $region16
        $region15: #{cnn_forward.1} parent=11 // pred_region
          _
        $region16: #{cnn_forward.1} parent=11 // pred_fallthru
          _
        // Predicated region
        $region17: #{cnn_forward.1} parent=11 // pred_check
          %p259 = pneg %p89
        $region18: #{cnn_forward.1} parent=11 // pred_check_branch
          %261 = sbr.rel (%p259) target = $region20
        $region19: #{cnn_forward.1} parent=11 // pred_region
          %s263 = ssub.s32 128, 128
          %264 = vsyncadd [#allocation5], %s263
          %s266 = sshll.u32 [#allocation4], 4
          %s267 = int_to_ptr.vmem [resolvable:$true] %s266
          %269 = dma.hbm_to_vmem [thread:$0]  %s2, 128, %s267, [#allocation5]
        $region20: #{cnn_forward.1} parent=11 // pred_fallthru
          _
        // Predicated region
        $region21: #{cnn_forward.1} parent=11 // pred_check
          %p270 = pneg %p110
        $region22: #{cnn_forward.1} parent=11 // pred_check_branch
          %272 = sbr.rel (%p270) target = $region24
        $region23: #{cnn_forward.1} parent=11 // pred_region
          %s274 = ssub.s32 49152, 49152
          %275 = vsyncadd [#allocation8], %s274
          %s276 = sshll.u32 [#allocation7], 4
          %s277 = int_to_ptr.vmem [resolvable:$true] %s276
          %282 = dma.hbm_to_vmem [thread:$0]  %s3, 49152, %s277, [#allocation8], 512, 512, 32
        $region24: #{cnn_forward.1} parent=11 // pred_fallthru
          _
        // Predicated region
        $region25: #{cnn_forward.1} parent=11 // pred_check
          %p283 = pneg %p131
        $region26: #{cnn_forward.1} parent=11 // pred_check_branch
          %285 = sbr.rel (%p283) target = $region28
        $region27: #{cnn_forward.1} parent=11 // pred_region
          %s287 = ssub.s32 64, 64
          %288 = vsyncadd [#allocation8], %s287
          %s290 = sshll.u32 [#allocation9], 4
          %s291 = int_to_ptr.vmem [resolvable:$true] %s290
          %293 = dma.hbm_to_vmem [thread:$0]  %s4, 64, %s291, [#allocation8]
        $region28: #{cnn_forward.1} parent=11 // pred_fallthru
          _
        // Predicated region
        $region29: #{cnn_forward.1} parent=11 // pred_check
          %p294 = pneg %p152
        $region30: #{cnn_forward.1} parent=11 // pred_check_branch
          %296 = sbr.rel (%p294) target = $region32
        $region31: #{cnn_forward.1} parent=11 // pred_region
          _
        $region32: #{cnn_forward.1} parent=11 // pred_fallthru
          _
        // Predicated region
        $region33: #{cnn_forward.1} parent=11 // pred_check
          %p297 = pneg %p173
        $region34: #{cnn_forward.1} parent=11 // pred_check_branch
          %299 = sbr.rel (%p297) target = $region36
        $region35: #{cnn_forward.1} parent=11 // pred_region
          %s301 = ssub.s32 16, 16
          %302 = vsyncadd [#allocation11], %s301
          %s304 = sshll.u32 [#allocation10], 4
          %s305 = int_to_ptr.vmem [resolvable:$true] %s304
          %307 = dma.hbm_to_vmem [thread:$0]  %s6, 16, %s305, [#allocation11]
        $region36: #{cnn_forward.1} parent=11 // pred_fallthru
          _
        // Predicated region
        $region37: #{cnn_forward.1} parent=11 // pred_check
          %p308 = pneg %p194
        $region38: #{cnn_forward.1} parent=11 // pred_check_branch
          %310 = sbr.rel (%p308) target = $region40
        $region39: #{cnn_forward.1} parent=11 // pred_region
          _
        $region40: #{cnn_forward.1} parent=11 // pred_fallthru
          _
        // Predicated region
        $region41: #{cnn_forward.1} parent=11 // pred_check
          %p311 = pneg %p215
        $region42: #{cnn_forward.1} parent=11 // pred_check_branch
          %313 = sbr.rel (%p311) target = $region44
        $region43: #{cnn_forward.1} parent=11 // pred_region
          %s315 = ssub.s32 16, 16
          %316 = vsyncadd [#allocation11], %s315
          %s318 = sshll.u32 [#allocation12], 4
          %s319 = int_to_ptr.vmem [resolvable:$true] %s318
          %321 = dma.hbm_to_vmem [thread:$0]  %s8, 16, %s319, [#allocation11]
        $region44: #{cnn_forward.1} parent=11 // pred_fallthru
          _
      $region12: #{cnn_forward.1} parent=5 // pred_fallthru
        _
      %p322 = scmp.lt.s32.totalorder %s21, 2
      // Predicated region
      $region45: #{cnn_forward.1} parent=5 // pred_check
        %p323 = pneg %p322
      $region46: #{cnn_forward.1} parent=5 // pred_check_branch
        %325 = sbr.rel (%p323) target = $region48
      $region47: #{cnn_forward.1} parent=5 // pred_region
        // Predicated region
        $region49: #{cnn_forward.1} parent=47 // pred_check
          %p326 = pneg %p41
        $region50: #{cnn_forward.1} parent=47 // pred_check_branch
          %328 = sbr.rel (%p326) target = $region52
        $region51: #{cnn_forward.1} parent=47 // pred_region
          %p329 = scmp.lt.s32.totalorder %s21, 1
          %s330 = scalar_select %p329, %s21, 1
          %s331 = smul.addr %s330, 8
          %s332 = scalar_lea.vmem %s0, %s331
        $region52: #{cnn_forward.1} parent=47 // pred_fallthru
          _
      $region48: #{cnn_forward.1} parent=5 // pred_fallthru
        _
      %p333 = scmp.le.s32.totalorder 1, %s21
      %p334 = scmp.lt.s32.totalorder %s21, 3
      %p335 = pnand %p333, %p334
      %p336 = pneg %p335
      // Predicated region
      $region53: #{cnn_forward.1} parent=5 // pred_check
        _
      $region54: #{cnn_forward.1} parent=5 // pred_check_branch
        %338 = sbr.rel (%p335) target = $region56
      $region55: #{cnn_forward.1} parent=5 // pred_region
        %s339 = ssub.s32 %s21, 1
        // Predicated region
        $region57: #{cnn_forward.1} parent=55 // pred_check
          %p340 = pneg %p89
        $region58: #{cnn_forward.1} parent=55 // pred_check_branch
          %342 = sbr.rel (%p340) target = $region60
        $region59: #{cnn_forward.1} parent=55 // pred_region
          %343 = dma.done [#allocation5], 128
        $region60: #{cnn_forward.1} parent=55 // pred_fallthru
          _
        // Predicated region
        $region61: #{cnn_forward.1} parent=55 // pred_check
          %p344 = pneg %p110
        $region62: #{cnn_forward.1} parent=55 // pred_check_branch
          %346 = sbr.rel (%p344) target = $region64
        $region63: #{cnn_forward.1} parent=55 // pred_region
          %347 = dma.done [#allocation8], 49152
        $region64: #{cnn_forward.1} parent=55 // pred_fallthru
          _
        // Predicated region
        $region65: #{cnn_forward.1} parent=55 // pred_check
          %p348 = pneg %p131
        $region66: #{cnn_forward.1} parent=55 // pred_check_branch
          %350 = sbr.rel (%p348) target = $region68
        $region67: #{cnn_forward.1} parent=55 // pred_region
          %351 = dma.done [#allocation8], 64
        $region68: #{cnn_forward.1} parent=55 // pred_fallthru
          _
        // Predicated region
        $region69: #{cnn_forward.1} parent=55 // pred_check
          %p352 = pneg %p173
        $region70: #{cnn_forward.1} parent=55 // pred_check_branch
          %354 = sbr.rel (%p352) target = $region72
        $region71: #{cnn_forward.1} parent=55 // pred_region
          %355 = dma.done [#allocation11], 16
        $region72: #{cnn_forward.1} parent=55 // pred_fallthru
          _
        // Predicated region
        $region73: #{cnn_forward.1} parent=55 // pred_check
          %p356 = pneg %p215
        $region74: #{cnn_forward.1} parent=55 // pred_check_branch
          %358 = sbr.rel (%p356) target = $region76
        $region75: #{cnn_forward.1} parent=55 // pred_region
          %359 = dma.done [#allocation11], 16
        $region76: #{cnn_forward.1} parent=55 // pred_fallthru
          _
        %p360 = scmp.lt.s32.totalorder %s26, 1
        %s361 = scalar_select %p360, %s26, 1
        %s362 = smul.addr %s361, 8
        %s363 = scalar_lea.vmem %s0, %s362
        %p364 = pneg %p47
        %p365 = pneg %p44
        %p366 = pneg %p68
        %p367 = pneg %p65
        %p368 = pneg %p89
        %p369 = pneg %p86
        %p370 = pneg %p110
        %p371 = pneg %p107
        %p372 = pneg %p131
        %p373 = pneg %p128
        %p374 = pneg %p152
        %p375 = pneg %p149
        %p376 = pneg %p173
        %p377 = pneg %p170
        %p378 = pneg %p194
        %p379 = pneg %p191
        %p380 = pneg %p215
        %p381 = pneg %p212
        %p382 = pneg %p241
        %p383 = pneg %p238
        %s384 = sand.u32 %s228, 1
        %s385 = scalar_lea.sflag [#allocation6], %s384
        %s386 = sand.u32 %s228, 1
        %s387 = scalar_lea.vmem [#allocation13], %s386
        %p388 = scmp.lt.s32.totalorder %s26, 1
        %s389 = scalar_select %p388, %s26, 1
        %s390 = smul.addr %s389, 8
        %s391 = scalar_lea.vmem %s0, %s390
        %v392 = vld [vmem:[%s391] sm:$0x3f]
        %v393 = vld [vmem:[%s1] sm:$0xff]
        %v394 = vld [vmem:[%s1 + $0x8] sm:$0xff]
        %v395 = vld [vmem:[%s1 + $0x10] sm:$0xff]
        %v396 = vld [vmem:[%s1 + $0x18] sm:$0xff]
        %v397 = vld [vmem:[%s1 + $0x20] sm:$0xff]
        %v398 = vld [vmem:[%s1 + $0x28] sm:$0xff]
        %v399 = vld [vmem:[%s1 + $0x30] sm:$0xff]
        %v400 = vld [vmem:[%s1 + $0x38] sm:$0xff]
        %v401 = vld [vmem:[%s1 + $0x40] sm:$0xff]
        %v402 = vld [vmem:[%s1 + $0x48] sm:$0xff]
        %v403 = vld [vmem:[%s1 + $0x50] sm:$0xff]
        %v404 = vld [vmem:[%s1 + $0x58] sm:$0xff]
        %v405 = vld [vmem:[%s1 + $0x60] sm:$0xff]
        %v406 = vld [vmem:[%s1 + $0x68] sm:$0xff]
        %v407 = vld [vmem:[%s1 + $0x70] sm:$0xff]
        %v408 = vld [vmem:[%s1 + $0x78] sm:$0xff]
        %v409 = vld [vmem:[%s1 + $0x80] sm:$0xff]
        %v410 = vld [vmem:[%s1 + $0x88] sm:$0xff]
        %v411 = vld [vmem:[%s1 + $0x90] sm:$0xff]
        %v412 = vld [vmem:[%s1 + $0x98] sm:$0xff]
        %v413 = vld [vmem:[%s1 + $0xa0] sm:$0xff]
        %v414 = vld [vmem:[%s1 + $0xa8] sm:$0xff]
        %v415 = vld [vmem:[%s1 + $0xb0] sm:$0xff]
        %v416 = vld [vmem:[%s1 + $0xb8] sm:$0xff]
        %v417 = vld [vmem:[%s1 + $0xc0] sm:$0xff]
        %v418 = vld [vmem:[%s1 + $0xc8] sm:$0xff]
        %v419 = vld [vmem:[%s1 + $0xd0] sm:$0xff]
        %v420 = vld [vmem:[%s1 + $0xd8] sm:$0xff]
        %v421 = vld [vmem:[%s1 + $0xe0] sm:$0xff]
        %v422 = vld [vmem:[%s1 + $0xe8] sm:$0xff]
        %v423 = vld [vmem:[%s1 + $0xf0] sm:$0xff]
        %v424 = vld [vmem:[%s1 + $0xf8] sm:$0xff]
        %v425 = vld [vmem:[%s1 + $0x100] sm:$0xff]
        %v426 = vld [vmem:[%s1 + $0x108] sm:$0xff]
        %v427 = vld [vmem:[%s1 + $0x110] sm:$0xff]
        %v428 = vld [vmem:[%s1 + $0x118] sm:$0xff]
        %v429 = vld [vmem:[%s1 + $0x120] sm:$0xff]
        %v430 = vld [vmem:[%s1 + $0x128] sm:$0xff]
        %v431 = vld [vmem:[%s1 + $0x130] sm:$0xff]
        %v432 = vld [vmem:[%s1 + $0x138] sm:$0xff]
        %v433 = vld [vmem:[%s1 + $0x140] sm:$0xff]
        %v434 = vld [vmem:[%s1 + $0x148] sm:$0xff]
        %v435 = vld [vmem:[%s1 + $0x150] sm:$0xff]
        %v436 = vld [vmem:[%s1 + $0x158] sm:$0xff]
        %v437 = vld [vmem:[%s1 + $0x160] sm:$0xff]
        %v438 = vld [vmem:[%s1 + $0x168] sm:$0xff]
        %v439 = vld [vmem:[%s1 + $0x170] sm:$0xff]
        %v440 = vld [vmem:[%s1 + $0x178] sm:$0xff]
        %v441 = vld [vmem:[%s1 + $0x180] sm:$0xff]
        %v442 = vld [vmem:[%s1 + $0x188] sm:$0xff]
        %v443 = vld [vmem:[%s1 + $0x190] sm:$0xff]
        %v444 = vld [vmem:[%s1 + $0x198] sm:$0xff]
        %v445 = vld [vmem:[%s1 + $0x1a0] sm:$0xff]
        %v446 = vld [vmem:[%s1 + $0x1a8] sm:$0xff]
        %v447 = vld [vmem:[%s1 + $0x1b0] sm:$0xff]
        %v448 = vld [vmem:[%s1 + $0x1b8] sm:$0xff]
        %v449 = vld [vmem:[%s1 + $0x1c0] sm:$0xff]
        %v450 = vld [vmem:[%s1 + $0x1c8] sm:$0xff]
        %v451 = vld [vmem:[%s1 + $0x1d0] sm:$0xff]
        %v452 = vld [vmem:[%s1 + $0x1d8] sm:$0xff]
        %v453 = vld [vmem:[%s1 + $0x1e0] sm:$0xff]
        %v454 = vld [vmem:[%s1 + $0x1e8] sm:$0xff]
        %v455 = vld [vmem:[%s1 + $0x1f0] sm:$0xff]
        %v456 = vld [vmem:[%s1 + $0x1f8] sm:$0xff]
        %v457 = vld [vmem:[%s1 + $0x200] sm:$0xff]
        %v458 = vld [vmem:[%s1 + $0x208] sm:$0xff]
        %v459 = vld [vmem:[%s1 + $0x210] sm:$0xff]
        %v460 = vld [vmem:[%s1 + $0x218] sm:$0xff]
        %v461 = vld [vmem:[%s1 + $0x220] sm:$0xff]
        %v462 = vld [vmem:[%s1 + $0x228] sm:$0xff]
        %v463 = vld [vmem:[%s1 + $0x230] sm:$0xff]
        %v464 = vld [vmem:[%s1 + $0x238] sm:$0xff]
        %v465 = vld [vmem:[%s1 + $0x240] sm:$0xff]
        %v466 = vld [vmem:[%s1 + $0x248] sm:$0xff]
        %v467 = vld [vmem:[%s1 + $0x250] sm:$0xff]
        %v468 = vld [vmem:[%s1 + $0x258] sm:$0xff]
        %v469 = vld [vmem:[%s1 + $0x260] sm:$0xff]
        %v470 = vld [vmem:[%s1 + $0x268] sm:$0xff]
        %v471 = vld [vmem:[%s1 + $0x270] sm:$0xff]
        %v472 = vld [vmem:[%s1 + $0x278] sm:$0xff]
        %v473 = vld [vmem:[%s1 + $0x280] sm:$0xff]
        %v474 = vld [vmem:[%s1 + $0x288] sm:$0xff]
        %v475 = vld [vmem:[%s1 + $0x290] sm:$0xff]
        %v476 = vld [vmem:[%s1 + $0x298] sm:$0xff]
        %v477 = vld [vmem:[%s1 + $0x2a0] sm:$0xff]
        %v478 = vld [vmem:[%s1 + $0x2a8] sm:$0xff]
        %v479 = vld [vmem:[%s1 + $0x2b0] sm:$0xff]
        %v480 = vld [vmem:[%s1 + $0x2b8] sm:$0xff]
        %v481 = vld [vmem:[%s1 + $0x2c0] sm:$0xff]
        %v482 = vld [vmem:[%s1 + $0x2c8] sm:$0xff]
        %v483 = vld [vmem:[%s1 + $0x2d0] sm:$0xff]
        %v484 = vld [vmem:[%s1 + $0x2d8] sm:$0xff]
        %v485 = vld [vmem:[%s1 + $0x2e0] sm:$0xff]
        %v486 = vld [vmem:[%s1 + $0x2e8] sm:$0xff]
        %v487 = vld [vmem:[%s1 + $0x2f0] sm:$0xff]
        %v488 = vld [vmem:[%s1 + $0x2f8] sm:$0xff]
        %v489 = vld [vmem:[%s1 + $0x300] sm:$0xff]
        %v490 = vld [vmem:[%s1 + $0x308] sm:$0xff]
        %v491 = vld [vmem:[%s1 + $0x310] sm:$0xff]
        %v492 = vld [vmem:[%s1 + $0x318] sm:$0xff]
        %v493 = vld [vmem:[%s1 + $0x320] sm:$0xff]
        %v494 = vld [vmem:[%s1 + $0x328] sm:$0xff]
        %v495 = vld [vmem:[%s1 + $0x330] sm:$0xff]
        %v496 = vld [vmem:[%s1 + $0x338] sm:$0xff]
        %v497 = vld [vmem:[%s1 + $0x340] sm:$0xff]
        %v498 = vld [vmem:[%s1 + $0x348] sm:$0xff]
        %v499 = vld [vmem:[%s1 + $0x350] sm:$0xff]
        %v500 = vld [vmem:[%s1 + $0x358] sm:$0xff]
        %v501 = vld [vmem:[%s1 + $0x360] sm:$0xff]
        %v502 = vld [vmem:[%s1 + $0x368] sm:$0xff]
        %v503 = vld [vmem:[%s1 + $0x370] sm:$0xff]
        %v504 = vld [vmem:[%s1 + $0x378] sm:$0xff]
        %v505 = vld [vmem:[%s1 + $0x380] sm:$0xff]
        %v506 = vld [vmem:[%s1 + $0x388] sm:$0xff]
        %v507 = vld [vmem:[%s1 + $0x390] sm:$0xff]
        %v508 = vld [vmem:[%s1 + $0x398] sm:$0xff]
        %v509 = vld [vmem:[%s1 + $0x3a0] sm:$0xff]
        %v510 = vld [vmem:[%s1 + $0x3a8] sm:$0xff]
        %v511 = vld [vmem:[%s1 + $0x3b0] sm:$0xff]
        %v512 = vld [vmem:[%s1 + $0x3b8] sm:$0xff]
        %v513 = vld [vmem:[%s1 + $0x3c0] sm:$0xff]
        %v514 = vld [vmem:[%s1 + $0x3c8] sm:$0xff]
        %v515 = vld [vmem:[%s1 + $0x3d0] sm:$0xff]
        %v516 = vld [vmem:[%s1 + $0x3d8] sm:$0xff]
        %v517 = vld [vmem:[%s1 + $0x3e0] sm:$0xff]
        %v518 = vld [vmem:[%s1 + $0x3e8] sm:$0xff]
        %v519 = vld [vmem:[%s1 + $0x3f0] sm:$0xff]
        %v520 = vld [vmem:[%s1 + $0x3f8] sm:$0xff]
        %v521 = vld [vmem:[%s391 + $0x1] sm:$0x3f]
        %s522 = scalar_lea.vmem %s1, 1024
        %v523 = vld [vmem:[%s522] sm:$0xff]
        %v524 = vld [vmem:[%s522 + $0x8] sm:$0xff]
        %v525 = vld [vmem:[%s522 + $0x10] sm:$0xff]
        %v526 = vld [vmem:[%s522 + $0x18] sm:$0xff]
        %v527 = vld [vmem:[%s522 + $0x20] sm:$0xff]
        %v528 = vld [vmem:[%s522 + $0x28] sm:$0xff]
        %v529 = vld [vmem:[%s522 + $0x30] sm:$0xff]
        %v530 = vld [vmem:[%s522 + $0x38] sm:$0xff]
        %v531 = vld [vmem:[%s522 + $0x40] sm:$0xff]
        %v532 = vld [vmem:[%s522 + $0x48] sm:$0xff]
        %v533 = vld [vmem:[%s522 + $0x50] sm:$0xff]
        %v534 = vld [vmem:[%s522 + $0x58] sm:$0xff]
        %v535 = vld [vmem:[%s522 + $0x60] sm:$0xff]
        %v536 = vld [vmem:[%s522 + $0x68] sm:$0xff]
        %v537 = vld [vmem:[%s522 + $0x70] sm:$0xff]
        %v538 = vld [vmem:[%s522 + $0x78] sm:$0xff]
        %v539 = vld [vmem:[%s522 + $0x80] sm:$0xff]
        %v540 = vld [vmem:[%s522 + $0x88] sm:$0xff]
        %v541 = vld [vmem:[%s522 + $0x90] sm:$0xff]
        %v542 = vld [vmem:[%s522 + $0x98] sm:$0xff]
        %v543 = vld [vmem:[%s522 + $0xa0] sm:$0xff]
        %v544 = vld [vmem:[%s522 + $0xa8] sm:$0xff]
        %v545 = vld [vmem:[%s522 + $0xb0] sm:$0xff]
        %v546 = vld [vmem:[%s522 + $0xb8] sm:$0xff]
        %v547 = vld [vmem:[%s522 + $0xc0] sm:$0xff]
        %v548 = vld [vmem:[%s522 + $0xc8] sm:$0xff]
        %v549 = vld [vmem:[%s522 + $0xd0] sm:$0xff]
        %v550 = vld [vmem:[%s522 + $0xd8] sm:$0xff]
        %v551 = vld [vmem:[%s522 + $0xe0] sm:$0xff]
        %v552 = vld [vmem:[%s522 + $0xe8] sm:$0xff]
        %v553 = vld [vmem:[%s522 + $0xf0] sm:$0xff]
        %v554 = vld [vmem:[%s522 + $0xf8] sm:$0xff]
        %v555 = vld [vmem:[%s522 + $0x100] sm:$0xff]
        %v556 = vld [vmem:[%s522 + $0x108] sm:$0xff]
        %v557 = vld [vmem:[%s522 + $0x110] sm:$0xff]
        %v558 = vld [vmem:[%s522 + $0x118] sm:$0xff]
        %v559 = vld [vmem:[%s522 + $0x120] sm:$0xff]
        %v560 = vld [vmem:[%s522 + $0x128] sm:$0xff]
        %v561 = vld [vmem:[%s522 + $0x130] sm:$0xff]
        %v562 = vld [vmem:[%s522 + $0x138] sm:$0xff]
        %v563 = vld [vmem:[%s522 + $0x140] sm:$0xff]
        %v564 = vld [vmem:[%s522 + $0x148] sm:$0xff]
        %v565 = vld [vmem:[%s522 + $0x150] sm:$0xff]
        %v566 = vld [vmem:[%s522 + $0x158] sm:$0xff]
        %v567 = vld [vmem:[%s522 + $0x160] sm:$0xff]
        %v568 = vld [vmem:[%s522 + $0x168] sm:$0xff]
        %v569 = vld [vmem:[%s522 + $0x170] sm:$0xff]
        %v570 = vld [vmem:[%s522 + $0x178] sm:$0xff]
        %v571 = vld [vmem:[%s522 + $0x180] sm:$0xff]
        %v572 = vld [vmem:[%s522 + $0x188] sm:$0xff]
        %v573 = vld [vmem:[%s522 + $0x190] sm:$0xff]
        %v574 = vld [vmem:[%s522 + $0x198] sm:$0xff]
        %v575 = vld [vmem:[%s522 + $0x1a0] sm:$0xff]
        %v576 = vld [vmem:[%s522 + $0x1a8] sm:$0xff]
        %v577 = vld [vmem:[%s522 + $0x1b0] sm:$0xff]
        %v578 = vld [vmem:[%s522 + $0x1b8] sm:$0xff]
        %v579 = vld [vmem:[%s522 + $0x1c0] sm:$0xff]
        %v580 = vld [vmem:[%s522 + $0x1c8] sm:$0xff]
        %v581 = vld [vmem:[%s522 + $0x1d0] sm:$0xff]
        %v582 = vld [vmem:[%s522 + $0x1d8] sm:$0xff]
        %v583 = vld [vmem:[%s522 + $0x1e0] sm:$0xff]
        %v584 = vld [vmem:[%s522 + $0x1e8] sm:$0xff]
        %v585 = vld [vmem:[%s522 + $0x1f0] sm:$0xff]
        %v586 = vld [vmem:[%s522 + $0x1f8] sm:$0xff]
        %v587 = vld [vmem:[%s522 + $0x200] sm:$0xff]
        %v588 = vld [vmem:[%s522 + $0x208] sm:$0xff]
        %v589 = vld [vmem:[%s522 + $0x210] sm:$0xff]
        %v590 = vld [vmem:[%s522 + $0x218] sm:$0xff]
        %v591 = vld [vmem:[%s522 + $0x220] sm:$0xff]
        %v592 = vld [vmem:[%s522 + $0x228] sm:$0xff]
        %v593 = vld [vmem:[%s522 + $0x230] sm:$0xff]
        %v594 = vld [vmem:[%s522 + $0x238] sm:$0xff]
        %v595 = vld [vmem:[%s522 + $0x240] sm:$0xff]
        %v596 = vld [vmem:[%s522 + $0x248] sm:$0xff]
        %v597 = vld [vmem:[%s522 + $0x250] sm:$0xff]
        %v598 = vld [vmem:[%s522 + $0x258] sm:$0xff]
        %v599 = vld [vmem:[%s522 + $0x260] sm:$0xff]
        %v600 = vld [vmem:[%s522 + $0x268] sm:$0xff]
        %v601 = vld [vmem:[%s522 + $0x270] sm:$0xff]
        %v602 = vld [vmem:[%s522 + $0x278] sm:$0xff]
        %v603 = vld [vmem:[%s522 + $0x280] sm:$0xff]
        %v604 = vld [vmem:[%s522 + $0x288] sm:$0xff]
        %v605 = vld [vmem:[%s522 + $0x290] sm:$0xff]
        %v606 = vld [vmem:[%s522 + $0x298] sm:$0xff]
        %v607 = vld [vmem:[%s522 + $0x2a0] sm:$0xff]
        %v608 = vld [vmem:[%s522 + $0x2a8] sm:$0xff]
        %v609 = vld [vmem:[%s522 + $0x2b0] sm:$0xff]
        %v610 = vld [vmem:[%s522 + $0x2b8] sm:$0xff]
        %v611 = vld [vmem:[%s522 + $0x2c0] sm:$0xff]
        %v612 = vld [vmem:[%s522 + $0x2c8] sm:$0xff]
        %v613 = vld [vmem:[%s522 + $0x2d0] sm:$0xff]
        %v614 = vld [vmem:[%s522 + $0x2d8] sm:$0xff]
        %v615 = vld [vmem:[%s522 + $0x2e0] sm:$0xff]
        %v616 = vld [vmem:[%s522 + $0x2e8] sm:$0xff]
        %v617 = vld [vmem:[%s522 + $0x2f0] sm:$0xff]
        %v618 = vld [vmem:[%s522 + $0x2f8] sm:$0xff]
        %v619 = vld [vmem:[%s522 + $0x300] sm:$0xff]
        %v620 = vld [vmem:[%s522 + $0x308] sm:$0xff]
        %v621 = vld [vmem:[%s522 + $0x310] sm:$0xff]
        %v622 = vld [vmem:[%s522 + $0x318] sm:$0xff]
        %v623 = vld [vmem:[%s522 + $0x320] sm:$0xff]
        %v624 = vld [vmem:[%s522 + $0x328] sm:$0xff]
        %v625 = vld [vmem:[%s522 + $0x330] sm:$0xff]
        %v626 = vld [vmem:[%s522 + $0x338] sm:$0xff]
        %v627 = vld [vmem:[%s522 + $0x340] sm:$0xff]
        %v628 = vld [vmem:[%s522 + $0x348] sm:$0xff]
        %v629 = vld [vmem:[%s522 + $0x350] sm:$0xff]
        %v630 = vld [vmem:[%s522 + $0x358] sm:$0xff]
        %v631 = vld [vmem:[%s522 + $0x360] sm:$0xff]
        %v632 = vld [vmem:[%s522 + $0x368] sm:$0xff]
        %v633 = vld [vmem:[%s522 + $0x370] sm:$0xff]
        %v634 = vld [vmem:[%s522 + $0x378] sm:$0xff]
        %v635 = vld [vmem:[%s522 + $0x380] sm:$0xff]
        %v636 = vld [vmem:[%s522 + $0x388] sm:$0xff]
        %v637 = vld [vmem:[%s522 + $0x390] sm:$0xff]
        %v638 = vld [vmem:[%s522 + $0x398] sm:$0xff]
        %v639 = vld [vmem:[%s522 + $0x3a0] sm:$0xff]
        %v640 = vld [vmem:[%s522 + $0x3a8] sm:$0xff]
        %v641 = vld [vmem:[%s522 + $0x3b0] sm:$0xff]
        %v642 = vld [vmem:[%s522 + $0x3b8] sm:$0xff]
        %v643 = vld [vmem:[%s522 + $0x3c0] sm:$0xff]
        %v644 = vld [vmem:[%s522 + $0x3c8] sm:$0xff]
        %v645 = vld [vmem:[%s522 + $0x3d0] sm:$0xff]
        %v646 = vld [vmem:[%s522 + $0x3d8] sm:$0xff]
        %v647 = vld [vmem:[%s522 + $0x3e0] sm:$0xff]
        %v648 = vld [vmem:[%s522 + $0x3e8] sm:$0xff]
        %v649 = vld [vmem:[%s522 + $0x3f0] sm:$0xff]
        %v650 = vld [vmem:[%s522 + $0x3f8] sm:$0xff]
        %651 = vmatprep.subr.mxu0 %v524
        %652 = vmatpush1.msra.mxu0 %v523
        %653 = vmatprep.subr.mxu0 %v532
        %654 = vmatpush1.msra.mxu0 %v531
        %655 = vmatprep.subr.mxu0 %v540
        %656 = vmatpush1.msra.mxu0 %v539
        %657 = vmatprep.subr.mxu0 %v548
        %658 = vmatpush1.msra.mxu0 %v547
        %659 = vmatprep.subr.mxu0 %v556
        %660 = vmatpush1.msra.mxu0 %v555
        %661 = vmatprep.subr.mxu0 %v564
        %662 = vmatpush1.msra.mxu0 %v563
        %663 = vmatprep.subr.mxu0 %v572
        %664 = vmatpush1.msra.mxu0 %v571
        %665 = vmatprep.subr.mxu0 %v580
        %666 = vmatpush1.msra.mxu0 %v579
        %667 = vmatprep.subr.mxu0 %v588
        %668 = vmatpush1.msra.mxu0 %v587
        %669 = vmatprep.subr.mxu0 %v596
        %670 = vmatpush1.msra.mxu0 %v595
        %671 = vmatprep.subr.mxu0 %v604
        %672 = vmatpush1.msra.mxu0 %v603
        %673 = vmatprep.subr.mxu0 %v612
        %674 = vmatpush1.msra.mxu0 %v611
        %675 = vmatprep.subr.mxu0 %v620
        %676 = vmatpush1.msra.mxu0 %v619
        %677 = vmatprep.subr.mxu0 %v628
        %678 = vmatpush1.msra.mxu0 %v627
        %679 = vmatprep.subr.mxu0 %v636
        %680 = vmatpush1.msra.mxu0 %v635
        %681 = vmatprep.subr.mxu0 %v644
        %682 = vmatpush1.msra.mxu0 %v643
        %683 = vmatprep.subr.mxu0 0.0
        %684 = vmatpush1.msra.mxu0 0.0
        %685 = vmatprep.subr.mxu0 0.0
        %686 = vmatpush1.msra.mxu0 0.0
        %687 = vmatprep.subr.mxu0 0.0
        %688 = vmatpush1.msra.mxu0 0.0
        %689 = vmatprep.subr.mxu0 0.0
        %690 = vmatpush1.msra.mxu0 0.0
        %691 = vmatprep.subr.mxu0 0.0
        %692 = vmatpush1.msra.mxu0 0.0
        %693 = vmatprep.subr.mxu0 0.0
        %694 = vmatpush1.msra.mxu0 0.0
        %695 = vmatprep.subr.mxu0 0.0
        %696 = vmatpush1.msra.mxu0 0.0
        %697 = vmatprep.subr.mxu0 0.0
        %698 = vmatpush1.msra.mxu0 0.0
        %699 = vmatprep.subr.mxu0 0.0
        %700 = vmatpush1.msra.mxu0 0.0
        %701 = vmatprep.subr.mxu0 0.0
        %702 = vmatpush1.msra.mxu0 0.0
        %703 = vmatprep.subr.mxu0 0.0
        %704 = vmatpush1.msra.mxu0 0.0
        %705 = vmatprep.subr.mxu0 0.0
        %706 = vmatpush1.msra.mxu0 0.0
        %707 = vmatprep.subr.mxu0 0.0
        %708 = vmatpush1.msra.mxu0 0.0
        %709 = vmatprep.subr.mxu0 0.0
        %710 = vmatpush1.msra.mxu0 0.0
        %711 = vmatprep.subr.mxu0 0.0
        %712 = vmatpush1.msra.mxu0 0.0
        %713 = vmatprep.subr.mxu0 0.0
        %714 = vmatpush1.msra.mxu0 0.0
        %715 = vmatprep.mubr.f32.mxu0 0.0
        %716 = vmatmul.mubr.f32.gmra.mrb[0].mxu0 %v521
        %v717 = vpop.f32.mrb[0].mxu0
        %v718 = vadd.f32 0.0, %v717
        %v719 = vpop.f32.mrb[0].mxu0
        %v720 = vadd.f32 0.0, %v719
        %721 = vdwg.mxu0
        %722 = vmatprep.subr.mxu0 %v526
        %723 = vmatpush1.msra.mxu0 %v525
        %724 = vmatprep.subr.mxu0 %v534
        %725 = vmatpush1.msra.mxu0 %v533
        %726 = vmatprep.subr.mxu0 %v542
        %727 = vmatpush1.msra.mxu0 %v541
        %728 = vmatprep.subr.mxu0 %v550
        %729 = vmatpush1.msra.mxu0 %v549
        %730 = vmatprep.subr.mxu0 %v558
        %731 = vmatpush1.msra.mxu0 %v557
        %732 = vmatprep.subr.mxu0 %v566
        %733 = vmatpush1.msra.mxu0 %v565
        %734 = vmatprep.subr.mxu0 %v574
        %735 = vmatpush1.msra.mxu0 %v573
        %736 = vmatprep.subr.mxu0 %v582
        %737 = vmatpush1.msra.mxu0 %v581
        %738 = vmatprep.subr.mxu0 %v590
        %739 = vmatpush1.msra.mxu0 %v589
        %740 = vmatprep.subr.mxu0 %v598
        %741 = vmatpush1.msra.mxu0 %v597
        %742 = vmatprep.subr.mxu0 %v606
        %743 = vmatpush1.msra.mxu0 %v605
        %744 = vmatprep.subr.mxu0 %v614
        %745 = vmatpush1.msra.mxu0 %v613
        %746 = vmatprep.subr.mxu0 %v622
        %747 = vmatpush1.msra.mxu0 %v621
        %748 = vmatprep.subr.mxu0 %v630
        %749 = vmatpush1.msra.mxu0 %v629
        %750 = vmatprep.subr.mxu0 %v638
        %751 = vmatpush1.msra.mxu0 %v637
        %752 = vmatprep.subr.mxu0 %v646
        %753 = vmatpush1.msra.mxu0 %v645
        %754 = vmatprep.subr.mxu0 0.0
        %755 = vmatpush1.msra.mxu0 0.0
        %756 = vmatprep.subr.mxu0 0.0
        %757 = vmatpush1.msra.mxu0 0.0
        %758 = vmatprep.subr.mxu0 0.0
        %759 = vmatpush1.msra.mxu0 0.0
        %760 = vmatprep.subr.mxu0 0.0
        %761 = vmatpush1.msra.mxu0 0.0
        %762 = vmatprep.subr.mxu0 0.0
        %763 = vmatpush1.msra.mxu0 0.0
        %764 = vmatprep.subr.mxu0 0.0
        %765 = vmatpush1.msra.mxu0 0.0
        %766 = vmatprep.subr.mxu0 0.0
        %767 = vmatpush1.msra.mxu0 0.0
        %768 = vmatprep.subr.mxu0 0.0
        %769 = vmatpush1.msra.mxu0 0.0
        %770 = vmatprep.subr.mxu0 0.0
        %771 = vmatpush1.msra.mxu0 0.0
        %772 = vmatprep.subr.mxu0 0.0
        %773 = vmatpush1.msra.mxu0 0.0
        %774 = vmatprep.subr.mxu0 0.0
        %775 = vmatpush1.msra.mxu0 0.0
        %776 = vmatprep.subr.mxu0 0.0
        %777 = vmatpush1.msra.mxu0 0.0
        %778 = vmatprep.subr.mxu0 0.0
        %779 = vmatpush1.msra.mxu0 0.0
        %780 = vmatprep.subr.mxu0 0.0
        %781 = vmatpush1.msra.mxu0 0.0
        %782 = vmatprep.subr.mxu0 0.0
        %783 = vmatpush1.msra.mxu0 0.0
        %784 = vmatprep.subr.mxu0 0.0
        %785 = vmatpush1.msra.mxu0 0.0
        %786 = vmatprep.mubr.f32.mxu0 0.0
        %787 = vmatmul.mubr.f32.gmra.mrb[0].mxu0 %v521
        %v788 = vpop.f32.mrb[0].mxu0
        %v789 = vadd.f32 0.0, %v788
        %v790 = vpop.f32.mrb[0].mxu0
        %v791 = vadd.f32 0.0, %v790
        %792 = vdwg.mxu0
        %793 = vmatprep.subr.mxu0 %v528
        %794 = vmatpush1.msra.mxu0 %v527
        %795 = vmatprep.subr.mxu0 %v536
        %796 = vmatpush1.msra.mxu0 %v535
        %797 = vmatprep.subr.mxu0 %v544
        %798 = vmatpush1.msra.mxu0 %v543
        %799 = vmatprep.subr.mxu0 %v552
        %800 = vmatpush1.msra.mxu0 %v551
        %801 = vmatprep.subr.mxu0 %v560
        %802 = vmatpush1.msra.mxu0 %v559
        %803 = vmatprep.subr.mxu0 %v568
        %804 = vmatpush1.msra.mxu0 %v567
        %805 = vmatprep.subr.mxu0 %v576
        %806 = vmatpush1.msra.mxu0 %v575
        %807 = vmatprep.subr.mxu0 %v584
        %808 = vmatpush1.msra.mxu0 %v583
        %809 = vmatprep.subr.mxu0 %v592
        %810 = vmatpush1.msra.mxu0 %v591
        %811 = vmatprep.subr.mxu0 %v600
        %812 = vmatpush1.msra.mxu0 %v599
        %813 = vmatprep.subr.mxu0 %v608
        %814 = vmatpush1.msra.mxu0 %v607
        %815 = vmatprep.subr.mxu0 %v616
        %816 = vmatpush1.msra.mxu0 %v615
        %817 = vmatprep.subr.mxu0 %v624
        %818 = vmatpush1.msra.mxu0 %v623
        %819 = vmatprep.subr.mxu0 %v632
        %820 = vmatpush1.msra.mxu0 %v631
        %821 = vmatprep.subr.mxu0 %v640
        %822 = vmatpush1.msra.mxu0 %v639
        %823 = vmatprep.subr.mxu0 %v648
        %824 = vmatpush1.msra.mxu0 %v647
        %825 = vmatprep.subr.mxu0 0.0
        %826 = vmatpush1.msra.mxu0 0.0
        %827 = vmatprep.subr.mxu0 0.0
        %828 = vmatpush1.msra.mxu0 0.0
        %829 = vmatprep.subr.mxu0 0.0
        %830 = vmatpush1.msra.mxu0 0.0
        %831 = vmatprep.subr.mxu0 0.0
        %832 = vmatpush1.msra.mxu0 0.0
        %833 = vmatprep.subr.mxu0 0.0
        %834 = vmatpush1.msra.mxu0 0.0
        %835 = vmatprep.subr.mxu0 0.0
        %836 = vmatpush1.msra.mxu0 0.0
        %837 = vmatprep.subr.mxu0 0.0
        %838 = vmatpush1.msra.mxu0 0.0
        %839 = vmatprep.subr.mxu0 0.0
        %840 = vmatpush1.msra.mxu0 0.0
        %841 = vmatprep.subr.mxu0 0.0
        %842 = vmatpush1.msra.mxu0 0.0
        %843 = vmatprep.subr.mxu0 0.0
        %844 = vmatpush1.msra.mxu0 0.0
        %845 = vmatprep.subr.mxu0 0.0
        %846 = vmatpush1.msra.mxu0 0.0
        %847 = vmatprep.subr.mxu0 0.0
        %848 = vmatpush1.msra.mxu0 0.0
        %849 = vmatprep.subr.mxu0 0.0
        %850 = vmatpush1.msra.mxu0 0.0
        %851 = vmatprep.subr.mxu0 0.0
        %852 = vmatpush1.msra.mxu0 0.0
        %853 = vmatprep.subr.mxu0 0.0
        %854 = vmatpush1.msra.mxu0 0.0
        %855 = vmatprep.subr.mxu0 0.0
        %856 = vmatpush1.msra.mxu0 0.0
        %857 = vmatprep.mubr.f32.mxu0 0.0
        %858 = vmatmul.mubr.f32.gmra.mrb[0].mxu0 %v521
        %v859 = vpop.f32.mrb[0].mxu0
        %v860 = vadd.f32 0.0, %v859
        %v861 = vpop.f32.mrb[0].mxu0
        %v862 = vadd.f32 0.0, %v861
        %863 = vdwg.mxu0
        %864 = vmatprep.subr.mxu0 %v530
        %865 = vmatpush1.msra.mxu0 %v529
        %866 = vmatprep.subr.mxu0 %v538
        %867 = vmatpush1.msra.mxu0 %v537
        %868 = vmatprep.subr.mxu0 %v546
        %869 = vmatpush1.msra.mxu0 %v545
        %870 = vmatprep.subr.mxu0 %v554
        %871 = vmatpush1.msra.mxu0 %v553
        %872 = vmatprep.subr.mxu0 %v562
        %873 = vmatpush1.msra.mxu0 %v561
        %874 = vmatprep.subr.mxu0 %v570
        %875 = vmatpush1.msra.mxu0 %v569
        %876 = vmatprep.subr.mxu0 %v578
        %877 = vmatpush1.msra.mxu0 %v577
        %878 = vmatprep.subr.mxu0 %v586
        %879 = vmatpush1.msra.mxu0 %v585
        %880 = vmatprep.subr.mxu0 %v594
        %881 = vmatpush1.msra.mxu0 %v593
        %882 = vmatprep.subr.mxu0 %v602
        %883 = vmatpush1.msra.mxu0 %v601
        %884 = vmatprep.subr.mxu0 %v610
        %885 = vmatpush1.msra.mxu0 %v609
        %886 = vmatprep.subr.mxu0 %v618
        %887 = vmatpush1.msra.mxu0 %v617
        %888 = vmatprep.subr.mxu0 %v626
        %889 = vmatpush1.msra.mxu0 %v625
        %890 = vmatprep.subr.mxu0 %v634
        %891 = vmatpush1.msra.mxu0 %v633
        %892 = vmatprep.subr.mxu0 %v642
        %893 = vmatpush1.msra.mxu0 %v641
        %894 = vmatprep.subr.mxu0 %v650
        %895 = vmatpush1.msra.mxu0 %v649
        %896 = vmatprep.subr.mxu0 0.0
        %897 = vmatpush1.msra.mxu0 0.0
        %898 = vmatprep.subr.mxu0 0.0
        %899 = vmatpush1.msra.mxu0 0.0
        %900 = vmatprep.subr.mxu0 0.0
        %901 = vmatpush1.msra.mxu0 0.0
        %902 = vmatprep.subr.mxu0 0.0
        %903 = vmatpush1.msra.mxu0 0.0
        %904 = vmatprep.subr.mxu0 0.0
        %905 = vmatpush1.msra.mxu0 0.0
        %906 = vmatprep.subr.mxu0 0.0
        %907 = vmatpush1.msra.mxu0 0.0
        %908 = vmatprep.subr.mxu0 0.0
        %909 = vmatpush1.msra.mxu0 0.0
        %910 = vmatprep.subr.mxu0 0.0
        %911 = vmatpush1.msra.mxu0 0.0
        %912 = vmatprep.subr.mxu0 0.0
        %913 = vmatpush1.msra.mxu0 0.0
        %914 = vmatprep.subr.mxu0 0.0
        %915 = vmatpush1.msra.mxu0 0.0
        %916 = vmatprep.subr.mxu0 0.0
        %917 = vmatpush1.msra.mxu0 0.0
        %918 = vmatprep.subr.mxu0 0.0
        %919 = vmatpush1.msra.mxu0 0.0
        %920 = vmatprep.subr.mxu0 0.0
        %921 = vmatpush1.msra.mxu0 0.0
        %922 = vmatprep.subr.mxu0 0.0
        %923 = vmatpush1.msra.mxu0 0.0
        %924 = vmatprep.subr.mxu0 0.0
        %925 = vmatpush1.msra.mxu0 0.0
        %926 = vmatprep.subr.mxu0 0.0
        %927 = vmatpush1.msra.mxu0 0.0
        %928 = vmatprep.mubr.f32.mxu0 0.0
        %929 = vmatmul.mubr.f32.gmra.mrb[0].mxu0 %v521
        %v930 = vpop.f32.mrb[0].mxu0
        %v931 = vadd.f32 0.0, %v930
        %v932 = vpop.f32.mrb[0].mxu0
        %v933 = vadd.f32 0.0, %v932
        %934 = vdwg.mxu0
        %935 = vmatprep.subr.mxu0 %v394
        %936 = vmatpush1.msra.mxu0 %v393
        %937 = vmatprep.subr.mxu0 %v402
        %938 = vmatpush1.msra.mxu0 %v401
        %939 = vmatprep.subr.mxu0 %v410
        %940 = vmatpush1.msra.mxu0 %v409
        %941 = vmatprep.subr.mxu0 %v418
        %942 = vmatpush1.msra.mxu0 %v417
        %943 = vmatprep.subr.mxu0 %v426
        %944 = vmatpush1.msra.mxu0 %v425
        %945 = vmatprep.subr.mxu0 %v434
        %946 = vmatpush1.msra.mxu0 %v433
        %947 = vmatprep.subr.mxu0 %v442
        %948 = vmatpush1.msra.mxu0 %v441
        %949 = vmatprep.subr.mxu0 %v450
        %950 = vmatpush1.msra.mxu0 %v449
        %951 = vmatprep.subr.mxu0 %v458
        %952 = vmatpush1.msra.mxu0 %v457
        %953 = vmatprep.subr.mxu0 %v466
        %954 = vmatpush1.msra.mxu0 %v465
        %955 = vmatprep.subr.mxu0 %v474
        %956 = vmatpush1.msra.mxu0 %v473
        %957 = vmatprep.subr.mxu0 %v482
        %958 = vmatpush1.msra.mxu0 %v481
        %959 = vmatprep.subr.mxu0 %v490
        %960 = vmatpush1.msra.mxu0 %v489
        %961 = vmatprep.subr.mxu0 %v498
        %962 = vmatpush1.msra.mxu0 %v497
        %963 = vmatprep.subr.mxu0 %v506
        %964 = vmatpush1.msra.mxu0 %v505
        %965 = vmatprep.subr.mxu0 %v514
        %966 = vmatpush1.msra.mxu0 %v513
        %967 = vmatprep.subr.mxu0 0.0
        %968 = vmatpush1.msra.mxu0 0.0
        %969 = vmatprep.subr.mxu0 0.0
        %970 = vmatpush1.msra.mxu0 0.0
        %971 = vmatprep.subr.mxu0 0.0
        %972 = vmatpush1.msra.mxu0 0.0
        %973 = vmatprep.subr.mxu0 0.0
        %974 = vmatpush1.msra.mxu0 0.0
        %975 = vmatprep.subr.mxu0 0.0
        %976 = vmatpush1.msra.mxu0 0.0
        %977 = vmatprep.subr.mxu0 0.0
        %978 = vmatpush1.msra.mxu0 0.0
        %979 = vmatprep.subr.mxu0 0.0
        %980 = vmatpush1.msra.mxu0 0.0
        %981 = vmatprep.subr.mxu0 0.0
        %982 = vmatpush1.msra.mxu0 0.0
        %983 = vmatprep.subr.mxu0 0.0
        %984 = vmatpush1.msra.mxu0 0.0
        %985 = vmatprep.subr.mxu0 0.0
        %986 = vmatpush1.msra.mxu0 0.0
        %987 = vmatprep.subr.mxu0 0.0
        %988 = vmatpush1.msra.mxu0 0.0
        %989 = vmatprep.subr.mxu0 0.0
        %990 = vmatpush1.msra.mxu0 0.0
        %991 = vmatprep.subr.mxu0 0.0
        %992 = vmatpush1.msra.mxu0 0.0
        %993 = vmatprep.subr.mxu0 0.0
        %994 = vmatpush1.msra.mxu0 0.0
        %995 = vmatprep.subr.mxu0 0.0
        %996 = vmatpush1.msra.mxu0 0.0
        %997 = vmatprep.subr.mxu0 0.0
        %998 = vmatpush1.msra.mxu0 0.0
        %999 = vmatprep.mubr.f32.mxu0 0.0
        %1000 = vmatmul.mubr.f32.gmra.mrb[0].mxu0 %v392
        %v1001 = vpop.f32.mrb[0].mxu0
        %v1002 = vadd.f32 %v718, %v1001
        %v1003 = vpop.f32.mrb[0].mxu0
        %v1004 = vadd.f32 %v720, %v1003
        %1005 = vdwg.mxu0
        %1006 = vmatprep.subr.mxu0 %v396
        %1007 = vmatpush1.msra.mxu0 %v395
        %1008 = vmatprep.subr.mxu0 %v404
        %1009 = vmatpush1.msra.mxu0 %v403
        %1010 = vmatprep.subr.mxu0 %v412
        %1011 = vmatpush1.msra.mxu0 %v411
        %1012 = vmatprep.subr.mxu0 %v420
        %1013 = vmatpush1.msra.mxu0 %v419
        %1014 = vmatprep.subr.mxu0 %v428
        %1015 = vmatpush1.msra.mxu0 %v427
        %1016 = vmatprep.subr.mxu0 %v436
        %1017 = vmatpush1.msra.mxu0 %v435
        %1018 = vmatprep.subr.mxu0 %v444
        %1019 = vmatpush1.msra.mxu0 %v443
        %1020 = vmatprep.subr.mxu0 %v452
        %1021 = vmatpush1.msra.mxu0 %v451
        %1022 = vmatprep.subr.mxu0 %v460
        %1023 = vmatpush1.msra.mxu0 %v459
        %1024 = vmatprep.subr.mxu0 %v468
        %1025 = vmatpush1.msra.mxu0 %v467
        %1026 = vmatprep.subr.mxu0 %v476
        %1027 = vmatpush1.msra.mxu0 %v475
        %1028 = vmatprep.subr.mxu0 %v484
        %1029 = vmatpush1.msra.mxu0 %v483
        %1030 = vmatprep.subr.mxu0 %v492
        %1031 = vmatpush1.msra.mxu0 %v491
        %1032 = vmatprep.subr.mxu0 %v500
        %1033 = vmatpush1.msra.mxu0 %v499
        %1034 = vmatprep.subr.mxu0 %v508
        %1035 = vmatpush1.msra.mxu0 %v507
        %1036 = vmatprep.subr.mxu0 %v516
        %1037 = vmatpush1.msra.mxu0 %v515
        %1038 = vmatprep.subr.mxu0 0.0
        %1039 = vmatpush1.msra.mxu0 0.0
        %1040 = vmatprep.subr.mxu0 0.0
        %1041 = vmatpush1.msra.mxu0 0.0
        %1042 = vmatprep.subr.mxu0 0.0
        %1043 = vmatpush1.msra.mxu0 0.0
        %1044 = vmatprep.subr.mxu0 0.0
        %1045 = vmatpush1.msra.mxu0 0.0
        %1046 = vmatprep.subr.mxu0 0.0
        %1047 = vmatpush1.msra.mxu0 0.0
        %1048 = vmatprep.subr.mxu0 0.0
        %1049 = vmatpush1.msra.mxu0 0.0
        %1050 = vmatprep.subr.mxu0 0.0
        %1051 = vmatpush1.msra.mxu0 0.0
        %1052 = vmatprep.subr.mxu0 0.0
        %1053 = vmatpush1.msra.mxu0 0.0
        %1054 = vmatprep.subr.mxu0 0.0
        %1055 = vmatpush1.msra.mxu0 0.0
        %1056 = vmatprep.subr.mxu0 0.0
        %1057 = vmatpush1.msra.mxu0 0.0
        %1058 = vmatprep.subr.mxu0 0.0
        %1059 = vmatpush1.msra.mxu0 0.0
        %1060 = vmatprep.subr.mxu0 0.0
        %1061 = vmatpush1.msra.mxu0 0.0
        %1062 = vmatprep.subr.mxu0 0.0
        %1063 = vmatpush1.msra.mxu0 0.0
        %1064 = vmatprep.subr.mxu0 0.0
        %1065 = vmatpush1.msra.mxu0 0.0
        %1066 = vmatprep.subr.mxu0 0.0
        %1067 = vmatpush1.msra.mxu0 0.0
        %1068 = vmatprep.subr.mxu0 0.0
        %1069 = vmatpush1.msra.mxu0 0.0
        %1070 = vmatprep.mubr.f32.mxu0 0.0
        %1071 = vmatmul.mubr.f32.gmra.mrb[0].mxu0 %v392
        %v1072 = vpop.f32.mrb[0].mxu0
        %v1073 = vadd.f32 %v789, %v1072
        %v1074 = vpop.f32.mrb[0].mxu0
        %v1075 = vadd.f32 %v791, %v1074
        %1076 = vdwg.mxu0
        %1077 = vmatprep.subr.mxu0 %v398
        %1078 = vmatpush1.msra.mxu0 %v397
        %1079 = vmatprep.subr.mxu0 %v406
        %1080 = vmatpush1.msra.mxu0 %v405
        %1081 = vmatprep.subr.mxu0 %v414
        %1082 = vmatpush1.msra.mxu0 %v413
        %1083 = vmatprep.subr.mxu0 %v422
        %1084 = vmatpush1.msra.mxu0 %v421
        %1085 = vmatprep.subr.mxu0 %v430
        %1086 = vmatpush1.msra.mxu0 %v429
        %1087 = vmatprep.subr.mxu0 %v438
        %1088 = vmatpush1.msra.mxu0 %v437
        %1089 = vmatprep.subr.mxu0 %v446
        %1090 = vmatpush1.msra.mxu0 %v445
        %1091 = vmatprep.subr.mxu0 %v454
        %1092 = vmatpush1.msra.mxu0 %v453
        %1093 = vmatprep.subr.mxu0 %v462
        %1094 = vmatpush1.msra.mxu0 %v461
        %1095 = vmatprep.subr.mxu0 %v470
        %1096 = vmatpush1.msra.mxu0 %v469
        %1097 = vmatprep.subr.mxu0 %v478
        %1098 = vmatpush1.msra.mxu0 %v477
        %1099 = vmatprep.subr.mxu0 %v486
        %1100 = vmatpush1.msra.mxu0 %v485
        %1101 = vmatprep.subr.mxu0 %v494
        %1102 = vmatpush1.msra.mxu0 %v493
        %1103 = vmatprep.subr.mxu0 %v502
        %1104 = vmatpush1.msra.mxu0 %v501
        %1105 = vmatprep.subr.mxu0 %v510
        %1106 = vmatpush1.msra.mxu0 %v509
        %1107 = vmatprep.subr.mxu0 %v518
        %1108 = vmatpush1.msra.mxu0 %v517
        %1109 = vmatprep.subr.mxu0 0.0
        %1110 = vmatpush1.msra.mxu0 0.0
        %1111 = vmatprep.subr.mxu0 0.0
        %1112 = vmatpush1.msra.mxu0 0.0
        %1113 = vmatprep.subr.mxu0 0.0
        %1114 = vmatpush1.msra.mxu0 0.0
        %1115 = vmatprep.subr.mxu0 0.0
        %1116 = vmatpush1.msra.mxu0 0.0
        %1117 = vmatprep.subr.mxu0 0.0
        %1118 = vmatpush1.msra.mxu0 0.0
        %1119 = vmatprep.subr.mxu0 0.0
        %1120 = vmatpush1.msra.mxu0 0.0
        %1121 = vmatprep.subr.mxu0 0.0
        %1122 = vmatpush1.msra.mxu0 0.0
        %1123 = vmatprep.subr.mxu0 0.0
        %1124 = vmatpush1.msra.mxu0 0.0
        %1125 = vmatprep.subr.mxu0 0.0
        %1126 = vmatpush1.msra.mxu0 0.0
        %1127 = vmatprep.subr.mxu0 0.0
        %1128 = vmatpush1.msra.mxu0 0.0
        %1129 = vmatprep.subr.mxu0 0.0
        %1130 = vmatpush1.msra.mxu0 0.0
        %1131 = vmatprep.subr.mxu0 0.0
        %1132 = vmatpush1.msra.mxu0 0.0
        %1133 = vmatprep.subr.mxu0 0.0
        %1134 = vmatpush1.msra.mxu0 0.0
        %1135 = vmatprep.subr.mxu0 0.0
        %1136 = vmatpush1.msra.mxu0 0.0
        %1137 = vmatprep.subr.mxu0 0.0
        %1138 = vmatpush1.msra.mxu0 0.0
        %1139 = vmatprep.subr.mxu0 0.0
        %1140 = vmatpush1.msra.mxu0 0.0
        %1141 = vmatprep.mubr.f32.mxu0 0.0
        %1142 = vmatmul.mubr.f32.gmra.mrb[0].mxu0 %v392
        %v1143 = vpop.f32.mrb[0].mxu0
        %v1144 = vadd.f32 %v860, %v1143
        %v1145 = vpop.f32.mrb[0].mxu0
        %v1146 = vadd.f32 %v862, %v1145
        %1147 = vdwg.mxu0
        %1148 = vmatprep.subr.mxu0 %v400
        %1149 = vmatpush1.msra.mxu0 %v399
        %1150 = vmatprep.subr.mxu0 %v408
        %1151 = vmatpush1.msra.mxu0 %v407
        %1152 = vmatprep.subr.mxu0 %v416
        %1153 = vmatpush1.msra.mxu0 %v415
        %1154 = vmatprep.subr.mxu0 %v424
        %1155 = vmatpush1.msra.mxu0 %v423
        %1156 = vmatprep.subr.mxu0 %v432
        %1157 = vmatpush1.msra.mxu0 %v431
        %1158 = vmatprep.subr.mxu0 %v440
        %1159 = vmatpush1.msra.mxu0 %v439
        %1160 = vmatprep.subr.mxu0 %v448
        %1161 = vmatpush1.msra.mxu0 %v447
        %1162 = vmatprep.subr.mxu0 %v456
        %1163 = vmatpush1.msra.mxu0 %v455
        %1164 = vmatprep.subr.mxu0 %v464
        %1165 = vmatpush1.msra.mxu0 %v463
        %1166 = vmatprep.subr.mxu0 %v472
        %1167 = vmatpush1.msra.mxu0 %v471
        %1168 = vmatprep.subr.mxu0 %v480
        %1169 = vmatpush1.msra.mxu0 %v479
        %1170 = vmatprep.subr.mxu0 %v488
        %1171 = vmatpush1.msra.mxu0 %v487
        %1172 = vmatprep.subr.mxu0 %v496
        %1173 = vmatpush1.msra.mxu0 %v495
        %1174 = vmatprep.subr.mxu0 %v504
        %1175 = vmatpush1.msra.mxu0 %v503
        %1176 = vmatprep.subr.mxu0 %v512
        %1177 = vmatpush1.msra.mxu0 %v511
        %1178 = vmatprep.subr.mxu0 %v520
        %1179 = vmatpush1.msra.mxu0 %v519
        %1180 = vmatprep.subr.mxu0 0.0
        %1181 = vmatpush1.msra.mxu0 0.0
        %1182 = vmatprep.subr.mxu0 0.0
        %1183 = vmatpush1.msra.mxu0 0.0
        %1184 = vmatprep.subr.mxu0 0.0
        %1185 = vmatpush1.msra.mxu0 0.0
        %1186 = vmatprep.subr.mxu0 0.0
        %1187 = vmatpush1.msra.mxu0 0.0
        %1188 = vmatprep.subr.mxu0 0.0
        %1189 = vmatpush1.msra.mxu0 0.0
        %1190 = vmatprep.subr.mxu0 0.0
        %1191 = vmatpush1.msra.mxu0 0.0
        %1192 = vmatprep.subr.mxu0 0.0
        %1193 = vmatpush1.msra.mxu0 0.0
        %1194 = vmatprep.subr.mxu0 0.0
        %1195 = vmatpush1.msra.mxu0 0.0
        %1196 = vmatprep.subr.mxu0 0.0
        %1197 = vmatpush1.msra.mxu0 0.0
        %1198 = vmatprep.subr.mxu0 0.0
        %1199 = vmatpush1.msra.mxu0 0.0
        %1200 = vmatprep.subr.mxu0 0.0
        %1201 = vmatpush1.msra.mxu0 0.0
        %1202 = vmatprep.subr.mxu0 0.0
        %1203 = vmatpush1.msra.mxu0 0.0
        %1204 = vmatprep.subr.mxu0 0.0
        %1205 = vmatpush1.msra.mxu0 0.0
        %1206 = vmatprep.subr.mxu0 0.0
        %1207 = vmatpush1.msra.mxu0 0.0
        %1208 = vmatprep.subr.mxu0 0.0
        %1209 = vmatpush1.msra.mxu0 0.0
        %1210 = vmatprep.subr.mxu0 0.0
        %1211 = vmatpush1.msra.mxu0 0.0
        %1212 = vmatprep.mubr.f32.mxu0 0.0
        %1213 = vmatmul.mubr.f32.gmra.mrb[0].mxu0 %v392
        %v1214 = vpop.f32.mrb[0].mxu0
        %v1215 = vadd.f32 %v931, %v1214
        %v1216 = vpop.f32.mrb[0].mxu0
        %v1217 = vadd.f32 %v933, %v1216
        %1218 = vdwg.mxu0
        %v1219 = vld [vmem:[#allocation4] sm:$0xff]
        %v1221 = vlaneseq
        %v1222 = vshrl.u32 %v1221, 7
        %v1223 = vsub.s32 0, %v1222
        %v1224 = vrot.slane %v1219, %v1223
        %v1225 = vlaneseq
        %v1226 = vshrl.u32 %v1225, 7
        %v1227 = vsub.s32 1, %v1226
        %v1228 = vrot.slane %v1219, %v1227
        %v1229 = vlaneseq
        %v1230 = vshrl.u32 %v1229, 7
        %v1231 = vsub.s32 2, %v1230
        %v1232 = vrot.slane %v1219, %v1231
        %v1233 = vlaneseq
        %v1234 = vshrl.u32 %v1233, 7
        %v1235 = vsub.s32 3, %v1234
        %v1236 = vrot.slane %v1219, %v1235
        %v1237 = vlaneseq
        %v1238 = vshrl.u32 %v1237, 7
        %v1239 = vsub.s32 4, %v1238
        %v1240 = vrot.slane %v1219, %v1239
        %v1241 = vlaneseq
        %v1242 = vshrl.u32 %v1241, 7
        %v1243 = vsub.s32 5, %v1242
        %v1244 = vrot.slane %v1219, %v1243
        %v1245 = vlaneseq
        %v1246 = vshrl.u32 %v1245, 7
        %v1247 = vsub.s32 6, %v1246
        %v1248 = vrot.slane %v1219, %v1247
        %v1249 = vlaneseq
        %v1250 = vshrl.u32 %v1249, 7
        %v1251 = vsub.s32 7, %v1250
        %v1252 = vrot.slane %v1219, %v1251
        %v1261 = vadd.f32 %v1002, %v1224
        %v1262 = vadd.f32 %v1004, %v1228
        %v1263 = vadd.f32 %v1073, %v1232
        %v1264 = vadd.f32 %v1075, %v1236
        %v1265 = vadd.f32 %v1144, %v1240
        %v1266 = vadd.f32 %v1146, %v1244
        %v1267 = vadd.f32 %v1215, %v1248
        %v1268 = vadd.f32 %v1217, %v1252
        %v1269 = vmax.f32 %v1261, %v1263
        %v1270 = vmax.f32 %v1262, %v1264
        %v1271 = vmax.f32 %v1265, %v1267
        %v1272 = vmax.f32 %v1266, %v1268
        %v1273 = vmax.f32 %v1269, %v1271
        %v1274 = vmax.f32 %v1270, %v1272
        %v1275 = vmax.f32 %v1273, 0.0
        %v1276 = vmax.f32 %v1274, 0.0
        %1277 = vst [vmem:[#allocation2] sm:$0x3f] %v1275
        %1278 = vst [vmem:[#allocation2 + $0x8] sm:$0x3f] %v1276
        %v1279 = vld [vmem:[#allocation2] sm:$0xf]
        %v1280 = vld [vmem:[#allocation2 + $0x8] sm:$0xf]
        %v1281 = vld [vmem:[#allocation7] sm:$0xff]
        %v1282 = vld [vmem:[#allocation7 + $0x8] sm:$0xff]
        %v1283 = vld [vmem:[#allocation7 + $0x10] sm:$0xff]
        %v1284 = vld [vmem:[#allocation7 + $0x18] sm:$0xff]
        %v1285 = vld [vmem:[#allocation7 + $0x20] sm:$0xff]
        %v1286 = vld [vmem:[#allocation7 + $0x28] sm:$0xff]
        %v1287 = vld [vmem:[#allocation7 + $0x30] sm:$0xff]
        %v1288 = vld [vmem:[#allocation7 + $0x38] sm:$0xff]
        %v1289 = vld [vmem:[#allocation7 + $0x40] sm:$0xff]
        %v1290 = vld [vmem:[#allocation7 + $0x48] sm:$0xff]
        %v1291 = vld [vmem:[#allocation7 + $0x50] sm:$0xff]
        %v1292 = vld [vmem:[#allocation7 + $0x58] sm:$0xff]
        %v1293 = vld [vmem:[#allocation7 + $0x60] sm:$0xff]
        %v1294 = vld [vmem:[#allocation7 + $0x68] sm:$0xff]
        %v1295 = vld [vmem:[#allocation7 + $0x70] sm:$0xff]
        %v1296 = vld [vmem:[#allocation7 + $0x78] sm:$0xff]
        %v1297 = vld [vmem:[#allocation7 + $0x80] sm:$0xff]
        %v1298 = vld [vmem:[#allocation7 + $0x88] sm:$0xff]
        %v1299 = vld [vmem:[#allocation7 + $0x90] sm:$0xff]
        %v1300 = vld [vmem:[#allocation7 + $0x98] sm:$0xff]
        %v1301 = vld [vmem:[#allocation7 + $0xa0] sm:$0xff]
        %v1302 = vld [vmem:[#allocation7 + $0xa8] sm:$0xff]
        %v1303 = vld [vmem:[#allocation7 + $0xb0] sm:$0xff]
        %v1304 = vld [vmem:[#allocation7 + $0xb8] sm:$0xff]
        %v1305 = vld [vmem:[#allocation7 + $0xc0] sm:$0xff]
        %v1306 = vld [vmem:[#allocation7 + $0xc8] sm:$0xff]
        %v1307 = vld [vmem:[#allocation7 + $0xd0] sm:$0xff]
        %v1308 = vld [vmem:[#allocation7 + $0xd8] sm:$0xff]
        %v1309 = vld [vmem:[#allocation7 + $0xe0] sm:$0xff]
        %v1310 = vld [vmem:[#allocation7 + $0xe8] sm:$0xff]
        %v1311 = vld [vmem:[#allocation7 + $0xf0] sm:$0xff]
        %v1312 = vld [vmem:[#allocation7 + $0xf8] sm:$0xff]
        %v1313 = vld [vmem:[#allocation7 + $0x100] sm:$0xff]
        %v1314 = vld [vmem:[#allocation7 + $0x108] sm:$0xff]
        %v1315 = vld [vmem:[#allocation7 + $0x110] sm:$0xff]
        %v1316 = vld [vmem:[#allocation7 + $0x118] sm:$0xff]
        %v1317 = vld [vmem:[#allocation7 + $0x120] sm:$0xff]
        %v1318 = vld [vmem:[#allocation7 + $0x128] sm:$0xff]
        %v1319 = vld [vmem:[#allocation7 + $0x130] sm:$0xff]
        %v1320 = vld [vmem:[#allocation7 + $0x138] sm:$0xff]
        %v1321 = vld [vmem:[#allocation7 + $0x140] sm:$0xff]
        %v1322 = vld [vmem:[#allocation7 + $0x148] sm:$0xff]
        %v1323 = vld [vmem:[#allocation7 + $0x150] sm:$0xff]
        %v1324 = vld [vmem:[#allocation7 + $0x158] sm:$0xff]
        %v1325 = vld [vmem:[#allocation7 + $0x160] sm:$0xff]
        %v1326 = vld [vmem:[#allocation7 + $0x168] sm:$0xff]
        %v1327 = vld [vmem:[#allocation7 + $0x170] sm:$0xff]
        %v1328 = vld [vmem:[#allocation7 + $0x178] sm:$0xff]
        %v1329 = vld [vmem:[#allocation7 + $0x180] sm:$0xff]
        %v1330 = vld [vmem:[#allocation7 + $0x188] sm:$0xff]
        %v1331 = vld [vmem:[#allocation7 + $0x190] sm:$0xff]
        %v1332 = vld [vmem:[#allocation7 + $0x198] sm:$0xff]
        %v1333 = vld [vmem:[#allocation7 + $0x1a0] sm:$0xff]
        %v1334 = vld [vmem:[#allocation7 + $0x1a8] sm:$0xff]
        %v1335 = vld [vmem:[#allocation7 + $0x1b0] sm:$0xff]
        %v1336 = vld [vmem:[#allocation7 + $0x1b8] sm:$0xff]
        %v1337 = vld [vmem:[#allocation7 + $0x1c0] sm:$0xff]
        %v1338 = vld [vmem:[#allocation7 + $0x1c8] sm:$0xff]
        %v1339 = vld [vmem:[#allocation7 + $0x1d0] sm:$0xff]
        %v1340 = vld [vmem:[#allocation7 + $0x1d8] sm:$0xff]
        %v1341 = vld [vmem:[#allocation7 + $0x1e0] sm:$0xff]
        %v1342 = vld [vmem:[#allocation7 + $0x1e8] sm:$0xff]
        %v1343 = vld [vmem:[#allocation7 + $0x1f0] sm:$0xff]
        %v1344 = vld [vmem:[#allocation7 + $0x1f8] sm:$0xff]
        %v1345 = vld [vmem:[#allocation7 + $0x200] sm:$0xff]
        %v1346 = vld [vmem:[#allocation7 + $0x208] sm:$0xff]
        %v1347 = vld [vmem:[#allocation7 + $0x210] sm:$0xff]
        %v1348 = vld [vmem:[#allocation7 + $0x218] sm:$0xff]
        %v1349 = vld [vmem:[#allocation7 + $0x220] sm:$0xff]
        %v1350 = vld [vmem:[#allocation7 + $0x228] sm:$0xff]
        %v1351 = vld [vmem:[#allocation7 + $0x230] sm:$0xff]
        %v1352 = vld [vmem:[#allocation7 + $0x238] sm:$0xff]
        %v1353 = vld [vmem:[#allocation7 + $0x240] sm:$0xff]
        %v1354 = vld [vmem:[#allocation7 + $0x248] sm:$0xff]
        %v1355 = vld [vmem:[#allocation7 + $0x250] sm:$0xff]
        %v1356 = vld [vmem:[#allocation7 + $0x258] sm:$0xff]
        %v1357 = vld [vmem:[#allocation7 + $0x260] sm:$0xff]
        %v1358 = vld [vmem:[#allocation7 + $0x268] sm:$0xff]
        %v1359 = vld [vmem:[#allocation7 + $0x270] sm:$0xff]
        %v1360 = vld [vmem:[#allocation7 + $0x278] sm:$0xff]
        %v1361 = vld [vmem:[#allocation7 + $0x280] sm:$0xff]
        %v1362 = vld [vmem:[#allocation7 + $0x288] sm:$0xff]
        %v1363 = vld [vmem:[#allocation7 + $0x290] sm:$0xff]
        %v1364 = vld [vmem:[#allocation7 + $0x298] sm:$0xff]
        %v1365 = vld [vmem:[#allocation7 + $0x2a0] sm:$0xff]
        %v1366 = vld [vmem:[#allocation7 + $0x2a8] sm:$0xff]
        %v1367 = vld [vmem:[#allocation7 + $0x2b0] sm:$0xff]
        %v1368 = vld [vmem:[#allocation7 + $0x2b8] sm:$0xff]
        %v1369 = vld [vmem:[#allocation7 + $0x2c0] sm:$0xff]
        %v1370 = vld [vmem:[#allocation7 + $0x2c8] sm:$0xff]
        %v1371 = vld [vmem:[#allocation7 + $0x2d0] sm:$0xff]
        %v1372 = vld [vmem:[#allocation7 + $0x2d8] sm:$0xff]
        %v1373 = vld [vmem:[#allocation7 + $0x2e0] sm:$0xff]
        %v1374 = vld [vmem:[#allocation7 + $0x2e8] sm:$0xff]
        %v1375 = vld [vmem:[#allocation7 + $0x2f0] sm:$0xff]
        %v1376 = vld [vmem:[#allocation7 + $0x2f8] sm:$0xff]
        %v1377 = vld [vmem:[#allocation7 + $0x300] sm:$0xff]
        %v1378 = vld [vmem:[#allocation7 + $0x308] sm:$0xff]
        %v1379 = vld [vmem:[#allocation7 + $0x310] sm:$0xff]
        %v1380 = vld [vmem:[#allocation7 + $0x318] sm:$0xff]
        %v1381 = vld [vmem:[#allocation7 + $0x320] sm:$0xff]
        %v1382 = vld [vmem:[#allocation7 + $0x328] sm:$0xff]
        %v1383 = vld [vmem:[#allocation7 + $0x330] sm:$0xff]
        %v1384 = vld [vmem:[#allocation7 + $0x338] sm:$0xff]
        %v1385 = vld [vmem:[#allocation7 + $0x340] sm:$0xff]
        %v1386 = vld [vmem:[#allocation7 + $0x348] sm:$0xff]
        %v1387 = vld [vmem:[#allocation7 + $0x350] sm:$0xff]
        %v1388 = vld [vmem:[#allocation7 + $0x358] sm:$0xff]
        %v1389 = vld [vmem:[#allocation7 + $0x360] sm:$0xff]
        %v1390 = vld [vmem:[#allocation7 + $0x368] sm:$0xff]
        %v1391 = vld [vmem:[#allocation7 + $0x370] sm:$0xff]
        %v1392 = vld [vmem:[#allocation7 + $0x378] sm:$0xff]
        %v1393 = vld [vmem:[#allocation7 + $0x380] sm:$0xff]
        %v1394 = vld [vmem:[#allocation7 + $0x388] sm:$0xff]
        %v1395 = vld [vmem:[#allocation7 + $0x390] sm:$0xff]
        %v1396 = vld [vmem:[#allocation7 + $0x398] sm:$0xff]
        %v1397 = vld [vmem:[#allocation7 + $0x3a0] sm:$0xff]
        %v1398 = vld [vmem:[#allocation7 + $0x3a8] sm:$0xff]
        %v1399 = vld [vmem:[#allocation7 + $0x3b0] sm:$0xff]
        %v1400 = vld [vmem:[#allocation7 + $0x3b8] sm:$0xff]
        %v1401 = vld [vmem:[#allocation7 + $0x3c0] sm:$0xff]
        %v1402 = vld [vmem:[#allocation7 + $0x3c8] sm:$0xff]
        %v1403 = vld [vmem:[#allocation7 + $0x3d0] sm:$0xff]
        %v1404 = vld [vmem:[#allocation7 + $0x3d8] sm:$0xff]
        %v1405 = vld [vmem:[#allocation7 + $0x3e0] sm:$0xff]
        %v1406 = vld [vmem:[#allocation7 + $0x3e8] sm:$0xff]
        %v1407 = vld [vmem:[#allocation7 + $0x3f0] sm:$0xff]
        %v1408 = vld [vmem:[#allocation7 + $0x3f8] sm:$0xff]
        %v1409 = vld [vmem:[#allocation2] sm:$0x1e]
        %v1410 = vld [vmem:[#allocation2 + $0x8] sm:$0x1e]
        %s1411 = scalar_lea.vmem [#allocation7], 1024
        %v1412 = vld [vmem:[%s1411] sm:$0xff]
        %v1413 = vld [vmem:[%s1411 + $0x8] sm:$0xff]
        %v1414 = vld [vmem:[%s1411 + $0x10] sm:$0xff]
        %v1415 = vld [vmem:[%s1411 + $0x18] sm:$0xff]
        %v1416 = vld [vmem:[%s1411 + $0x20] sm:$0xff]
        %v1417 = vld [vmem:[%s1411 + $0x28] sm:$0xff]
        %v1418 = vld [vmem:[%s1411 + $0x30] sm:$0xff]
        %v1419 = vld [vmem:[%s1411 + $0x38] sm:$0xff]
        %v1420 = vld [vmem:[%s1411 + $0x40] sm:$0xff]
        %v1421 = vld [vmem:[%s1411 + $0x48] sm:$0xff]
        %v1422 = vld [vmem:[%s1411 + $0x50] sm:$0xff]
        %v1423 = vld [vmem:[%s1411 + $0x58] sm:$0xff]
        %v1424 = vld [vmem:[%s1411 + $0x60] sm:$0xff]
        %v1425 = vld [vmem:[%s1411 + $0x68] sm:$0xff]
        %v1426 = vld [vmem:[%s1411 + $0x70] sm:$0xff]
        %v1427 = vld [vmem:[%s1411 + $0x78] sm:$0xff]
        %v1428 = vld [vmem:[%s1411 + $0x80] sm:$0xff]
        %v1429 = vld [vmem:[%s1411 + $0x88] sm:$0xff]
        %v1430 = vld [vmem:[%s1411 + $0x90] sm:$0xff]
        %v1431 = vld [vmem:[%s1411 + $0x98] sm:$0xff]
        %v1432 = vld [vmem:[%s1411 + $0xa0] sm:$0xff]
        %v1433 = vld [vmem:[%s1411 + $0xa8] sm:$0xff]
        %v1434 = vld [vmem:[%s1411 + $0xb0] sm:$0xff]
        %v1435 = vld [vmem:[%s1411 + $0xb8] sm:$0xff]
        %v1436 = vld [vmem:[%s1411 + $0xc0] sm:$0xff]
        %v1437 = vld [vmem:[%s1411 + $0xc8] sm:$0xff]
        %v1438 = vld [vmem:[%s1411 + $0xd0] sm:$0xff]
        %v1439 = vld [vmem:[%s1411 + $0xd8] sm:$0xff]
        %v1440 = vld [vmem:[%s1411 + $0xe0] sm:$0xff]
        %v1441 = vld [vmem:[%s1411 + $0xe8] sm:$0xff]
        %v1442 = vld [vmem:[%s1411 + $0xf0] sm:$0xff]
        %v1443 = vld [vmem:[%s1411 + $0xf8] sm:$0xff]
        %v1444 = vld [vmem:[%s1411 + $0x100] sm:$0xff]
        %v1445 = vld [vmem:[%s1411 + $0x108] sm:$0xff]
        %v1446 = vld [vmem:[%s1411 + $0x110] sm:$0xff]
        %v1447 = vld [vmem:[%s1411 + $0x118] sm:$0xff]
        %v1448 = vld [vmem:[%s1411 + $0x120] sm:$0xff]
        %v1449 = vld [vmem:[%s1411 + $0x128] sm:$0xff]
        %v1450 = vld [vmem:[%s1411 + $0x130] sm:$0xff]
        %v1451 = vld [vmem:[%s1411 + $0x138] sm:$0xff]
        %v1452 = vld [vmem:[%s1411 + $0x140] sm:$0xff]
        %v1453 = vld [vmem:[%s1411 + $0x148] sm:$0xff]
        %v1454 = vld [vmem:[%s1411 + $0x150] sm:$0xff]
        %v1455 = vld [vmem:[%s1411 + $0x158] sm:$0xff]
        %v1456 = vld [vmem:[%s1411 + $0x160] sm:$0xff]
        %v1457 = vld [vmem:[%s1411 + $0x168] sm:$0xff]
        %v1458 = vld [vmem:[%s1411 + $0x170] sm:$0xff]
        %v1459 = vld [vmem:[%s1411 + $0x178] sm:$0xff]
        %v1460 = vld [vmem:[%s1411 + $0x180] sm:$0xff]
        %v1461 = vld [vmem:[%s1411 + $0x188] sm:$0xff]
        %v1462 = vld [vmem:[%s1411 + $0x190] sm:$0xff]
        %v1463 = vld [vmem:[%s1411 + $0x198] sm:$0xff]
        %v1464 = vld [vmem:[%s1411 + $0x1a0] sm:$0xff]
        %v1465 = vld [vmem:[%s1411 + $0x1a8] sm:$0xff]
        %v1466 = vld [vmem:[%s1411 + $0x1b0] sm:$0xff]
        %v1467 = vld [vmem:[%s1411 + $0x1b8] sm:$0xff]
        %v1468 = vld [vmem:[%s1411 + $0x1c0] sm:$0xff]
        %v1469 = vld [vmem:[%s1411 + $0x1c8] sm:$0xff]
        %v1470 = vld [vmem:[%s1411 + $0x1d0] sm:$0xff]
        %v1471 = vld [vmem:[%s1411 + $0x1d8] sm:$0xff]
        %v1472 = vld [vmem:[%s1411 + $0x1e0] sm:$0xff]
        %v1473 = vld [vmem:[%s1411 + $0x1e8] sm:$0xff]
        %v1474 = vld [vmem:[%s1411 + $0x1f0] sm:$0xff]
        %v1475 = vld [vmem:[%s1411 + $0x1f8] sm:$0xff]
        %v1476 = vld [vmem:[%s1411 + $0x200] sm:$0xff]
        %v1477 = vld [vmem:[%s1411 + $0x208] sm:$0xff]
        %v1478 = vld [vmem:[%s1411 + $0x210] sm:$0xff]
        %v1479 = vld [vmem:[%s1411 + $0x218] sm:$0xff]
        %v1480 = vld [vmem:[%s1411 + $0x220] sm:$0xff]
        %v1481 = vld [vmem:[%s1411 + $0x228] sm:$0xff]
        %v1482 = vld [vmem:[%s1411 + $0x230] sm:$0xff]
        %v1483 = vld [vmem:[%s1411 + $0x238] sm:$0xff]
        %v1484 = vld [vmem:[%s1411 + $0x240] sm:$0xff]
        %v1485 = vld [vmem:[%s1411 + $0x248] sm:$0xff]
        %v1486 = vld [vmem:[%s1411 + $0x250] sm:$0xff]
        %v1487 = vld [vmem:[%s1411 + $0x258] sm:$0xff]
        %v1488 = vld [vmem:[%s1411 + $0x260] sm:$0xff]
        %v1489 = vld [vmem:[%s1411 + $0x268] sm:$0xff]
        %v1490 = vld [vmem:[%s1411 + $0x270] sm:$0xff]
        %v1491 = vld [vmem:[%s1411 + $0x278] sm:$0xff]
        %v1492 = vld [vmem:[%s1411 + $0x280] sm:$0xff]
        %v1493 = vld [vmem:[%s1411 + $0x288] sm:$0xff]
        %v1494 = vld [vmem:[%s1411 + $0x290] sm:$0xff]
        %v1495 = vld [vmem:[%s1411 + $0x298] sm:$0xff]
        %v1496 = vld [vmem:[%s1411 + $0x2a0] sm:$0xff]
        %v1497 = vld [vmem:[%s1411 + $0x2a8] sm:$0xff]
        %v1498 = vld [vmem:[%s1411 + $0x2b0] sm:$0xff]
        %v1499 = vld [vmem:[%s1411 + $0x2b8] sm:$0xff]
        %v1500 = vld [vmem:[%s1411 + $0x2c0] sm:$0xff]
        %v1501 = vld [vmem:[%s1411 + $0x2c8] sm:$0xff]
        %v1502 = vld [vmem:[%s1411 + $0x2d0] sm:$0xff]
        %v1503 = vld [vmem:[%s1411 + $0x2d8] sm:$0xff]
        %v1504 = vld [vmem:[%s1411 + $0x2e0] sm:$0xff]
        %v1505 = vld [vmem:[%s1411 + $0x2e8] sm:$0xff]
        %v1506 = vld [vmem:[%s1411 + $0x2f0] sm:$0xff]
        %v1507 = vld [vmem:[%s1411 + $0x2f8] sm:$0xff]
        %v1508 = vld [vmem:[%s1411 + $0x300] sm:$0xff]
        %v1509 = vld [vmem:[%s1411 + $0x308] sm:$0xff]
        %v1510 = vld [vmem:[%s1411 + $0x310] sm:$0xff]
        %v1511 = vld [vmem:[%s1411 + $0x318] sm:$0xff]
        %v1512 = vld [vmem:[%s1411 + $0x320] sm:$0xff]
        %v1513 = vld [vmem:[%s1411 + $0x328] sm:$0xff]
        %v1514 = vld [vmem:[%s1411 + $0x330] sm:$0xff]
        %v1515 = vld [vmem:[%s1411 + $0x338] sm:$0xff]
        %v1516 = vld [vmem:[%s1411 + $0x340] sm:$0xff]
        %v1517 = vld [vmem:[%s1411 + $0x348] sm:$0xff]
        %v1518 = vld [vmem:[%s1411 + $0x350] sm:$0xff]
        %v1519 = vld [vmem:[%s1411 + $0x358] sm:$0xff]
        %v1520 = vld [vmem:[%s1411 + $0x360] sm:$0xff]
        %v1521 = vld [vmem:[%s1411 + $0x368] sm:$0xff]
        %v1522 = vld [vmem:[%s1411 + $0x370] sm:$0xff]
        %v1523 = vld [vmem:[%s1411 + $0x378] sm:$0xff]
        %v1524 = vld [vmem:[%s1411 + $0x380] sm:$0xff]
        %v1525 = vld [vmem:[%s1411 + $0x388] sm:$0xff]
        %v1526 = vld [vmem:[%s1411 + $0x390] sm:$0xff]
        %v1527 = vld [vmem:[%s1411 + $0x398] sm:$0xff]
        %v1528 = vld [vmem:[%s1411 + $0x3a0] sm:$0xff]
        %v1529 = vld [vmem:[%s1411 + $0x3a8] sm:$0xff]
        %v1530 = vld [vmem:[%s1411 + $0x3b0] sm:$0xff]
        %v1531 = vld [vmem:[%s1411 + $0x3b8] sm:$0xff]
        %v1532 = vld [vmem:[%s1411 + $0x3c0] sm:$0xff]
        %v1533 = vld [vmem:[%s1411 + $0x3c8] sm:$0xff]
        %v1534 = vld [vmem:[%s1411 + $0x3d0] sm:$0xff]
        %v1535 = vld [vmem:[%s1411 + $0x3d8] sm:$0xff]
        %v1536 = vld [vmem:[%s1411 + $0x3e0] sm:$0xff]
        %v1537 = vld [vmem:[%s1411 + $0x3e8] sm:$0xff]
        %v1538 = vld [vmem:[%s1411 + $0x3f0] sm:$0xff]
        %v1539 = vld [vmem:[%s1411 + $0x3f8] sm:$0xff]
        %v1542 = vrot.slane %v1409, 1
        %v1543 = vrot.slane %v1410, 1
        %1546 = vmatprep.subr.mxu0 %v1413
        %1547 = vmatpush1.msra.mxu0 %v1412
        %1548 = vmatprep.subr.mxu0 %v1417
        %1549 = vmatpush1.msra.mxu0 %v1416
        %1550 = vmatprep.subr.mxu0 %v1421
        %1551 = vmatpush1.msra.mxu0 %v1420
        %1552 = vmatprep.subr.mxu0 %v1425
        %1553 = vmatpush1.msra.mxu0 %v1424
        %1554 = vmatprep.subr.mxu0 %v1429
        %1555 = vmatpush1.msra.mxu0 %v1428
        %1556 = vmatprep.subr.mxu0 %v1433
        %1557 = vmatpush1.msra.mxu0 %v1432
        %1558 = vmatprep.subr.mxu0 %v1437
        %1559 = vmatpush1.msra.mxu0 %v1436
        %1560 = vmatprep.subr.mxu0 %v1441
        %1561 = vmatpush1.msra.mxu0 %v1440
        %1562 = vmatprep.subr.mxu0 %v1445
        %1563 = vmatpush1.msra.mxu0 %v1444
        %1564 = vmatprep.subr.mxu0 %v1449
        %1565 = vmatpush1.msra.mxu0 %v1448
        %1566 = vmatprep.subr.mxu0 %v1453
        %1567 = vmatpush1.msra.mxu0 %v1452
        %1568 = vmatprep.subr.mxu0 %v1457
        %1569 = vmatpush1.msra.mxu0 %v1456
        %1570 = vmatprep.subr.mxu0 %v1461
        %1571 = vmatpush1.msra.mxu0 %v1460
        %1572 = vmatprep.subr.mxu0 %v1465
        %1573 = vmatpush1.msra.mxu0 %v1464
        %1574 = vmatprep.subr.mxu0 %v1469
        %1575 = vmatpush1.msra.mxu0 %v1468
        %1576 = vmatprep.subr.mxu0 %v1473
        %1577 = vmatpush1.msra.mxu0 %v1472
        %1578 = vmatprep.subr.mxu0 %v1477
        %1579 = vmatpush1.msra.mxu0 %v1476
        %1580 = vmatprep.subr.mxu0 %v1481
        %1581 = vmatpush1.msra.mxu0 %v1480
        %1582 = vmatprep.subr.mxu0 %v1485
        %1583 = vmatpush1.msra.mxu0 %v1484
        %1584 = vmatprep.subr.mxu0 %v1489
        %1585 = vmatpush1.msra.mxu0 %v1488
        %1586 = vmatprep.subr.mxu0 %v1493
        %1587 = vmatpush1.msra.mxu0 %v1492
        %1588 = vmatprep.subr.mxu0 %v1497
        %1589 = vmatpush1.msra.mxu0 %v1496
        %1590 = vmatprep.subr.mxu0 %v1501
        %1591 = vmatpush1.msra.mxu0 %v1500
        %1592 = vmatprep.subr.mxu0 %v1505
        %1593 = vmatpush1.msra.mxu0 %v1504
        %1594 = vmatprep.subr.mxu0 %v1509
        %1595 = vmatpush1.msra.mxu0 %v1508
        %1596 = vmatprep.subr.mxu0 %v1513
        %1597 = vmatpush1.msra.mxu0 %v1512
        %1598 = vmatprep.subr.mxu0 %v1517
        %1599 = vmatpush1.msra.mxu0 %v1516
        %1600 = vmatprep.subr.mxu0 %v1521
        %1601 = vmatpush1.msra.mxu0 %v1520
        %1602 = vmatprep.subr.mxu0 %v1525
        %1603 = vmatpush1.msra.mxu0 %v1524
        %1604 = vmatprep.subr.mxu0 %v1529
        %1605 = vmatpush1.msra.mxu0 %v1528
        %1606 = vmatprep.subr.mxu0 %v1533
        %1607 = vmatpush1.msra.mxu0 %v1532
        %1608 = vmatprep.subr.mxu0 %v1537
        %1609 = vmatpush1.msra.mxu0 %v1536
        %1610 = vmatprep.mubr.f32.mxu0 %v1543
        %1611 = vmatmul.mubr.f32.gmra.mrb[0].mxu0 %v1542
        %v1612 = vpop.f32.mrb[0].mxu0
        %v1613 = vadd.f32 0.0, %v1612
        %v1614 = vpop.f32.mrb[0].mxu0
        %v1615 = vadd.f32 0.0, %v1614
        %1616 = vdwg.mxu0
        %1617 = vmatprep.subr.mxu0 %v1415
        %1618 = vmatpush1.msra.mxu0 %v1414
        %1619 = vmatprep.subr.mxu0 %v1419
        %1620 = vmatpush1.msra.mxu0 %v1418
        %1621 = vmatprep.subr.mxu0 %v1423
        %1622 = vmatpush1.msra.mxu0 %v1422
        %1623 = vmatprep.subr.mxu0 %v1427
        %1624 = vmatpush1.msra.mxu0 %v1426
        %1625 = vmatprep.subr.mxu0 %v1431
        %1626 = vmatpush1.msra.mxu0 %v1430
        %1627 = vmatprep.subr.mxu0 %v1435
        %1628 = vmatpush1.msra.mxu0 %v1434
        %1629 = vmatprep.subr.mxu0 %v1439
        %1630 = vmatpush1.msra.mxu0 %v1438
        %1631 = vmatprep.subr.mxu0 %v1443
        %1632 = vmatpush1.msra.mxu0 %v1442
        %1633 = vmatprep.subr.mxu0 %v1447
        %1634 = vmatpush1.msra.mxu0 %v1446
        %1635 = vmatprep.subr.mxu0 %v1451
        %1636 = vmatpush1.msra.mxu0 %v1450
        %1637 = vmatprep.subr.mxu0 %v1455
        %1638 = vmatpush1.msra.mxu0 %v1454
        %1639 = vmatprep.subr.mxu0 %v1459
        %1640 = vmatpush1.msra.mxu0 %v1458
        %1641 = vmatprep.subr.mxu0 %v1463
        %1642 = vmatpush1.msra.mxu0 %v1462
        %1643 = vmatprep.subr.mxu0 %v1467
        %1644 = vmatpush1.msra.mxu0 %v1466
        %1645 = vmatprep.subr.mxu0 %v1471
        %1646 = vmatpush1.msra.mxu0 %v1470
        %1647 = vmatprep.subr.mxu0 %v1475
        %1648 = vmatpush1.msra.mxu0 %v1474
        %1649 = vmatprep.subr.mxu0 %v1479
        %1650 = vmatpush1.msra.mxu0 %v1478
        %1651 = vmatprep.subr.mxu0 %v1483
        %1652 = vmatpush1.msra.mxu0 %v1482
        %1653 = vmatprep.subr.mxu0 %v1487
        %1654 = vmatpush1.msra.mxu0 %v1486
        %1655 = vmatprep.subr.mxu0 %v1491
        %1656 = vmatpush1.msra.mxu0 %v1490
        %1657 = vmatprep.subr.mxu0 %v1495
        %1658 = vmatpush1.msra.mxu0 %v1494
        %1659 = vmatprep.subr.mxu0 %v1499
        %1660 = vmatpush1.msra.mxu0 %v1498
        %1661 = vmatprep.subr.mxu0 %v1503
        %1662 = vmatpush1.msra.mxu0 %v1502
        %1663 = vmatprep.subr.mxu0 %v1507
        %1664 = vmatpush1.msra.mxu0 %v1506
        %1665 = vmatprep.subr.mxu0 %v1511
        %1666 = vmatpush1.msra.mxu0 %v1510
        %1667 = vmatprep.subr.mxu0 %v1515
        %1668 = vmatpush1.msra.mxu0 %v1514
        %1669 = vmatprep.subr.mxu0 %v1519
        %1670 = vmatpush1.msra.mxu0 %v1518
        %1671 = vmatprep.subr.mxu0 %v1523
        %1672 = vmatpush1.msra.mxu0 %v1522
        %1673 = vmatprep.subr.mxu0 %v1527
        %1674 = vmatpush1.msra.mxu0 %v1526
        %1675 = vmatprep.subr.mxu0 %v1531
        %1676 = vmatpush1.msra.mxu0 %v1530
        %1677 = vmatprep.subr.mxu0 %v1535
        %1678 = vmatpush1.msra.mxu0 %v1534
        %1679 = vmatprep.subr.mxu0 %v1539
        %1680 = vmatpush1.msra.mxu0 %v1538
        %1681 = vmatprep.mubr.f32.mxu0 %v1543
        %1682 = vmatmul.mubr.f32.gmra.mrb[0].mxu0 %v1542
        %v1683 = vpop.f32.mrb[0].mxu0
        %v1684 = vadd.f32 0.0, %v1683
        %v1685 = vpop.f32.mrb[0].mxu0
        %v1686 = vadd.f32 0.0, %v1685
        %1687 = vdwg.mxu0
        %1688 = vmatprep.subr.mxu0 %v1282
        %1689 = vmatpush1.msra.mxu0 %v1281
        %1690 = vmatprep.subr.mxu0 %v1286
        %1691 = vmatpush1.msra.mxu0 %v1285
        %1692 = vmatprep.subr.mxu0 %v1290
        %1693 = vmatpush1.msra.mxu0 %v1289
        %1694 = vmatprep.subr.mxu0 %v1294
        %1695 = vmatpush1.msra.mxu0 %v1293
        %1696 = vmatprep.subr.mxu0 %v1298
        %1697 = vmatpush1.msra.mxu0 %v1297
        %1698 = vmatprep.subr.mxu0 %v1302
        %1699 = vmatpush1.msra.mxu0 %v1301
        %1700 = vmatprep.subr.mxu0 %v1306
        %1701 = vmatpush1.msra.mxu0 %v1305
        %1702 = vmatprep.subr.mxu0 %v1310
        %1703 = vmatpush1.msra.mxu0 %v1309
        %1704 = vmatprep.subr.mxu0 %v1314
        %1705 = vmatpush1.msra.mxu0 %v1313
        %1706 = vmatprep.subr.mxu0 %v1318
        %1707 = vmatpush1.msra.mxu0 %v1317
        %1708 = vmatprep.subr.mxu0 %v1322
        %1709 = vmatpush1.msra.mxu0 %v1321
        %1710 = vmatprep.subr.mxu0 %v1326
        %1711 = vmatpush1.msra.mxu0 %v1325
        %1712 = vmatprep.subr.mxu0 %v1330
        %1713 = vmatpush1.msra.mxu0 %v1329
        %1714 = vmatprep.subr.mxu0 %v1334
        %1715 = vmatpush1.msra.mxu0 %v1333
        %1716 = vmatprep.subr.mxu0 %v1338
        %1717 = vmatpush1.msra.mxu0 %v1337
        %1718 = vmatprep.subr.mxu0 %v1342
        %1719 = vmatpush1.msra.mxu0 %v1341
        %1720 = vmatprep.subr.mxu0 %v1346
        %1721 = vmatpush1.msra.mxu0 %v1345
        %1722 = vmatprep.subr.mxu0 %v1350
        %1723 = vmatpush1.msra.mxu0 %v1349
        %1724 = vmatprep.subr.mxu0 %v1354
        %1725 = vmatpush1.msra.mxu0 %v1353
        %1726 = vmatprep.subr.mxu0 %v1358
        %1727 = vmatpush1.msra.mxu0 %v1357
        %1728 = vmatprep.subr.mxu0 %v1362
        %1729 = vmatpush1.msra.mxu0 %v1361
        %1730 = vmatprep.subr.mxu0 %v1366
        %1731 = vmatpush1.msra.mxu0 %v1365
        %1732 = vmatprep.subr.mxu0 %v1370
        %1733 = vmatpush1.msra.mxu0 %v1369
        %1734 = vmatprep.subr.mxu0 %v1374
        %1735 = vmatpush1.msra.mxu0 %v1373
        %1736 = vmatprep.subr.mxu0 %v1378
        %1737 = vmatpush1.msra.mxu0 %v1377
        %1738 = vmatprep.subr.mxu0 %v1382
        %1739 = vmatpush1.msra.mxu0 %v1381
        %1740 = vmatprep.subr.mxu0 %v1386
        %1741 = vmatpush1.msra.mxu0 %v1385
        %1742 = vmatprep.subr.mxu0 %v1390
        %1743 = vmatpush1.msra.mxu0 %v1389
        %1744 = vmatprep.subr.mxu0 %v1394
        %1745 = vmatpush1.msra.mxu0 %v1393
        %1746 = vmatprep.subr.mxu0 %v1398
        %1747 = vmatpush1.msra.mxu0 %v1397
        %1748 = vmatprep.subr.mxu0 %v1402
        %1749 = vmatpush1.msra.mxu0 %v1401
        %1750 = vmatprep.subr.mxu0 %v1406
        %1751 = vmatpush1.msra.mxu0 %v1405
        %1752 = vmatprep.mubr.f32.mxu0 %v1280
        %1753 = vmatmul.mubr.f32.gmra.mrb[0].mxu0 %v1279
        %v1754 = vpop.f32.mrb[0].mxu0
        %v1755 = vadd.f32 %v1613, %v1754
        %v1756 = vpop.f32.mrb[0].mxu0
        %v1757 = vadd.f32 %v1615, %v1756
        %1758 = vdwg.mxu0
        %1759 = vmatprep.subr.mxu0 %v1284
        %1760 = vmatpush1.msra.mxu0 %v1283
        %1761 = vmatprep.subr.mxu0 %v1288
        %1762 = vmatpush1.msra.mxu0 %v1287
        %1763 = vmatprep.subr.mxu0 %v1292
        %1764 = vmatpush1.msra.mxu0 %v1291
        %1765 = vmatprep.subr.mxu0 %v1296
        %1766 = vmatpush1.msra.mxu0 %v1295
        %1767 = vmatprep.subr.mxu0 %v1300
        %1768 = vmatpush1.msra.mxu0 %v1299
        %1769 = vmatprep.subr.mxu0 %v1304
        %1770 = vmatpush1.msra.mxu0 %v1303
        %1771 = vmatprep.subr.mxu0 %v1308
        %1772 = vmatpush1.msra.mxu0 %v1307
        %1773 = vmatprep.subr.mxu0 %v1312
        %1774 = vmatpush1.msra.mxu0 %v1311
        %1775 = vmatprep.subr.mxu0 %v1316
        %1776 = vmatpush1.msra.mxu0 %v1315
        %1777 = vmatprep.subr.mxu0 %v1320
        %1778 = vmatpush1.msra.mxu0 %v1319
        %1779 = vmatprep.subr.mxu0 %v1324
        %1780 = vmatpush1.msra.mxu0 %v1323
        %1781 = vmatprep.subr.mxu0 %v1328
        %1782 = vmatpush1.msra.mxu0 %v1327
        %1783 = vmatprep.subr.mxu0 %v1332
        %1784 = vmatpush1.msra.mxu0 %v1331
        %1785 = vmatprep.subr.mxu0 %v1336
        %1786 = vmatpush1.msra.mxu0 %v1335
        %1787 = vmatprep.subr.mxu0 %v1340
        %1788 = vmatpush1.msra.mxu0 %v1339
        %1789 = vmatprep.subr.mxu0 %v1344
        %1790 = vmatpush1.msra.mxu0 %v1343
        %1791 = vmatprep.subr.mxu0 %v1348
        %1792 = vmatpush1.msra.mxu0 %v1347
        %1793 = vmatprep.subr.mxu0 %v1352
        %1794 = vmatpush1.msra.mxu0 %v1351
        %1795 = vmatprep.subr.mxu0 %v1356
        %1796 = vmatpush1.msra.mxu0 %v1355
        %1797 = vmatprep.subr.mxu0 %v1360
        %1798 = vmatpush1.msra.mxu0 %v1359
        %1799 = vmatprep.subr.mxu0 %v1364
        %1800 = vmatpush1.msra.mxu0 %v1363
        %1801 = vmatprep.subr.mxu0 %v1368
        %1802 = vmatpush1.msra.mxu0 %v1367
        %1803 = vmatprep.subr.mxu0 %v1372
        %1804 = vmatpush1.msra.mxu0 %v1371
        %1805 = vmatprep.subr.mxu0 %v1376
        %1806 = vmatpush1.msra.mxu0 %v1375
        %1807 = vmatprep.subr.mxu0 %v1380
        %1808 = vmatpush1.msra.mxu0 %v1379
        %1809 = vmatprep.subr.mxu0 %v1384
        %1810 = vmatpush1.msra.mxu0 %v1383
        %1811 = vmatprep.subr.mxu0 %v1388
        %1812 = vmatpush1.msra.mxu0 %v1387
        %1813 = vmatprep.subr.mxu0 %v1392
        %1814 = vmatpush1.msra.mxu0 %v1391
        %1815 = vmatprep.subr.mxu0 %v1396
        %1816 = vmatpush1.msra.mxu0 %v1395
        %1817 = vmatprep.subr.mxu0 %v1400
        %1818 = vmatpush1.msra.mxu0 %v1399
        %1819 = vmatprep.subr.mxu0 %v1404
        %1820 = vmatpush1.msra.mxu0 %v1403
        %1821 = vmatprep.subr.mxu0 %v1408
        %1822 = vmatpush1.msra.mxu0 %v1407
        %1823 = vmatprep.mubr.f32.mxu0 %v1280
        %1824 = vmatmul.mubr.f32.gmra.mrb[0].mxu0 %v1279
        %v1825 = vpop.f32.mrb[0].mxu0
        %v1826 = vadd.f32 %v1684, %v1825
        %v1827 = vpop.f32.mrb[0].mxu0
        %v1828 = vadd.f32 %v1686, %v1827
        %1829 = vdwg.mxu0
        %v1830 = vld [vmem:[#allocation2] sm:$0x3c]
        %v1831 = vld [vmem:[#allocation2 + $0x8] sm:$0x3c]
        %s1832 = scalar_lea.vmem [#allocation7], 2048
        %v1833 = vld [vmem:[%s1832] sm:$0xff]
        %v1834 = vld [vmem:[%s1832 + $0x8] sm:$0xff]
        %v1835 = vld [vmem:[%s1832 + $0x10] sm:$0xff]
        %v1836 = vld [vmem:[%s1832 + $0x18] sm:$0xff]
        %v1837 = vld [vmem:[%s1832 + $0x20] sm:$0xff]
        %v1838 = vld [vmem:[%s1832 + $0x28] sm:$0xff]
        %v1839 = vld [vmem:[%s1832 + $0x30] sm:$0xff]
        %v1840 = vld [vmem:[%s1832 + $0x38] sm:$0xff]
        %v1841 = vld [vmem:[%s1832 + $0x40] sm:$0xff]
        %v1842 = vld [vmem:[%s1832 + $0x48] sm:$0xff]
        %v1843 = vld [vmem:[%s1832 + $0x50] sm:$0xff]
        %v1844 = vld [vmem:[%s1832 + $0x58] sm:$0xff]
        %v1845 = vld [vmem:[%s1832 + $0x60] sm:$0xff]
        %v1846 = vld [vmem:[%s1832 + $0x68] sm:$0xff]
        %v1847 = vld [vmem:[%s1832 + $0x70] sm:$0xff]
        %v1848 = vld [vmem:[%s1832 + $0x78] sm:$0xff]
        %v1849 = vld [vmem:[%s1832 + $0x80] sm:$0xff]
        %v1850 = vld [vmem:[%s1832 + $0x88] sm:$0xff]
        %v1851 = vld [vmem:[%s1832 + $0x90] sm:$0xff]
        %v1852 = vld [vmem:[%s1832 + $0x98] sm:$0xff]
        %v1853 = vld [vmem:[%s1832 + $0xa0] sm:$0xff]
        %v1854 = vld [vmem:[%s1832 + $0xa8] sm:$0xff]
        %v1855 = vld [vmem:[%s1832 + $0xb0] sm:$0xff]
        %v1856 = vld [vmem:[%s1832 + $0xb8] sm:$0xff]
        %v1857 = vld [vmem:[%s1832 + $0xc0] sm:$0xff]
        %v1858 = vld [vmem:[%s1832 + $0xc8] sm:$0xff]
        %v1859 = vld [vmem:[%s1832 + $0xd0] sm:$0xff]
        %v1860 = vld [vmem:[%s1832 + $0xd8] sm:$0xff]
        %v1861 = vld [vmem:[%s1832 + $0xe0] sm:$0xff]
        %v1862 = vld [vmem:[%s1832 + $0xe8] sm:$0xff]
        %v1863 = vld [vmem:[%s1832 + $0xf0] sm:$0xff]
        %v1864 = vld [vmem:[%s1832 + $0xf8] sm:$0xff]
        %v1865 = vld [vmem:[%s1832 + $0x100] sm:$0xff]
        %v1866 = vld [vmem:[%s1832 + $0x108] sm:$0xff]
        %v1867 = vld [vmem:[%s1832 + $0x110] sm:$0xff]
        %v1868 = vld [vmem:[%s1832 + $0x118] sm:$0xff]
        %v1869 = vld [vmem:[%s1832 + $0x120] sm:$0xff]
        %v1870 = vld [vmem:[%s1832 + $0x128] sm:$0xff]
        %v1871 = vld [vmem:[%s1832 + $0x130] sm:$0xff]
        %v1872 = vld [vmem:[%s1832 + $0x138] sm:$0xff]
        %v1873 = vld [vmem:[%s1832 + $0x140] sm:$0xff]
        %v1874 = vld [vmem:[%s1832 + $0x148] sm:$0xff]
        %v1875 = vld [vmem:[%s1832 + $0x150] sm:$0xff]
        %v1876 = vld [vmem:[%s1832 + $0x158] sm:$0xff]
        %v1877 = vld [vmem:[%s1832 + $0x160] sm:$0xff]
        %v1878 = vld [vmem:[%s1832 + $0x168] sm:$0xff]
        %v1879 = vld [vmem:[%s1832 + $0x170] sm:$0xff]
        %v1880 = vld [vmem:[%s1832 + $0x178] sm:$0xff]
        %v1881 = vld [vmem:[%s1832 + $0x180] sm:$0xff]
        %v1882 = vld [vmem:[%s1832 + $0x188] sm:$0xff]
        %v1883 = vld [vmem:[%s1832 + $0x190] sm:$0xff]
        %v1884 = vld [vmem:[%s1832 + $0x198] sm:$0xff]
        %v1885 = vld [vmem:[%s1832 + $0x1a0] sm:$0xff]
        %v1886 = vld [vmem:[%s1832 + $0x1a8] sm:$0xff]
        %v1887 = vld [vmem:[%s1832 + $0x1b0] sm:$0xff]
        %v1888 = vld [vmem:[%s1832 + $0x1b8] sm:$0xff]
        %v1889 = vld [vmem:[%s1832 + $0x1c0] sm:$0xff]
        %v1890 = vld [vmem:[%s1832 + $0x1c8] sm:$0xff]
        %v1891 = vld [vmem:[%s1832 + $0x1d0] sm:$0xff]
        %v1892 = vld [vmem:[%s1832 + $0x1d8] sm:$0xff]
        %v1893 = vld [vmem:[%s1832 + $0x1e0] sm:$0xff]
        %v1894 = vld [vmem:[%s1832 + $0x1e8] sm:$0xff]
        %v1895 = vld [vmem:[%s1832 + $0x1f0] sm:$0xff]
        %v1896 = vld [vmem:[%s1832 + $0x1f8] sm:$0xff]
        %v1897 = vld [vmem:[%s1832 + $0x200] sm:$0xff]
        %v1898 = vld [vmem:[%s1832 + $0x208] sm:$0xff]
        %v1899 = vld [vmem:[%s1832 + $0x210] sm:$0xff]
        %v1900 = vld [vmem:[%s1832 + $0x218] sm:$0xff]
        %v1901 = vld [vmem:[%s1832 + $0x220] sm:$0xff]
        %v1902 = vld [vmem:[%s1832 + $0x228] sm:$0xff]
        %v1903 = vld [vmem:[%s1832 + $0x230] sm:$0xff]
        %v1904 = vld [vmem:[%s1832 + $0x238] sm:$0xff]
        %v1905 = vld [vmem:[%s1832 + $0x240] sm:$0xff]
        %v1906 = vld [vmem:[%s1832 + $0x248] sm:$0xff]
        %v1907 = vld [vmem:[%s1832 + $0x250] sm:$0xff]
        %v1908 = vld [vmem:[%s1832 + $0x258] sm:$0xff]
        %v1909 = vld [vmem:[%s1832 + $0x260] sm:$0xff]
        %v1910 = vld [vmem:[%s1832 + $0x268] sm:$0xff]
        %v1911 = vld [vmem:[%s1832 + $0x270] sm:$0xff]
        %v1912 = vld [vmem:[%s1832 + $0x278] sm:$0xff]
        %v1913 = vld [vmem:[%s1832 + $0x280] sm:$0xff]
        %v1914 = vld [vmem:[%s1832 + $0x288] sm:$0xff]
        %v1915 = vld [vmem:[%s1832 + $0x290] sm:$0xff]
        %v1916 = vld [vmem:[%s1832 + $0x298] sm:$0xff]
        %v1917 = vld [vmem:[%s1832 + $0x2a0] sm:$0xff]
        %v1918 = vld [vmem:[%s1832 + $0x2a8] sm:$0xff]
        %v1919 = vld [vmem:[%s1832 + $0x2b0] sm:$0xff]
        %v1920 = vld [vmem:[%s1832 + $0x2b8] sm:$0xff]
        %v1921 = vld [vmem:[%s1832 + $0x2c0] sm:$0xff]
        %v1922 = vld [vmem:[%s1832 + $0x2c8] sm:$0xff]
        %v1923 = vld [vmem:[%s1832 + $0x2d0] sm:$0xff]
        %v1924 = vld [vmem:[%s1832 + $0x2d8] sm:$0xff]
        %v1925 = vld [vmem:[%s1832 + $0x2e0] sm:$0xff]
        %v1926 = vld [vmem:[%s1832 + $0x2e8] sm:$0xff]
        %v1927 = vld [vmem:[%s1832 + $0x2f0] sm:$0xff]
        %v1928 = vld [vmem:[%s1832 + $0x2f8] sm:$0xff]
        %v1929 = vld [vmem:[%s1832 + $0x300] sm:$0xff]
        %v1930 = vld [vmem:[%s1832 + $0x308] sm:$0xff]
        %v1931 = vld [vmem:[%s1832 + $0x310] sm:$0xff]
        %v1932 = vld [vmem:[%s1832 + $0x318] sm:$0xff]
        %v1933 = vld [vmem:[%s1832 + $0x320] sm:$0xff]
        %v1934 = vld [vmem:[%s1832 + $0x328] sm:$0xff]
        %v1935 = vld [vmem:[%s1832 + $0x330] sm:$0xff]
        %v1936 = vld [vmem:[%s1832 + $0x338] sm:$0xff]
        %v1937 = vld [vmem:[%s1832 + $0x340] sm:$0xff]
        %v1938 = vld [vmem:[%s1832 + $0x348] sm:$0xff]
        %v1939 = vld [vmem:[%s1832 + $0x350] sm:$0xff]
        %v1940 = vld [vmem:[%s1832 + $0x358] sm:$0xff]
        %v1941 = vld [vmem:[%s1832 + $0x360] sm:$0xff]
        %v1942 = vld [vmem:[%s1832 + $0x368] sm:$0xff]
        %v1943 = vld [vmem:[%s1832 + $0x370] sm:$0xff]
        %v1944 = vld [vmem:[%s1832 + $0x378] sm:$0xff]
        %v1945 = vld [vmem:[%s1832 + $0x380] sm:$0xff]
        %v1946 = vld [vmem:[%s1832 + $0x388] sm:$0xff]
        %v1947 = vld [vmem:[%s1832 + $0x390] sm:$0xff]
        %v1948 = vld [vmem:[%s1832 + $0x398] sm:$0xff]
        %v1949 = vld [vmem:[%s1832 + $0x3a0] sm:$0xff]
        %v1950 = vld [vmem:[%s1832 + $0x3a8] sm:$0xff]
        %v1951 = vld [vmem:[%s1832 + $0x3b0] sm:$0xff]
        %v1952 = vld [vmem:[%s1832 + $0x3b8] sm:$0xff]
        %v1953 = vld [vmem:[%s1832 + $0x3c0] sm:$0xff]
        %v1954 = vld [vmem:[%s1832 + $0x3c8] sm:$0xff]
        %v1955 = vld [vmem:[%s1832 + $0x3d0] sm:$0xff]
        %v1956 = vld [vmem:[%s1832 + $0x3d8] sm:$0xff]
        %v1957 = vld [vmem:[%s1832 + $0x3e0] sm:$0xff]
        %v1958 = vld [vmem:[%s1832 + $0x3e8] sm:$0xff]
        %v1959 = vld [vmem:[%s1832 + $0x3f0] sm:$0xff]
        %v1960 = vld [vmem:[%s1832 + $0x3f8] sm:$0xff]
        %v1963 = vrot.slane %v1830, 2
        %v1964 = vrot.slane %v1831, 2
        %1967 = vmatprep.subr.mxu0 %v1834
        %1968 = vmatpush1.msra.mxu0 %v1833
        %1969 = vmatprep.subr.mxu0 %v1838
        %1970 = vmatpush1.msra.mxu0 %v1837
        %1971 = vmatprep.subr.mxu0 %v1842
        %1972 = vmatpush1.msra.mxu0 %v1841
        %1973 = vmatprep.subr.mxu0 %v1846
        %1974 = vmatpush1.msra.mxu0 %v1845
        %1975 = vmatprep.subr.mxu0 %v1850
        %1976 = vmatpush1.msra.mxu0 %v1849
        %1977 = vmatprep.subr.mxu0 %v1854
        %1978 = vmatpush1.msra.mxu0 %v1853
        %1979 = vmatprep.subr.mxu0 %v1858
        %1980 = vmatpush1.msra.mxu0 %v1857
        %1981 = vmatprep.subr.mxu0 %v1862
        %1982 = vmatpush1.msra.mxu0 %v1861
        %1983 = vmatprep.subr.mxu0 %v1866
        %1984 = vmatpush1.msra.mxu0 %v1865
        %1985 = vmatprep.subr.mxu0 %v1870
        %1986 = vmatpush1.msra.mxu0 %v1869
        %1987 = vmatprep.subr.mxu0 %v1874
        %1988 = vmatpush1.msra.mxu0 %v1873
        %1989 = vmatprep.subr.mxu0 %v1878
        %1990 = vmatpush1.msra.mxu0 %v1877
        %1991 = vmatprep.subr.mxu0 %v1882
        %1992 = vmatpush1.msra.mxu0 %v1881
        %1993 = vmatprep.subr.mxu0 %v1886
        %1994 = vmatpush1.msra.mxu0 %v1885
        %1995 = vmatprep.subr.mxu0 %v1890
        %1996 = vmatpush1.msra.mxu0 %v1889
        %1997 = vmatprep.subr.mxu0 %v1894
        %1998 = vmatpush1.msra.mxu0 %v1893
        %1999 = vmatprep.subr.mxu0 %v1898
        %2000 = vmatpush1.msra.mxu0 %v1897
        %2001 = vmatprep.subr.mxu0 %v1902
        %2002 = vmatpush1.msra.mxu0 %v1901
        %2003 = vmatprep.subr.mxu0 %v1906
        %2004 = vmatpush1.msra.mxu0 %v1905
        %2005 = vmatprep.subr.mxu0 %v1910
        %2006 = vmatpush1.msra.mxu0 %v1909
        %2007 = vmatprep.subr.mxu0 %v1914
        %2008 = vmatpush1.msra.mxu0 %v1913
        %2009 = vmatprep.subr.mxu0 %v1918
        %2010 = vmatpush1.msra.mxu0 %v1917
        %2011 = vmatprep.subr.mxu0 %v1922
        %2012 = vmatpush1.msra.mxu0 %v1921
        %2013 = vmatprep.subr.mxu0 %v1926
        %2014 = vmatpush1.msra.mxu0 %v1925
        %2015 = vmatprep.subr.mxu0 %v1930
        %2016 = vmatpush1.msra.mxu0 %v1929
        %2017 = vmatprep.subr.mxu0 %v1934
        %2018 = vmatpush1.msra.mxu0 %v1933
        %2019 = vmatprep.subr.mxu0 %v1938
        %2020 = vmatpush1.msra.mxu0 %v1937
        %2021 = vmatprep.subr.mxu0 %v1942
        %2022 = vmatpush1.msra.mxu0 %v1941
        %2023 = vmatprep.subr.mxu0 %v1946
        %2024 = vmatpush1.msra.mxu0 %v1945
        %2025 = vmatprep.subr.mxu0 %v1950
        %2026 = vmatpush1.msra.mxu0 %v1949
        %2027 = vmatprep.subr.mxu0 %v1954
        %2028 = vmatpush1.msra.mxu0 %v1953
        %2029 = vmatprep.subr.mxu0 %v1958
        %2030 = vmatpush1.msra.mxu0 %v1957
        %2031 = vmatprep.mubr.f32.mxu0 %v1964
        %2032 = vmatmul.mubr.f32.gmra.mrb[0].mxu0 %v1963
        %v2033 = vpop.f32.mrb[0].mxu0
        %v2034 = vadd.f32 0.0, %v2033
        %v2035 = vpop.f32.mrb[0].mxu0
        %v2036 = vadd.f32 0.0, %v2035
        %2037 = vdwg.mxu0
        %2038 = vmatprep.subr.mxu0 %v1836
        %2039 = vmatpush1.msra.mxu0 %v1835
        %2040 = vmatprep.subr.mxu0 %v1840
        %2041 = vmatpush1.msra.mxu0 %v1839
        %2042 = vmatprep.subr.mxu0 %v1844
        %2043 = vmatpush1.msra.mxu0 %v1843
        %2044 = vmatprep.subr.mxu0 %v1848
        %2045 = vmatpush1.msra.mxu0 %v1847
        %2046 = vmatprep.subr.mxu0 %v1852
        %2047 = vmatpush1.msra.mxu0 %v1851
        %2048 = vmatprep.subr.mxu0 %v1856
        %2049 = vmatpush1.msra.mxu0 %v1855
        %2050 = vmatprep.subr.mxu0 %v1860
        %2051 = vmatpush1.msra.mxu0 %v1859
        %2052 = vmatprep.subr.mxu0 %v1864
        %2053 = vmatpush1.msra.mxu0 %v1863
        %2054 = vmatprep.subr.mxu0 %v1868
        %2055 = vmatpush1.msra.mxu0 %v1867
        %2056 = vmatprep.subr.mxu0 %v1872
        %2057 = vmatpush1.msra.mxu0 %v1871
        %2058 = vmatprep.subr.mxu0 %v1876
        %2059 = vmatpush1.msra.mxu0 %v1875
        %2060 = vmatprep.subr.mxu0 %v1880
        %2061 = vmatpush1.msra.mxu0 %v1879
        %2062 = vmatprep.subr.mxu0 %v1884
        %2063 = vmatpush1.msra.mxu0 %v1883
        %2064 = vmatprep.subr.mxu0 %v1888
        %2065 = vmatpush1.msra.mxu0 %v1887
        %2066 = vmatprep.subr.mxu0 %v1892
        %2067 = vmatpush1.msra.mxu0 %v1891
        %2068 = vmatprep.subr.mxu0 %v1896
        %2069 = vmatpush1.msra.mxu0 %v1895
        %2070 = vmatprep.subr.mxu0 %v1900
        %2071 = vmatpush1.msra.mxu0 %v1899
        %2072 = vmatprep.subr.mxu0 %v1904
        %2073 = vmatpush1.msra.mxu0 %v1903
        %2074 = vmatprep.subr.mxu0 %v1908
        %2075 = vmatpush1.msra.mxu0 %v1907
        %2076 = vmatprep.subr.mxu0 %v1912
        %2077 = vmatpush1.msra.mxu0 %v1911
        %2078 = vmatprep.subr.mxu0 %v1916
        %2079 = vmatpush1.msra.mxu0 %v1915
        %2080 = vmatprep.subr.mxu0 %v1920
        %2081 = vmatpush1.msra.mxu0 %v1919
        %2082 = vmatprep.subr.mxu0 %v1924
        %2083 = vmatpush1.msra.mxu0 %v1923
        %2084 = vmatprep.subr.mxu0 %v1928
        %2085 = vmatpush1.msra.mxu0 %v1927
        %2086 = vmatprep.subr.mxu0 %v1932
        %2087 = vmatpush1.msra.mxu0 %v1931
        %2088 = vmatprep.subr.mxu0 %v1936
        %2089 = vmatpush1.msra.mxu0 %v1935
        %2090 = vmatprep.subr.mxu0 %v1940
        %2091 = vmatpush1.msra.mxu0 %v1939
        %2092 = vmatprep.subr.mxu0 %v1944
        %2093 = vmatpush1.msra.mxu0 %v1943
        %2094 = vmatprep.subr.mxu0 %v1948
        %2095 = vmatpush1.msra.mxu0 %v1947
        %2096 = vmatprep.subr.mxu0 %v1952
        %2097 = vmatpush1.msra.mxu0 %v1951
        %2098 = vmatprep.subr.mxu0 %v1956
        %2099 = vmatpush1.msra.mxu0 %v1955
        %2100 = vmatprep.subr.mxu0 %v1960
        %2101 = vmatpush1.msra.mxu0 %v1959
        %2102 = vmatprep.mubr.f32.mxu0 %v1964
        %2103 = vmatmul.mubr.f32.gmra.mrb[0].mxu0 %v1963
        %v2104 = vpop.f32.mrb[0].mxu0
        %v2105 = vadd.f32 0.0, %v2104
        %v2106 = vpop.f32.mrb[0].mxu0
        %v2107 = vadd.f32 0.0, %v2106
        %2108 = vdwg.mxu0
        %v2109 = vadd.f32 %v1755, %v2034
        %v2110 = vadd.f32 %v1757, %v2036
        %v2111 = vadd.f32 %v1826, %v2105
        %v2112 = vadd.f32 %v1828, %v2107
        %v2113 = vld [vmem:[#allocation9] sm:$0xf]
        %v2115 = vlaneseq
        %v2116 = vshrl.u32 %v2115, 7
        %v2117 = vsub.s32 0, %v2116
        %v2118 = vrot.slane %v2113, %v2117
        %v2119 = vlaneseq
        %v2120 = vshrl.u32 %v2119, 7
        %v2121 = vsub.s32 1, %v2120
        %v2122 = vrot.slane %v2113, %v2121
        %v2123 = vlaneseq
        %v2124 = vshrl.u32 %v2123, 7
        %v2125 = vsub.s32 2, %v2124
        %v2126 = vrot.slane %v2113, %v2125
        %v2127 = vlaneseq
        %v2128 = vshrl.u32 %v2127, 7
        %v2129 = vsub.s32 3, %v2128
        %v2130 = vrot.slane %v2113, %v2129
        %v2135 = vadd.f32 %v2109, %v2118
        %v2136 = vadd.f32 %v2110, %v2122
        %v2137 = vadd.f32 %v2111, %v2126
        %v2138 = vadd.f32 %v2112, %v2130
        %v2139 = vmax.f32 %v2135, %v2136
        %v2140 = vmax.f32 %v2137, %v2138
        %v2141 = vmax.f32 %v2139, %v2140
        %v2142 = vmax.f32 %v2141, 0.0
        %2143 = vst [vmem:[#allocation3] sm:$0xf] %v2142
        %v2144 = vld [vmem:[#allocation10] sm:$0x1]
        %v2145 = vld [vmem:[#allocation3] sm:$0x1]
        %v2146 = vld [vmem:[%s5] sm:$0xff]
        %v2147 = vld [vmem:[%s5 + $0x8] sm:$0xff]
        %v2148 = vld [vmem:[%s5 + $0x10] sm:$0xff]
        %v2149 = vld [vmem:[%s5 + $0x18] sm:$0xff]
        %v2150 = vld [vmem:[%s5 + $0x20] sm:$0xff]
        %v2151 = vld [vmem:[%s5 + $0x28] sm:$0xff]
        %v2152 = vld [vmem:[%s5 + $0x30] sm:$0xff]
        %v2153 = vld [vmem:[%s5 + $0x38] sm:$0xff]
        %v2154 = vld [vmem:[%s5 + $0x40] sm:$0xff]
        %v2155 = vld [vmem:[%s5 + $0x48] sm:$0xff]
        %v2156 = vld [vmem:[%s5 + $0x50] sm:$0xff]
        %v2157 = vld [vmem:[%s5 + $0x58] sm:$0xff]
        %v2158 = vld [vmem:[%s5 + $0x60] sm:$0xff]
        %v2159 = vld [vmem:[%s5 + $0x68] sm:$0xff]
        %v2160 = vld [vmem:[%s5 + $0x70] sm:$0xff]
        %v2161 = vld [vmem:[%s5 + $0x78] sm:$0xff]
        %2162 = vmatprep.subr.mxu0 0.0
        %2163 = vmatpush1.msra.mxu0 %v2146
        %2164 = vmatprep.subr.mxu0 0.0
        %2165 = vmatpush1.msra.mxu0 %v2147
        %2166 = vmatprep.subr.mxu0 0.0
        %2167 = vmatpush1.msra.mxu0 %v2148
        %2168 = vmatprep.subr.mxu0 0.0
        %2169 = vmatpush1.msra.mxu0 %v2149
        %2170 = vmatprep.subr.mxu0 0.0
        %2171 = vmatpush1.msra.mxu0 %v2150
        %2172 = vmatprep.subr.mxu0 0.0
        %2173 = vmatpush1.msra.mxu0 %v2151
        %2174 = vmatprep.subr.mxu0 0.0
        %2175 = vmatpush1.msra.mxu0 %v2152
        %2176 = vmatprep.subr.mxu0 0.0
        %2177 = vmatpush1.msra.mxu0 %v2153
        %2178 = vmatprep.subr.mxu0 0.0
        %2179 = vmatpush1.msra.mxu0 %v2154
        %2180 = vmatprep.subr.mxu0 0.0
        %2181 = vmatpush1.msra.mxu0 %v2155
        %2182 = vmatprep.subr.mxu0 0.0
        %2183 = vmatpush1.msra.mxu0 %v2156
        %2184 = vmatprep.subr.mxu0 0.0
        %2185 = vmatpush1.msra.mxu0 %v2157
        %2186 = vmatprep.subr.mxu0 0.0
        %2187 = vmatpush1.msra.mxu0 %v2158
        %2188 = vmatprep.subr.mxu0 0.0
        %2189 = vmatpush1.msra.mxu0 %v2159
        %2190 = vmatprep.subr.mxu0 0.0
        %2191 = vmatpush1.msra.mxu0 %v2160
        %2192 = vmatprep.subr.mxu0 0.0
        %2193 = vmatpush1.msra.mxu0 %v2161
        %2194 = vmatprep.subr.mxu0 0.0
        %2195 = vmatpush1.msra.mxu0 0.0
        %2196 = vmatprep.subr.mxu0 0.0
        %2197 = vmatpush1.msra.mxu0 0.0
        %2198 = vmatprep.subr.mxu0 0.0
        %2199 = vmatpush1.msra.mxu0 0.0
        %2200 = vmatprep.subr.mxu0 0.0
        %2201 = vmatpush1.msra.mxu0 0.0
        %2202 = vmatprep.subr.mxu0 0.0
        %2203 = vmatpush1.msra.mxu0 0.0
        %2204 = vmatprep.subr.mxu0 0.0
        %2205 = vmatpush1.msra.mxu0 0.0
        %2206 = vmatprep.subr.mxu0 0.0
        %2207 = vmatpush1.msra.mxu0 0.0
        %2208 = vmatprep.subr.mxu0 0.0
        %2209 = vmatpush1.msra.mxu0 0.0
        %2210 = vmatprep.subr.mxu0 0.0
        %2211 = vmatpush1.msra.mxu0 0.0
        %2212 = vmatprep.subr.mxu0 0.0
        %2213 = vmatpush1.msra.mxu0 0.0
        %2214 = vmatprep.subr.mxu0 0.0
        %2215 = vmatpush1.msra.mxu0 0.0
        %2216 = vmatprep.subr.mxu0 0.0
        %2217 = vmatpush1.msra.mxu0 0.0
        %2218 = vmatprep.subr.mxu0 0.0
        %2219 = vmatpush1.msra.mxu0 0.0
        %2220 = vmatprep.subr.mxu0 0.0
        %2221 = vmatpush1.msra.mxu0 0.0
        %2222 = vmatprep.subr.mxu0 0.0
        %2223 = vmatpush1.msra.mxu0 0.0
        %2224 = vmatprep.subr.mxu0 0.0
        %2225 = vmatpush1.msra.mxu0 0.0
        %2226 = vmatprep.mubr.f32.mxu0 0.0
        %2227 = vmatmul.mubr.f32.gmra.mrb[0].mxu0 %v2145
        %v2228 = vpop.f32.mrb[0].mxu0
        %v2229 = vadd.f32 0.0, %v2228
        %v2230 = vpop.f32.mrb[0].mxu0
        %2231 = vdwg.mxu0
        %v2232 = vadd.f32 %v2144, %v2229
        %v2233 = vld [vmem:[#allocation3 + $0x1] sm:$0x1]
        %s2234 = scalar_lea.vmem %s5, 128
        %v2235 = vld [vmem:[%s2234] sm:$0xff]
        %v2236 = vld [vmem:[%s2234 + $0x8] sm:$0xff]
        %v2237 = vld [vmem:[%s2234 + $0x10] sm:$0xff]
        %v2238 = vld [vmem:[%s2234 + $0x18] sm:$0xff]
        %v2239 = vld [vmem:[%s2234 + $0x20] sm:$0xff]
        %v2240 = vld [vmem:[%s2234 + $0x28] sm:$0xff]
        %v2241 = vld [vmem:[%s2234 + $0x30] sm:$0xff]
        %v2242 = vld [vmem:[%s2234 + $0x38] sm:$0xff]
        %v2243 = vld [vmem:[%s2234 + $0x40] sm:$0xff]
        %v2244 = vld [vmem:[%s2234 + $0x48] sm:$0xff]
        %v2245 = vld [vmem:[%s2234 + $0x50] sm:$0xff]
        %v2246 = vld [vmem:[%s2234 + $0x58] sm:$0xff]
        %v2247 = vld [vmem:[%s2234 + $0x60] sm:$0xff]
        %v2248 = vld [vmem:[%s2234 + $0x68] sm:$0xff]
        %v2249 = vld [vmem:[%s2234 + $0x70] sm:$0xff]
        %v2250 = vld [vmem:[%s2234 + $0x78] sm:$0xff]
        %2251 = vmatprep.subr.mxu0 0.0
        %2252 = vmatpush1.msra.mxu0 %v2235
        %2253 = vmatprep.subr.mxu0 0.0
        %2254 = vmatpush1.msra.mxu0 %v2236
        %2255 = vmatprep.subr.mxu0 0.0
        %2256 = vmatpush1.msra.mxu0 %v2237
        %2257 = vmatprep.subr.mxu0 0.0
        %2258 = vmatpush1.msra.mxu0 %v2238
        %2259 = vmatprep.subr.mxu0 0.0
        %2260 = vmatpush1.msra.mxu0 %v2239
        %2261 = vmatprep.subr.mxu0 0.0
        %2262 = vmatpush1.msra.mxu0 %v2240
        %2263 = vmatprep.subr.mxu0 0.0
        %2264 = vmatpush1.msra.mxu0 %v2241
        %2265 = vmatprep.subr.mxu0 0.0
        %2266 = vmatpush1.msra.mxu0 %v2242
        %2267 = vmatprep.subr.mxu0 0.0
        %2268 = vmatpush1.msra.mxu0 %v2243
        %2269 = vmatprep.subr.mxu0 0.0
        %2270 = vmatpush1.msra.mxu0 %v2244
        %2271 = vmatprep.subr.mxu0 0.0
        %2272 = vmatpush1.msra.mxu0 %v2245
        %2273 = vmatprep.subr.mxu0 0.0
        %2274 = vmatpush1.msra.mxu0 %v2246
        %2275 = vmatprep.subr.mxu0 0.0
        %2276 = vmatpush1.msra.mxu0 %v2247
        %2277 = vmatprep.subr.mxu0 0.0
        %2278 = vmatpush1.msra.mxu0 %v2248
        %2279 = vmatprep.subr.mxu0 0.0
        %2280 = vmatpush1.msra.mxu0 %v2249
        %2281 = vmatprep.subr.mxu0 0.0
        %2282 = vmatpush1.msra.mxu0 %v2250
        %2283 = vmatprep.subr.mxu0 0.0
        %2284 = vmatpush1.msra.mxu0 0.0
        %2285 = vmatprep.subr.mxu0 0.0
        %2286 = vmatpush1.msra.mxu0 0.0
        %2287 = vmatprep.subr.mxu0 0.0
        %2288 = vmatpush1.msra.mxu0 0.0
        %2289 = vmatprep.subr.mxu0 0.0
        %2290 = vmatpush1.msra.mxu0 0.0
        %2291 = vmatprep.subr.mxu0 0.0
        %2292 = vmatpush1.msra.mxu0 0.0
        %2293 = vmatprep.subr.mxu0 0.0
        %2294 = vmatpush1.msra.mxu0 0.0
        %2295 = vmatprep.subr.mxu0 0.0
        %2296 = vmatpush1.msra.mxu0 0.0
        %2297 = vmatprep.subr.mxu0 0.0
        %2298 = vmatpush1.msra.mxu0 0.0
        %2299 = vmatprep.subr.mxu0 0.0
        %2300 = vmatpush1.msra.mxu0 0.0
        %2301 = vmatprep.subr.mxu0 0.0
        %2302 = vmatpush1.msra.mxu0 0.0
        %2303 = vmatprep.subr.mxu0 0.0
        %2304 = vmatpush1.msra.mxu0 0.0
        %2305 = vmatprep.subr.mxu0 0.0
        %2306 = vmatpush1.msra.mxu0 0.0
        %2307 = vmatprep.subr.mxu0 0.0
        %2308 = vmatpush1.msra.mxu0 0.0
        %2309 = vmatprep.subr.mxu0 0.0
        %2310 = vmatpush1.msra.mxu0 0.0
        %2311 = vmatprep.subr.mxu0 0.0
        %2312 = vmatpush1.msra.mxu0 0.0
        %2313 = vmatprep.subr.mxu0 0.0
        %2314 = vmatpush1.msra.mxu0 0.0
        %2315 = vmatprep.mubr.f32.mxu0 0.0
        %2316 = vmatmul.mubr.f32.gmra.mrb[0].mxu0 %v2233
        %v2317 = vpop.f32.mrb[0].mxu0
        %v2318 = vadd.f32 0.0, %v2317
        %v2319 = vpop.f32.mrb[0].mxu0
        %2320 = vdwg.mxu0
        %v2321 = vadd.f32 %v2232, %v2318
        %v2322 = vld [vmem:[#allocation3 + $0x2] sm:$0x1]
        %s2323 = scalar_lea.vmem %s5, 256
        %v2324 = vld [vmem:[%s2323] sm:$0xff]
        %v2325 = vld [vmem:[%s2323 + $0x8] sm:$0xff]
        %v2326 = vld [vmem:[%s2323 + $0x10] sm:$0xff]
        %v2327 = vld [vmem:[%s2323 + $0x18] sm:$0xff]
        %v2328 = vld [vmem:[%s2323 + $0x20] sm:$0xff]
        %v2329 = vld [vmem:[%s2323 + $0x28] sm:$0xff]
        %v2330 = vld [vmem:[%s2323 + $0x30] sm:$0xff]
        %v2331 = vld [vmem:[%s2323 + $0x38] sm:$0xff]
        %v2332 = vld [vmem:[%s2323 + $0x40] sm:$0xff]
        %v2333 = vld [vmem:[%s2323 + $0x48] sm:$0xff]
        %v2334 = vld [vmem:[%s2323 + $0x50] sm:$0xff]
        %v2335 = vld [vmem:[%s2323 + $0x58] sm:$0xff]
        %v2336 = vld [vmem:[%s2323 + $0x60] sm:$0xff]
        %v2337 = vld [vmem:[%s2323 + $0x68] sm:$0xff]
        %v2338 = vld [vmem:[%s2323 + $0x70] sm:$0xff]
        %v2339 = vld [vmem:[%s2323 + $0x78] sm:$0xff]
        %2340 = vmatprep.subr.mxu0 0.0
        %2341 = vmatpush1.msra.mxu0 %v2324
        %2342 = vmatprep.subr.mxu0 0.0
        %2343 = vmatpush1.msra.mxu0 %v2325
        %2344 = vmatprep.subr.mxu0 0.0
        %2345 = vmatpush1.msra.mxu0 %v2326
        %2346 = vmatprep.subr.mxu0 0.0
        %2347 = vmatpush1.msra.mxu0 %v2327
        %2348 = vmatprep.subr.mxu0 0.0
        %2349 = vmatpush1.msra.mxu0 %v2328
        %2350 = vmatprep.subr.mxu0 0.0
        %2351 = vmatpush1.msra.mxu0 %v2329
        %2352 = vmatprep.subr.mxu0 0.0
        %2353 = vmatpush1.msra.mxu0 %v2330
        %2354 = vmatprep.subr.mxu0 0.0
        %2355 = vmatpush1.msra.mxu0 %v2331
        %2356 = vmatprep.subr.mxu0 0.0
        %2357 = vmatpush1.msra.mxu0 %v2332
        %2358 = vmatprep.subr.mxu0 0.0
        %2359 = vmatpush1.msra.mxu0 %v2333
        %2360 = vmatprep.subr.mxu0 0.0
        %2361 = vmatpush1.msra.mxu0 %v2334
        %2362 = vmatprep.subr.mxu0 0.0
        %2363 = vmatpush1.msra.mxu0 %v2335
        %2364 = vmatprep.subr.mxu0 0.0
        %2365 = vmatpush1.msra.mxu0 %v2336
        %2366 = vmatprep.subr.mxu0 0.0
        %2367 = vmatpush1.msra.mxu0 %v2337
        %2368 = vmatprep.subr.mxu0 0.0
        %2369 = vmatpush1.msra.mxu0 %v2338
        %2370 = vmatprep.subr.mxu0 0.0
        %2371 = vmatpush1.msra.mxu0 %v2339
        %2372 = vmatprep.subr.mxu0 0.0
        %2373 = vmatpush1.msra.mxu0 0.0
        %2374 = vmatprep.subr.mxu0 0.0
        %2375 = vmatpush1.msra.mxu0 0.0
        %2376 = vmatprep.subr.mxu0 0.0
        %2377 = vmatpush1.msra.mxu0 0.0
        %2378 = vmatprep.subr.mxu0 0.0
        %2379 = vmatpush1.msra.mxu0 0.0
        %2380 = vmatprep.subr.mxu0 0.0
        %2381 = vmatpush1.msra.mxu0 0.0
        %2382 = vmatprep.subr.mxu0 0.0
        %2383 = vmatpush1.msra.mxu0 0.0
        %2384 = vmatprep.subr.mxu0 0.0
        %2385 = vmatpush1.msra.mxu0 0.0
        %2386 = vmatprep.subr.mxu0 0.0
        %2387 = vmatpush1.msra.mxu0 0.0
        %2388 = vmatprep.subr.mxu0 0.0
        %2389 = vmatpush1.msra.mxu0 0.0
        %2390 = vmatprep.subr.mxu0 0.0
        %2391 = vmatpush1.msra.mxu0 0.0
        %2392 = vmatprep.subr.mxu0 0.0
        %2393 = vmatpush1.msra.mxu0 0.0
        %2394 = vmatprep.subr.mxu0 0.0
        %2395 = vmatpush1.msra.mxu0 0.0
        %2396 = vmatprep.subr.mxu0 0.0
        %2397 = vmatpush1.msra.mxu0 0.0
        %2398 = vmatprep.subr.mxu0 0.0
        %2399 = vmatpush1.msra.mxu0 0.0
        %2400 = vmatprep.subr.mxu0 0.0
        %2401 = vmatpush1.msra.mxu0 0.0
        %2402 = vmatprep.subr.mxu0 0.0
        %2403 = vmatpush1.msra.mxu0 0.0
        %2404 = vmatprep.mubr.f32.mxu0 0.0
        %2405 = vmatmul.mubr.f32.gmra.mrb[0].mxu0 %v2322
        %v2406 = vpop.f32.mrb[0].mxu0
        %v2407 = vadd.f32 0.0, %v2406
        %v2408 = vpop.f32.mrb[0].mxu0
        %2409 = vdwg.mxu0
        %v2410 = vadd.f32 %v2321, %v2407
        %v2411 = vld [vmem:[#allocation3 + $0x3] sm:$0x1]
        %s2412 = scalar_lea.vmem %s5, 384
        %v2413 = vld [vmem:[%s2412] sm:$0xff]
        %v2414 = vld [vmem:[%s2412 + $0x8] sm:$0xff]
        %v2415 = vld [vmem:[%s2412 + $0x10] sm:$0xff]
        %v2416 = vld [vmem:[%s2412 + $0x18] sm:$0xff]
        %v2417 = vld [vmem:[%s2412 + $0x20] sm:$0xff]
        %v2418 = vld [vmem:[%s2412 + $0x28] sm:$0xff]
        %v2419 = vld [vmem:[%s2412 + $0x30] sm:$0xff]
        %v2420 = vld [vmem:[%s2412 + $0x38] sm:$0xff]
        %v2421 = vld [vmem:[%s2412 + $0x40] sm:$0xff]
        %v2422 = vld [vmem:[%s2412 + $0x48] sm:$0xff]
        %v2423 = vld [vmem:[%s2412 + $0x50] sm:$0xff]
        %v2424 = vld [vmem:[%s2412 + $0x58] sm:$0xff]
        %v2425 = vld [vmem:[%s2412 + $0x60] sm:$0xff]
        %v2426 = vld [vmem:[%s2412 + $0x68] sm:$0xff]
        %v2427 = vld [vmem:[%s2412 + $0x70] sm:$0xff]
        %v2428 = vld [vmem:[%s2412 + $0x78] sm:$0xff]
        %2429 = vmatprep.subr.mxu0 0.0
        %2430 = vmatpush1.msra.mxu0 %v2413
        %2431 = vmatprep.subr.mxu0 0.0
        %2432 = vmatpush1.msra.mxu0 %v2414
        %2433 = vmatprep.subr.mxu0 0.0
        %2434 = vmatpush1.msra.mxu0 %v2415
        %2435 = vmatprep.subr.mxu0 0.0
        %2436 = vmatpush1.msra.mxu0 %v2416
        %2437 = vmatprep.subr.mxu0 0.0
        %2438 = vmatpush1.msra.mxu0 %v2417
        %2439 = vmatprep.subr.mxu0 0.0
        %2440 = vmatpush1.msra.mxu0 %v2418
        %2441 = vmatprep.subr.mxu0 0.0
        %2442 = vmatpush1.msra.mxu0 %v2419
        %2443 = vmatprep.subr.mxu0 0.0
        %2444 = vmatpush1.msra.mxu0 %v2420
        %2445 = vmatprep.subr.mxu0 0.0
        %2446 = vmatpush1.msra.mxu0 %v2421
        %2447 = vmatprep.subr.mxu0 0.0
        %2448 = vmatpush1.msra.mxu0 %v2422
        %2449 = vmatprep.subr.mxu0 0.0
        %2450 = vmatpush1.msra.mxu0 %v2423
        %2451 = vmatprep.subr.mxu0 0.0
        %2452 = vmatpush1.msra.mxu0 %v2424
        %2453 = vmatprep.subr.mxu0 0.0
        %2454 = vmatpush1.msra.mxu0 %v2425
        %2455 = vmatprep.subr.mxu0 0.0
        %2456 = vmatpush1.msra.mxu0 %v2426
        %2457 = vmatprep.subr.mxu0 0.0
        %2458 = vmatpush1.msra.mxu0 %v2427
        %2459 = vmatprep.subr.mxu0 0.0
        %2460 = vmatpush1.msra.mxu0 %v2428
        %2461 = vmatprep.subr.mxu0 0.0
        %2462 = vmatpush1.msra.mxu0 0.0
        %2463 = vmatprep.subr.mxu0 0.0
        %2464 = vmatpush1.msra.mxu0 0.0
        %2465 = vmatprep.subr.mxu0 0.0
        %2466 = vmatpush1.msra.mxu0 0.0
        %2467 = vmatprep.subr.mxu0 0.0
        %2468 = vmatpush1.msra.mxu0 0.0
        %2469 = vmatprep.subr.mxu0 0.0
        %2470 = vmatpush1.msra.mxu0 0.0
        %2471 = vmatprep.subr.mxu0 0.0
        %2472 = vmatpush1.msra.mxu0 0.0
        %2473 = vmatprep.subr.mxu0 0.0
        %2474 = vmatpush1.msra.mxu0 0.0
        %2475 = vmatprep.subr.mxu0 0.0
        %2476 = vmatpush1.msra.mxu0 0.0
        %2477 = vmatprep.subr.mxu0 0.0
        %2478 = vmatpush1.msra.mxu0 0.0
        %2479 = vmatprep.subr.mxu0 0.0
        %2480 = vmatpush1.msra.mxu0 0.0
        %2481 = vmatprep.subr.mxu0 0.0
        %2482 = vmatpush1.msra.mxu0 0.0
        %2483 = vmatprep.subr.mxu0 0.0
        %2484 = vmatpush1.msra.mxu0 0.0
        %2485 = vmatprep.subr.mxu0 0.0
        %2486 = vmatpush1.msra.mxu0 0.0
        %2487 = vmatprep.subr.mxu0 0.0
        %2488 = vmatpush1.msra.mxu0 0.0
        %2489 = vmatprep.subr.mxu0 0.0
        %2490 = vmatpush1.msra.mxu0 0.0
        %2491 = vmatprep.subr.mxu0 0.0
        %2492 = vmatpush1.msra.mxu0 0.0
        %2493 = vmatprep.mubr.f32.mxu0 0.0
        %2494 = vmatmul.mubr.f32.gmra.mrb[0].mxu0 %v2411
        %v2495 = vpop.f32.mrb[0].mxu0
        %v2496 = vadd.f32 0.0, %v2495
        %v2497 = vpop.f32.mrb[0].mxu0
        %2498 = vdwg.mxu0
        %v2499 = vadd.f32 %v2410, %v2496
        %v2500 = vld [vmem:[%s7] sm:$0xff]
        %v2501 = vld [vmem:[%s7 + $0x8] sm:$0xff]
        %v2502 = vld [vmem:[%s7 + $0x10] sm:$0xff]
        %v2503 = vld [vmem:[%s7 + $0x18] sm:$0xff]
        %v2504 = vld [vmem:[%s7 + $0x20] sm:$0xff]
        %v2505 = vld [vmem:[%s7 + $0x28] sm:$0xff]
        %v2506 = vld [vmem:[%s7 + $0x30] sm:$0xff]
        %v2507 = vld [vmem:[%s7 + $0x38] sm:$0xff]
        %v2508 = vld [vmem:[%s7 + $0x40] sm:$0xff]
        %v2509 = vld [vmem:[%s7 + $0x48] sm:$0xff]
        %v2510 = vld [vmem:[%s7 + $0x50] sm:$0xff]
        %v2511 = vld [vmem:[%s7 + $0x58] sm:$0xff]
        %v2512 = vld [vmem:[%s7 + $0x60] sm:$0xf]
        %v2513 = vld [vmem:[#allocation12] sm:$0x1]
        %vm2514 = vcmask 818176
        %v2516 = vsel %vm2514, %v2499, 0
        %vm2518 = vcmask 1043456
        %v2520 = vsel %vm2518, %v2512, 0
        %2522 = vmatprep.subr.mxu0 0.0
        %2523 = vmatpush1.msra.mxu0 %v2500
        %2524 = vmatprep.subr.mxu0 0.0
        %2525 = vmatpush1.msra.mxu0 %v2501
        %2526 = vmatprep.subr.mxu0 0.0
        %2527 = vmatpush1.msra.mxu0 %v2502
        %2528 = vmatprep.subr.mxu0 0.0
        %2529 = vmatpush1.msra.mxu0 %v2503
        %2530 = vmatprep.subr.mxu0 0.0
        %2531 = vmatpush1.msra.mxu0 %v2504
        %2532 = vmatprep.subr.mxu0 0.0
        %2533 = vmatpush1.msra.mxu0 %v2505
        %2534 = vmatprep.subr.mxu0 0.0
        %2535 = vmatpush1.msra.mxu0 %v2506
        %2536 = vmatprep.subr.mxu0 0.0
        %2537 = vmatpush1.msra.mxu0 %v2507
        %2538 = vmatprep.subr.mxu0 0.0
        %2539 = vmatpush1.msra.mxu0 %v2508
        %2540 = vmatprep.subr.mxu0 0.0
        %2541 = vmatpush1.msra.mxu0 %v2509
        %2542 = vmatprep.subr.mxu0 0.0
        %2543 = vmatpush1.msra.mxu0 %v2510
        %2544 = vmatprep.subr.mxu0 0.0
        %2545 = vmatpush1.msra.mxu0 %v2511
        %2546 = vmatprep.subr.mxu0 0.0
        %2547 = vmatpush1.msra.mxu0 %v2520
        %2548 = vmatprep.subr.mxu0 0.0
        %2549 = vmatpush1.msra.mxu0 0.0
        %2550 = vmatprep.subr.mxu0 0.0
        %2551 = vmatpush1.msra.mxu0 0.0
        %2552 = vmatprep.subr.mxu0 0.0
        %2553 = vmatpush1.msra.mxu0 0.0
        %2554 = vmatprep.subr.mxu0 0.0
        %2555 = vmatpush1.msra.mxu0 0.0
        %2556 = vmatprep.subr.mxu0 0.0
        %2557 = vmatpush1.msra.mxu0 0.0
        %2558 = vmatprep.subr.mxu0 0.0
        %2559 = vmatpush1.msra.mxu0 0.0
        %2560 = vmatprep.subr.mxu0 0.0
        %2561 = vmatpush1.msra.mxu0 0.0
        %2562 = vmatprep.subr.mxu0 0.0
        %2563 = vmatpush1.msra.mxu0 0.0
        %2564 = vmatprep.subr.mxu0 0.0
        %2565 = vmatpush1.msra.mxu0 0.0
        %2566 = vmatprep.subr.mxu0 0.0
        %2567 = vmatpush1.msra.mxu0 0.0
        %2568 = vmatprep.subr.mxu0 0.0
        %2569 = vmatpush1.msra.mxu0 0.0
        %2570 = vmatprep.subr.mxu0 0.0
        %2571 = vmatpush1.msra.mxu0 0.0
        %2572 = vmatprep.subr.mxu0 0.0
        %2573 = vmatpush1.msra.mxu0 0.0
        %2574 = vmatprep.subr.mxu0 0.0
        %2575 = vmatpush1.msra.mxu0 0.0
        %2576 = vmatprep.subr.mxu0 0.0
        %2577 = vmatpush1.msra.mxu0 0.0
        %2578 = vmatprep.subr.mxu0 0.0
        %2579 = vmatpush1.msra.mxu0 0.0
        %2580 = vmatprep.subr.mxu0 0.0
        %2581 = vmatpush1.msra.mxu0 0.0
        %2582 = vmatprep.subr.mxu0 0.0
        %2583 = vmatpush1.msra.mxu0 0.0
        %2584 = vmatprep.subr.mxu0 0.0
        %2585 = vmatpush1.msra.mxu0 0.0
        %2586 = vmatprep.mubr.f32.mxu0 0.0
        %2587 = vmatmul.mubr.f32.gmra.mrb[0].mxu0 %v2516
        %v2588 = vpop.f32.mrb[0].mxu0
        %v2589 = vadd.f32 %v2513, %v2588
        %v2590 = vpop.f32.mrb[0].mxu0
        %2591 = vdwg.mxu0
        %vm2592 = vcmask 73728
        %v2593 = vsel %vm2592, %v2589, -inf
        %2594 = vmax.xlane.f32.xlu0 %v2593
        %v2595 = vpop.xlane.xlu0 %2594
        %v2596 = vsub.f32 %v2589, %v2595
        %v2597 = vmul.f32 %v2596, 1.442695
        %v2598 = vpow.pop %v2597
        %v2599 = vsel %vm2592, %v2598, 0.0
        %2600 = vadd.xlane.f32.xlu0 %v2599
        %v2601 = vpop.xlane.xlu0 %2600
        %v2602 = vlog2.pop %v2601
        %v2603 = vmul.f32 %v2602, 0.6931472
        %v2604 = vsub.f32 %v2596, %v2603
        %2605 = vst.msk [vmem:[%s387] sm:$0x1] %vm2592, %v2604
        %s2606 = sand.u32 %s228, 1
        %s2607 = scalar_lea.sflag [#allocation6], %s2606
        %s2608 = sand.u32 %s228, 1
        %s2609 = scalar_lea.vmem [#allocation13], %s2608
        // Predicated region
        $region77: #{cnn_forward.1} parent=55 // pred_check
          %p2610 = pneg %p238
        $region78: #{cnn_forward.1} parent=55 // pred_check_branch
          %2612 = sbr.rel (%p2610) target = $region80
        $region79: #{cnn_forward.1} parent=55 // pred_region
          %s2614 = ssub.s32 16, 16
          %2615 = vsyncadd %s2607, %s2614
          %s2616 = smul.addr %s26, 16
          %s2617 = scalar_lea.hbm %s9, %s2616
          %s2619 = sshll.u32 %s2609, 4
          %s2620 = int_to_ptr.vmem [resolvable:$true] %s2619
          %2622 = dma.vmem_to_hbm [thread:$0]  %s2620, 16, %s2617, %s2607
        $region80: #{cnn_forward.1} parent=55 // pred_fallthru
          _
      $region56: #{cnn_forward.1} parent=5 // pred_fallthru
        _
      %p2623 = scmp.le.s32.totalorder 2, %s21
      // Predicated region
      $region81: #{cnn_forward.1} parent=5 // pred_check
        %p2624 = pneg %p2623
      $region82: #{cnn_forward.1} parent=5 // pred_check_branch
        %2626 = sbr.rel (%p2624) target = $region84
      $region83: #{cnn_forward.1} parent=5 // pred_region
        %s2627 = ssub.s32 %s21, 2
        // Predicated region
        $region85: #{cnn_forward.1} parent=83 // pred_check
          %p2628 = pneg %p244
        $region86: #{cnn_forward.1} parent=83 // pred_check_branch
          %2630 = sbr.rel (%p2628) target = $region88
        $region87: #{cnn_forward.1} parent=83 // pred_region
          %s2631 = sand.u32 %s229, 1
          %s2632 = scalar_lea.sflag [#allocation6], %s2631
          %s2633 = sand.u32 %s229, 1
          %s2634 = scalar_lea.vmem [#allocation13], %s2633
          %2635 = dma.done %s2632, 16
        $region88: #{cnn_forward.1} parent=83 // pred_fallthru
          _
      $region84: #{cnn_forward.1} parent=5 // pred_fallthru
        _
    $region6: #{cnn_forward.1} parent=1 // loop_footer
      %s25 = sadd.s32 1, %s21
    $region7: #{cnn_forward.1} parent=1 // loop_footer_branch
      %20 = sbr.rel target = $region3
    $region8: #{cnn_forward.1} parent=1 // loop_exit
      _
    %2636 = vsyncpa [#allocation5], 1
    %s2637 = scalar_lea.sflag [#allocation5], 1
    %2638 = vsyncpa %s2637, 1
    %2639 = vsyncpa [#allocation8], 1
    %2640 = vsyncpa [#allocation11], 1
    %2641 = vsyncpa [#allocation6], 1
    %s2642 = scalar_lea.sflag [#allocation6], 1
    %2643 = vsyncpa %s2642, 1

</llo_original>
